<compile_context>
chip_gen: v7x
topology: tpu7x:2x2x1
jax: 0.10.0
libtpu: 0.0.40
codegen_flags: <defaults>
</compile_context>

<pallas_src>
import functools

import jax
import jax.numpy as jnp
from jax import lax
from jax.experimental import pallas as pl
from jax.experimental.pallas import tpu as pltpu


# ----------------------------- Pallas kernel ------------------------------- #
def _sepconv_fused_kernel(x_ref, w_ref, b_ref, out_ref, *, tap_offsets, m_out):
    # x_ref  : (1, Lf, C_in)       f32, zero-padded image, spatial dims flattened
    # w_ref  : (T, C_in, C_pad)    bf16, fused per-tap weights (T = kh*kw)
    # b_ref  : (1, C_pad)          f32, fused bias
    # out_ref: (1, m_out, C_pad)   f32, "over-complete" (W_pad-wide) output rows
    acc = None
    for t, off in enumerate(tap_offsets):
        # Contiguous row-slice of the flattened image for conv tap t.
        lhs = x_ref[0, off:off + m_out, :].astype(jnp.bfloat16)   # (m_out, C_in)
        contrib = jnp.dot(lhs, w_ref[t], preferred_element_type=jnp.float32)
        acc = contrib if acc is None else acc + contrib
    out_ref[0, :, :] = (acc + b_ref[...]).astype(out_ref.dtype)


# ------------------------------ JAX wrapper --------------------------------- #
def separable_conv2d_forward(x, params, *, kernel_size, stride, padding, dilation):
    """x: (N, C_in, H, W) float32 NCHW -> (N, C_out, Ho, Wo) float32."""
    w1, b1, w2, b2 = params["w1"], params["b1"], params["w2"], params["b2"]
    N, C_in, H, W = x.shape
    kh = kw = int(kernel_size)
    s, p, d = int(stride), int(padding), int(dilation)
    C_out = w2.shape[0]

    H_pad, W_pad = H + 2 * p, W + 2 * p
    Ho1 = H_pad - d * (kh - 1)                    # stride-1 output height
    Ho = (H_pad - d * (kh - 1) - 1) // s + 1      # true output height
    Wo = (W_pad - d * (kw - 1) - 1) // s + 1      # true output width

    # ---- input prep (cheap XLA ops, no data duplication) ----
    # TODO(synk): padding_mode other than 'zeros' (module default) not implemented.
    extra = d * (kw - 1)                          # tail elements read by the last taps
    pad_rows = (extra + W_pad - 1) // W_pad if extra else 0
    x_nhwc = jnp.transpose(x, (0, 2, 3, 1))
    x_p = jnp.pad(x_nhwc, ((0, 0), (p, p + pad_rows), (p, p), (0, 0)))
    Lf = (H_pad + pad_rows) * W_pad
    x_flat = x_p.reshape(N, Lf, C_in)             # f32; at prod sizes could be bf16 too

    # ---- algebraically fold the two convs (no nonlinearity in between) ----
    w2m = w2.reshape(C_out, C_in)                                   # (o, m)
    w_fused = jnp.einsum("mcij,om->ijco", w1, w2m)                  # (kh, kw, c, o)
    b_fused = b2 + w2m @ b1                                         # (o,)
    C_pad = max(128, ((C_out + 127) // 128) * 128)                  # lane-dense output
    w_fused = w_fused.reshape(kh * kw, C_in, C_out)
    if C_pad != C_out:
        w_fused = jnp.pad(w_fused, ((0, 0), (0, 0), (0, C_pad - C_out)))
        b_fused = jnp.pad(b_fused, (0, C_pad - C_out))
    w_fused = w_fused.astype(jnp.bfloat16)
    b_fused = b_fused.reshape(1, C_pad).astype(jnp.float32)

    # Over-complete (stride-1, W_pad-wide) output rows per image; valid rows/cols are
    # subsampled afterwards (for stride=1 only the kw-1 wrap columns are discarded).
    m_out = Ho1 * W_pad
    tap_offsets = tuple((i * W_pad + j) * d for i in range(kh) for j in range(kw))

    kernel = functools.partial(
        _sepconv_fused_kernel, tap_offsets=tap_offsets, m_out=m_out)

    oc = pl.pallas_call(
        kernel,
        out_shape=jax.ShapeDtypeStruct((N, m_out, C_pad), jnp.float32),
        grid_spec=pltpu.PrefetchScalarGridSpec(
            num_scalar_prefetch=0,
            grid=(N,),
            in_specs=[
                pl.BlockSpec((1, Lf, C_in), lambda n: (n, 0, 0)),
                pl.BlockSpec((kh * kw, C_in, C_pad), lambda n: (0, 0, 0)),
                pl.BlockSpec((1, C_pad), lambda n: (0, 0)),
            ],
            out_specs=pl.BlockSpec((1, m_out, C_pad), lambda n: (n, 0, 0)),
        ),
        compiler_params=pltpu.CompilerParams(
            dimension_semantics=("parallel",),
            vmem_limit_bytes=32 * 1024 * 1024),
    )(x_flat, w_fused, b_fused)

    # Keep every s-th valid row/column of the over-complete result, drop channel pad.
    oc = oc.reshape(N, Ho1, W_pad, C_pad)
    out = oc[:, 0:(Ho - 1) * s + 1:s, 0:(Wo - 1) * s + 1:s, :C_out]  # (N, Ho, Wo, C_out)
    return jnp.transpose(out, (0, 3, 1, 2))                          # NCHW


# --------------------------- reference (pure JAX) --------------------------- #
def _reference_forward(x, params, *, kernel_size, stride, padding, dilation):
    dn = lax.conv_dimension_numbers(x.shape, params["w1"].shape,
                                    ("NCHW", "OIHW", "NCHW"))
    y = lax.conv_general_dilated(
        x, params["w1"], window_strides=(stride, stride),
        padding=[(padding, padding), (padding, padding)],
        rhs_dilation=(dilation, dilation), dimension_numbers=dn)
    y = y + params["b1"].reshape(1, -1, 1, 1)
    dn2 = lax.conv_dimension_numbers(y.shape, params["w2"].shape,
                                     ("NCHW", "OIHW", "NCHW"))
    z = lax.conv_general_dilated(
        y, params["w2"], window_strides=(1, 1), padding=[(0, 0), (0, 0)],
        dimension_numbers=dn2)
    return z + params["b2"].reshape(1, -1, 1, 1)


# --------------------------------- main ------------------------------------ #
if __name__ == "__main__":
    N, C_in, H, W = 2, 4, 16, 16
    C_out = 8
    kernel_size, stride, padding, dilation = 3, 1, 1, 1

    key = jax.random.PRNGKey(0)
    k1, k2, k3, k4, kx = jax.random.split(key, 5)
    params = {
        # nn.Conv2d weight layouts (OIHW) with deterministic init.
        "w1": 0.1 * jax.random.normal(k1, (C_in, C_in, kernel_size, kernel_size),
                                      jnp.float32),
        "b1": 0.1 * jax.random.normal(k2, (C_in,), jnp.float32),
        "w2": 0.1 * jax.random.normal(k3, (C_out, C_in, 1, 1), jnp.float32),
        "b2": 0.1 * jax.random.normal(k4, (C_out,), jnp.float32),
    }
    x = jax.random.normal(kx, (N, C_in, H, W), jnp.float32)

    fwd = functools.partial(separable_conv2d_forward,
                            kernel_size=kernel_size, stride=stride,
                            padding=padding, dilation=dilation)
    out = jax.block_until_ready(jax.jit(fwd)(x, params))

    ref = _reference_forward(x, params, kernel_size=kernel_size, stride=stride,
                             padding=padding, dilation=dilation)
    assert out.shape == (N, C_out, H, W), out.shape
    max_err = float(jnp.max(jnp.abs(out - ref)))
    # bf16 MXU operands + folded weights vs f32 two-conv reference -> relaxed tolerance.
    assert jnp.allclose(out, ref, atol=2e-2, rtol=2e-2), f"mismatch, max err {max_err}"

    print("KERNEL_OK")
</pallas_src>

<mosaic_0001>
module attributes {stable_mosaic.version = 11 : i64} {
  func.func @_sepconv_fused_kernel(%arg0: i32, %arg1: memref<1x342x4xf32, #tpu.memory_space<vmem>>, %arg2: memref<9x4x128xbf16, #tpu.memory_space<vmem>>, %arg3: memref<1x128xf32, #tpu.memory_space<vmem>>, %arg4: memref<1x288x128xf32, #tpu.memory_space<vmem>>) attributes {dimension_semantics = [#tpu.dimension_semantics<parallel>], iteration_bounds = array<i64: 2>, scalar_prefetch = 0 : i64, scratch_operands = 0 : i64, tpu.core_type = #tpu.core_type<tc>, window_params = [{transform_indices = @transform_0, window_bounds = array<i64: 1, 342, 4>}, {pipeline_mode = #tpu.pipeline_mode<synchronous>, transform_indices = @transform_1, window_bounds = array<i64: 9, 4, 128>}, {pipeline_mode = #tpu.pipeline_mode<synchronous>, transform_indices = @transform_2, window_bounds = array<i64: 1, 128>}, {transform_indices = @transform_3, window_bounds = array<i64: 1, 288, 128>}]} {
    %c0 = arith.constant 0 : index
    %c0_0 = arith.constant 0 : index
    %c0_1 = arith.constant 0 : index
    %0 = vector.load %arg1[%c0, %c0_0, %c0_1] : memref<1x342x4xf32, #tpu.memory_space<vmem>>, vector<1x288x4xf32>
    %1 = vector.shape_cast %0 : vector<1x288x4xf32> to vector<288x4xf32>
    %2 = arith.truncf %1 : vector<288x4xf32> to vector<288x4xbf16>
    %c0_2 = arith.constant 0 : index
    %c0_3 = arith.constant 0 : index
    %c0_4 = arith.constant 0 : index
    %3 = vector.load %arg2[%c0_2, %c0_3, %c0_4] : memref<9x4x128xbf16, #tpu.memory_space<vmem>>, vector<1x4x128xbf16>
    %4 = vector.shape_cast %3 : vector<1x4x128xbf16> to vector<4x128xbf16>
    %cst = arith.constant dense<0.000000e+00> : vector<288x128xf32>
    %5 = tpu.matmul %2, %4, %cst {dimension_numbers = #tpu.dot_dimension_numbers<[1], [0], [0], [1], [0, 0, 1, 1], [], []>} : vector<288x4xbf16>, vector<4x128xbf16>, vector<288x128xf32> -> vector<288x128xf32>
    %c0_5 = arith.constant 0 : index
    %c1 = arith.constant 1 : index
    %c0_6 = arith.constant 0 : index
    %6 = vector.load %arg1[%c0_5, %c1, %c0_6] : memref<1x342x4xf32, #tpu.memory_space<vmem>>, vector<1x288x4xf32>
    %7 = vector.shape_cast %6 : vector<1x288x4xf32> to vector<288x4xf32>
    %8 = arith.truncf %7 : vector<288x4xf32> to vector<288x4xbf16>
    %c1_7 = arith.constant 1 : index
    %c0_8 = arith.constant 0 : index
    %c0_9 = arith.constant 0 : index
    %9 = vector.load %arg2[%c1_7, %c0_8, %c0_9] : memref<9x4x128xbf16, #tpu.memory_space<vmem>>, vector<1x4x128xbf16>
    %10 = vector.shape_cast %9 : vector<1x4x128xbf16> to vector<4x128xbf16>
    %cst_10 = arith.constant dense<0.000000e+00> : vector<288x128xf32>
    %11 = tpu.matmul %8, %10, %cst_10 {dimension_numbers = #tpu.dot_dimension_numbers<[1], [0], [0], [1], [0, 0, 1, 1], [], []>} : vector<288x4xbf16>, vector<4x128xbf16>, vector<288x128xf32> -> vector<288x128xf32>
    %12 = arith.addf %5, %11 : vector<288x128xf32>
    %c0_11 = arith.constant 0 : index
    %c2 = arith.constant 2 : index
    %c0_12 = arith.constant 0 : index
    %13 = vector.load %arg1[%c0_11, %c2, %c0_12] : memref<1x342x4xf32, #tpu.memory_space<vmem>>, vector<1x288x4xf32>
    %14 = vector.shape_cast %13 : vector<1x288x4xf32> to vector<288x4xf32>
    %15 = arith.truncf %14 : vector<288x4xf32> to vector<288x4xbf16>
    %c2_13 = arith.constant 2 : index
    %c0_14 = arith.constant 0 : index
    %c0_15 = arith.constant 0 : index
    %16 = vector.load %arg2[%c2_13, %c0_14, %c0_15] : memref<9x4x128xbf16, #tpu.memory_space<vmem>>, vector<1x4x128xbf16>
    %17 = vector.shape_cast %16 : vector<1x4x128xbf16> to vector<4x128xbf16>
    %cst_16 = arith.constant dense<0.000000e+00> : vector<288x128xf32>
    %18 = tpu.matmul %15, %17, %cst_16 {dimension_numbers = #tpu.dot_dimension_numbers<[1], [0], [0], [1], [0, 0, 1, 1], [], []>} : vector<288x4xbf16>, vector<4x128xbf16>, vector<288x128xf32> -> vector<288x128xf32>
    %19 = arith.addf %12, %18 : vector<288x128xf32>
    %c0_17 = arith.constant 0 : index
    %c18 = arith.constant 18 : index
    %c0_18 = arith.constant 0 : index
    %20 = vector.load %arg1[%c0_17, %c18, %c0_18] : memref<1x342x4xf32, #tpu.memory_space<vmem>>, vector<1x288x4xf32>
    %21 = vector.shape_cast %20 : vector<1x288x4xf32> to vector<288x4xf32>
    %22 = arith.truncf %21 : vector<288x4xf32> to vector<288x4xbf16>
    %c3 = arith.constant 3 : index
    %c0_19 = arith.constant 0 : index
    %c0_20 = arith.constant 0 : index
    %23 = vector.load %arg2[%c3, %c0_19, %c0_20] : memref<9x4x128xbf16, #tpu.memory_space<vmem>>, vector<1x4x128xbf16>
    %24 = vector.shape_cast %23 : vector<1x4x128xbf16> to vector<4x128xbf16>
    %cst_21 = arith.constant dense<0.000000e+00> : vector<288x128xf32>
    %25 = tpu.matmul %22, %24, %cst_21 {dimension_numbers = #tpu.dot_dimension_numbers<[1], [0], [0], [1], [0, 0, 1, 1], [], []>} : vector<288x4xbf16>, vector<4x128xbf16>, vector<288x128xf32> -> vector<288x128xf32>
    %26 = arith.addf %19, %25 : vector<288x128xf32>
    %c0_22 = arith.constant 0 : index
    %c19 = arith.constant 19 : index
    %c0_23 = arith.constant 0 : index
    %27 = vector.load %arg1[%c0_22, %c19, %c0_23] : memref<1x342x4xf32, #tpu.memory_space<vmem>>, vector<1x288x4xf32>
    %28 = vector.shape_cast %27 : vector<1x288x4xf32> to vector<288x4xf32>
    %29 = arith.truncf %28 : vector<288x4xf32> to vector<288x4xbf16>
    %c4 = arith.constant 4 : index
    %c0_24 = arith.constant 0 : index
    %c0_25 = arith.constant 0 : index
    %30 = vector.load %arg2[%c4, %c0_24, %c0_25] : memref<9x4x128xbf16, #tpu.memory_space<vmem>>, vector<1x4x128xbf16>
    %31 = vector.shape_cast %30 : vector<1x4x128xbf16> to vector<4x128xbf16>
    %cst_26 = arith.constant dense<0.000000e+00> : vector<288x128xf32>
    %32 = tpu.matmul %29, %31, %cst_26 {dimension_numbers = #tpu.dot_dimension_numbers<[1], [0], [0], [1], [0, 0, 1, 1], [], []>} : vector<288x4xbf16>, vector<4x128xbf16>, vector<288x128xf32> -> vector<288x128xf32>
    %33 = arith.addf %26, %32 : vector<288x128xf32>
    %c0_27 = arith.constant 0 : index
    %c20 = arith.constant 20 : index
    %c0_28 = arith.constant 0 : index
    %34 = vector.load %arg1[%c0_27, %c20, %c0_28] : memref<1x342x4xf32, #tpu.memory_space<vmem>>, vector<1x288x4xf32>
    %35 = vector.shape_cast %34 : vector<1x288x4xf32> to vector<288x4xf32>
    %36 = arith.truncf %35 : vector<288x4xf32> to vector<288x4xbf16>
    %c5 = arith.constant 5 : index
    %c0_29 = arith.constant 0 : index
    %c0_30 = arith.constant 0 : index
    %37 = vector.load %arg2[%c5, %c0_29, %c0_30] : memref<9x4x128xbf16, #tpu.memory_space<vmem>>, vector<1x4x128xbf16>
    %38 = vector.shape_cast %37 : vector<1x4x128xbf16> to vector<4x128xbf16>
    %cst_31 = arith.constant dense<0.000000e+00> : vector<288x128xf32>
    %39 = tpu.matmul %36, %38, %cst_31 {dimension_numbers = #tpu.dot_dimension_numbers<[1], [0], [0], [1], [0, 0, 1, 1], [], []>} : vector<288x4xbf16>, vector<4x128xbf16>, vector<288x128xf32> -> vector<288x128xf32>
    %40 = arith.addf %33, %39 : vector<288x128xf32>
    %c0_32 = arith.constant 0 : index
    %c36 = arith.constant 36 : index
    %c0_33 = arith.constant 0 : index
    %41 = vector.load %arg1[%c0_32, %c36, %c0_33] : memref<1x342x4xf32, #tpu.memory_space<vmem>>, vector<1x288x4xf32>
    %42 = vector.shape_cast %41 : vector<1x288x4xf32> to vector<288x4xf32>
    %43 = arith.truncf %42 : vector<288x4xf32> to vector<288x4xbf16>
    %c6 = arith.constant 6 : index
    %c0_34 = arith.constant 0 : index
    %c0_35 = arith.constant 0 : index
    %44 = vector.load %arg2[%c6, %c0_34, %c0_35] : memref<9x4x128xbf16, #tpu.memory_space<vmem>>, vector<1x4x128xbf16>
    %45 = vector.shape_cast %44 : vector<1x4x128xbf16> to vector<4x128xbf16>
    %cst_36 = arith.constant dense<0.000000e+00> : vector<288x128xf32>
    %46 = tpu.matmul %43, %45, %cst_36 {dimension_numbers = #tpu.dot_dimension_numbers<[1], [0], [0], [1], [0, 0, 1, 1], [], []>} : vector<288x4xbf16>, vector<4x128xbf16>, vector<288x128xf32> -> vector<288x128xf32>
    %47 = arith.addf %40, %46 : vector<288x128xf32>
    %c0_37 = arith.constant 0 : index
    %c37 = arith.constant 37 : index
    %c0_38 = arith.constant 0 : index
    %48 = vector.load %arg1[%c0_37, %c37, %c0_38] : memref<1x342x4xf32, #tpu.memory_space<vmem>>, vector<1x288x4xf32>
    %49 = vector.shape_cast %48 : vector<1x288x4xf32> to vector<288x4xf32>
    %50 = arith.truncf %49 : vector<288x4xf32> to vector<288x4xbf16>
    %c7 = arith.constant 7 : index
    %c0_39 = arith.constant 0 : index
    %c0_40 = arith.constant 0 : index
    %51 = vector.load %arg2[%c7, %c0_39, %c0_40] : memref<9x4x128xbf16, #tpu.memory_space<vmem>>, vector<1x4x128xbf16>
    %52 = vector.shape_cast %51 : vector<1x4x128xbf16> to vector<4x128xbf16>
    %cst_41 = arith.constant dense<0.000000e+00> : vector<288x128xf32>
    %53 = tpu.matmul %50, %52, %cst_41 {dimension_numbers = #tpu.dot_dimension_numbers<[1], [0], [0], [1], [0, 0, 1, 1], [], []>} : vector<288x4xbf16>, vector<4x128xbf16>, vector<288x128xf32> -> vector<288x128xf32>
    %54 = arith.addf %47, %53 : vector<288x128xf32>
    %c0_42 = arith.constant 0 : index
    %c38 = arith.constant 38 : index
    %c0_43 = arith.constant 0 : index
    %55 = vector.load %arg1[%c0_42, %c38, %c0_43] : memref<1x342x4xf32, #tpu.memory_space<vmem>>, vector<1x288x4xf32>
    %56 = vector.shape_cast %55 : vector<1x288x4xf32> to vector<288x4xf32>
    %57 = arith.truncf %56 : vector<288x4xf32> to vector<288x4xbf16>
    %c8 = arith.constant 8 : index
    %c0_44 = arith.constant 0 : index
    %c0_45 = arith.constant 0 : index
    %58 = vector.load %arg2[%c8, %c0_44, %c0_45] : memref<9x4x128xbf16, #tpu.memory_space<vmem>>, vector<1x4x128xbf16>
    %59 = vector.shape_cast %58 : vector<1x4x128xbf16> to vector<4x128xbf16>
    %cst_46 = arith.constant dense<0.000000e+00> : vector<288x128xf32>
    %60 = tpu.matmul %57, %59, %cst_46 {dimension_numbers = #tpu.dot_dimension_numbers<[1], [0], [0], [1], [0, 0, 1, 1], [], []>} : vector<288x4xbf16>, vector<4x128xbf16>, vector<288x128xf32> -> vector<288x128xf32>
    %61 = arith.addf %54, %60 : vector<288x128xf32>
    %c0_47 = arith.constant 0 : index
    %c0_48 = arith.constant 0 : index
    %62 = vector.load %arg3[%c0_47, %c0_48] : memref<1x128xf32, #tpu.memory_space<vmem>>, vector<1x128xf32>
    %63 = vector.broadcast %62 : vector<1x128xf32> to vector<288x128xf32>
    %64 = arith.addf %61, %63 : vector<288x128xf32>
    %c0_49 = arith.constant 0 : index
    %c0_50 = arith.constant 0 : index
    %c0_51 = arith.constant 0 : index
    %65 = vector.load %arg4[%c0_49, %c0_50, %c0_51] : memref<1x288x128xf32, #tpu.memory_space<vmem>>, vector<1x288x128xf32>
    %66 = vector.shape_cast %65 : vector<1x288x128xf32> to vector<288x128xf32>
    %67 = vector.shape_cast %64 : vector<288x128xf32> to vector<1x288x128xf32>
    tpu.vector_store %arg4[%c0_49, %c0_50, %c0_51], %67 {strides = array<i32>} : memref<1x288x128xf32, #tpu.memory_space<vmem>>, vector<1x288x128xf32>,
    return
  }
  func.func @transform_0(%arg0: i32) -> (i32, i32, i32) {
    %c0_i32 = arith.constant 0 : i32
    %c0_i32_0 = arith.constant 0 : i32
    %c0_i32_1 = arith.constant 0 : i32
    return %arg0, %c0_i32, %c0_i32_0 : i32, i32, i32
  }
  func.func @transform_1(%arg0: i32) -> (i32, i32, i32) {
    %c0_i32 = arith.constant 0 : i32
    %c0_i32_0 = arith.constant 0 : i32
    %c0_i32_1 = arith.constant 0 : i32
    %c0_i32_2 = arith.constant 0 : i32
    return %c0_i32, %c0_i32_0, %c0_i32_1 : i32, i32, i32
  }
  func.func @transform_2(%arg0: i32) -> (i32, i32) {
    %c0_i32 = arith.constant 0 : i32
    %c0_i32_0 = arith.constant 0 : i32
    %c0_i32_1 = arith.constant 0 : i32
    return %c0_i32, %c0_i32_0 : i32, i32
  }
  func.func @transform_3(%arg0: i32) -> (i32, i32, i32) {
    %c0_i32 = arith.constant 0 : i32
    %c0_i32_0 = arith.constant 0 : i32
    %c0_i32_1 = arith.constant 0 : i32
    return %arg0, %c0_i32, %c0_i32_0 : i32, i32, i32
  }
}

</mosaic_0001>

<llo_original>
// kernel: separable_conv2d_forward.1
$region0: #{separable_conv2d_forward.1}
  #allocation0 [shape = 'u32[]', space=smem, size = 0x4, offset = 0x4, fixed_abs, tag = 'smem constant byte address 0x4 - core index']
  #allocation1 [shape = 'u32[144,128]{1,0:T(1,128)}', space=vmem, size = 0x12000, scoped, tag = 'internal scratch']
  %s0 = inlined_call_operand.vmem [shape: f32[2,342,4], index: 0, kind: input, shape index: {}]
  %s1 = inlined_call_operand.vmem [shape: bf16[9,4,128], index: 1, kind: input, shape index: {}]
  %s2 = inlined_call_operand.vmem [shape: f32[1,128], index: 2, kind: input, shape index: {}]
  %s3 = inlined_call_operand.vmem [shape: f32[2,288,128], index: 3, kind: output, shape index: {}]
  %s4 = sld [smem:[#allocation0]]
  $region45: #{separable_conv2d_forward.1} parent=0
    _
  %s6 = ssub.s32 1, %s4
  %s7 = scalar_select 0, %s6, %s4
  loop: start=0, step=1, limit=4
  $region2: #{separable_conv2d_forward.1} parent=0 // loop_pre_header
    _
  $region3: #{separable_conv2d_forward.1} parent=0 // loop_header
    %s9 = sphi 0, %s13
    %p10 = scmp.ge.s32.totalorder %s9, 4
    %s19 = sphi 0, %s21
    %s22 = sphi 0, %s19
    %s23 = sphi 0, %s22
    %s39 = sphi 0, %s23
    %s43 = sphi 0, %s43
    %s45 = sphi 0, %s43
    %s46 = sphi 0, %s45
    %s60 = sphi 0, %s46
    %s64 = sphi 0, %s64
    %s66 = sphi 0, %s64
    %s67 = sphi 0, %s66
    %s81 = sphi 0, %s67
    %s87 = sphi 0, %s89
    %s90 = sphi 0, %s87
    %s91 = sphi 0, %s90
    %s107 = sphi 0, %s91
  $region4: #{separable_conv2d_forward.1} parent=0 // loop_header_branch
    %12 = sbr.rel (%p10) target = $region8
  $region5: #{separable_conv2d_forward.1} parent=0 // loop_body
    %s14 = ssub.s32 %s9, 1
    %s15 = ssub.s32 %s9, 2
    %s16 = sadd.s32 %s9, 1
    %s17 = ssub.s32 %s9, %s16
    %p18 = scmp.eq.s32.totalorder %s17, 0
    %s20 = sadd.s32 %s19, 1
    %s21 = scalar_select %p18, %s19, %s20
    %p24 = pneg %p18
    %p25 = scmp.eq.s32.totalorder %s9, 1
    %p26 = por %p24, %p25
    %p27 = scmp.ne.s32.totalorder %s19, %s22
    %p28 = scmp.eq.s32.totalorder %s9, 0
    %p29 = por %p27, %p28
    %p30 = scmp.ne.s32.totalorder %s19, %s22
    %p31 = scmp.eq.s32.totalorder %s14, 1
    %p32 = por %p30, %p31
    %p33 = scmp.ne.s32.totalorder %s22, %s23
    %p34 = scmp.eq.s32.totalorder %s14, 0
    %p35 = por %p33, %p34
    %p36 = scmp.ne.s32.totalorder %s22, %s23
    %p37 = scmp.eq.s32.totalorder %s15, 1
    %p38 = por %p36, %p37
    %p40 = scmp.ne.s32.totalorder %s23, %s39
    %p41 = scmp.eq.s32.totalorder %s15, 0
    %p42 = por %p40, %p41
    %s44 = sadd.s32 %s43, 1
    %p47 = scmp.eq.s32.totalorder %s9, 1
    %p48 = scmp.ne.s32.totalorder %s43, %s45
    %p49 = scmp.eq.s32.totalorder %s9, 0
    %p50 = por %p48, %p49
    %p51 = scmp.ne.s32.totalorder %s43, %s45
    %p52 = scmp.eq.s32.totalorder %s14, 1
    %p53 = por %p51, %p52
    %p54 = scmp.ne.s32.totalorder %s45, %s46
    %p55 = scmp.eq.s32.totalorder %s14, 0
    %p56 = por %p54, %p55
    %p57 = scmp.ne.s32.totalorder %s45, %s46
    %p58 = scmp.eq.s32.totalorder %s15, 1
    %p59 = por %p57, %p58
    %p61 = scmp.ne.s32.totalorder %s46, %s60
    %p62 = scmp.eq.s32.totalorder %s15, 0
    %p63 = por %p61, %p62
    %s65 = sadd.s32 %s64, 1
    %p68 = scmp.eq.s32.totalorder %s9, 1
    %p69 = scmp.ne.s32.totalorder %s64, %s66
    %p70 = scmp.eq.s32.totalorder %s9, 0
    %p71 = por %p69, %p70
    %p72 = scmp.ne.s32.totalorder %s64, %s66
    %p73 = scmp.eq.s32.totalorder %s14, 1
    %p74 = por %p72, %p73
    %p75 = scmp.ne.s32.totalorder %s66, %s67
    %p76 = scmp.eq.s32.totalorder %s14, 0
    %p77 = por %p75, %p76
    %p78 = scmp.ne.s32.totalorder %s66, %s67
    %p79 = scmp.eq.s32.totalorder %s15, 1
    %p80 = por %p78, %p79
    %p82 = scmp.ne.s32.totalorder %s67, %s81
    %p83 = scmp.eq.s32.totalorder %s15, 0
    %p84 = por %p82, %p83
    %s85 = ssub.s32 %s9, %s16
    %p86 = scmp.eq.s32.totalorder %s85, 0
    %s88 = sadd.s32 %s87, 1
    %s89 = scalar_select %p86, %s87, %s88
    %p92 = pneg %p86
    %p93 = scmp.eq.s32.totalorder %s9, 1
    %p94 = por %p92, %p93
    %p95 = scmp.ne.s32.totalorder %s87, %s90
    %p96 = scmp.eq.s32.totalorder %s9, 0
    %p97 = por %p95, %p96
    %p98 = scmp.ne.s32.totalorder %s87, %s90
    %p99 = scmp.eq.s32.totalorder %s14, 1
    %p100 = por %p98, %p99
    %p101 = scmp.ne.s32.totalorder %s90, %s91
    %p102 = scmp.eq.s32.totalorder %s14, 0
    %p103 = por %p101, %p102
    %p104 = scmp.ne.s32.totalorder %s90, %s91
    %p105 = scmp.eq.s32.totalorder %s15, 1
    %p106 = por %p104, %p105
    %p108 = scmp.ne.s32.totalorder %s91, %s107
    %p109 = scmp.eq.s32.totalorder %s15, 0
    %p110 = por %p108, %p109
    %p111 = scmp.le.s32.totalorder 1, %s9
    %p112 = scmp.lt.s32.totalorder %s9, 3
    %p113 = pnand %p111, %p112
    %p114 = pneg %p113
    // Predicated region
    $region9: #{separable_conv2d_forward.1} parent=5 // pred_check
      _
    $region10: #{separable_conv2d_forward.1} parent=5 // pred_check_branch
      %116 = sbr.rel (%p113) target = $region12
    $region11: #{separable_conv2d_forward.1} parent=5 // pred_region
      %s117 = ssub.s32 %s9, 1
      // Predicated region
      $region13: #{separable_conv2d_forward.1} parent=11 // pred_check
        %p118 = pneg %p56
      $region14: #{separable_conv2d_forward.1} parent=11 // pred_check_branch
        %120 = sbr.rel (%p118) target = $region16
      $region15: #{separable_conv2d_forward.1} parent=11 // pred_region
        _
      $region16: #{separable_conv2d_forward.1} parent=11 // pred_fallthru
        _
      // Predicated region
      $region17: #{separable_conv2d_forward.1} parent=11 // pred_check
        %p121 = pneg %p77
      $region18: #{separable_conv2d_forward.1} parent=11 // pred_check_branch
        %123 = sbr.rel (%p121) target = $region20
      $region19: #{separable_conv2d_forward.1} parent=11 // pred_region
        _
      $region20: #{separable_conv2d_forward.1} parent=11 // pred_fallthru
        _
    $region12: #{separable_conv2d_forward.1} parent=5 // pred_fallthru
      _
    %p124 = scmp.lt.s32.totalorder %s9, 2
    // Predicated region
    $region21: #{separable_conv2d_forward.1} parent=5 // pred_check
      %p125 = pneg %p124
    $region22: #{separable_conv2d_forward.1} parent=5 // pred_check_branch
      %127 = sbr.rel (%p125) target = $region24
    $region23: #{separable_conv2d_forward.1} parent=5 // pred_region
      // Predicated region
      $region25: #{separable_conv2d_forward.1} parent=23 // pred_check
        %p128 = pneg %p29
      $region26: #{separable_conv2d_forward.1} parent=23 // pred_check_branch
        %130 = sbr.rel (%p128) target = $region28
      $region27: #{separable_conv2d_forward.1} parent=23 // pred_region
        %p131 = scmp.lt.s32.totalorder %s9, 1
        %s132 = scalar_select %p131, %s9, 1
        %s133 = smul.addr %s132, 43
        %s134 = smul.addr %s133, 8
        %s135 = scalar_lea.vmem %s0, %s134
      $region28: #{separable_conv2d_forward.1} parent=23 // pred_fallthru
        _
    $region24: #{separable_conv2d_forward.1} parent=5 // pred_fallthru
      _
    %p136 = scmp.le.s32.totalorder 1, %s9
    %p137 = scmp.lt.s32.totalorder %s9, 3
    %p138 = pnand %p136, %p137
    %p139 = pneg %p138
    // Predicated region
    $region29: #{separable_conv2d_forward.1} parent=5 // pred_check
      _
    $region30: #{separable_conv2d_forward.1} parent=5 // pred_check_branch
      %141 = sbr.rel (%p138) target = $region32
    $region31: #{separable_conv2d_forward.1} parent=5 // pred_region
      %s142 = ssub.s32 %s9, 1
      %p143 = scmp.lt.s32.totalorder %s14, 1
      %s144 = scalar_select %p143, %s14, 1
      %s145 = smul.addr %s144, 43
      %s146 = smul.addr %s145, 8
      %s147 = scalar_lea.vmem %s0, %s146
      %p148 = pneg %p35
      %p149 = pneg %p32
      %p150 = pneg %p56
      %p151 = pneg %p53
      %p152 = pneg %p77
      %p153 = pneg %p74
      %p154 = pneg %p103
      %p155 = pneg %p100
      %p156 = scmp.lt.s32.totalorder %s14, 1
      %s157 = scalar_select %p156, %s14, 1
      %s158 = smul.addr %s157, 36
      %s159 = smul.addr %s158, 8
      %s160 = scalar_lea.vmem %s3, %s159
      %p161 = scmp.lt.s32.totalorder %s14, 1
      %s162 = scalar_select %p161, %s14, 1
      %s163 = smul.addr %s162, 43
      %s164 = smul.addr %s163, 8
      %s165 = scalar_lea.vmem %s0, %s164
      %p166 = scmp.lt.s32.totalorder %s14, 1
      %s167 = scalar_select %p166, %s14, 1
      %s168 = smul.addr %s167, 36
      %s169 = smul.addr %s168, 8
      %s170 = scalar_lea.vmem %s3, %s169
      %v172 = vld [vmem:[%s165] sm:$0xff]
      %v173 = vld [vmem:[%s165 + $0x8] sm:$0xff]
      %v174 = vld [vmem:[%s165 + $0x10] sm:$0xff]
      %v175 = vld [vmem:[%s165 + $0x18] sm:$0xff]
      %v176 = vld [vmem:[%s165 + $0x20] sm:$0xff]
      %v177 = vld [vmem:[%s165 + $0x28] sm:$0xff]
      %v178 = vld [vmem:[%s165 + $0x30] sm:$0xff]
      %v179 = vld [vmem:[%s165 + $0x38] sm:$0xff]
      %v180 = vld [vmem:[%s165 + $0x40] sm:$0xff]
      %v181 = vld [vmem:[%s165 + $0x48] sm:$0xff]
      %v182 = vld [vmem:[%s165 + $0x50] sm:$0xff]
      %v183 = vld [vmem:[%s165 + $0x58] sm:$0xff]
      %v184 = vld [vmem:[%s165 + $0x60] sm:$0xff]
      %v185 = vld [vmem:[%s165 + $0x68] sm:$0xff]
      %v186 = vld [vmem:[%s165 + $0x70] sm:$0xff]
      %v187 = vld [vmem:[%s165 + $0x78] sm:$0xff]
      %v188 = vld [vmem:[%s165 + $0x80] sm:$0xff]
      %v189 = vld [vmem:[%s165 + $0x88] sm:$0xff]
      %v190 = vld [vmem:[%s165 + $0x90] sm:$0xff]
      %v191 = vld [vmem:[%s165 + $0x98] sm:$0xff]
      %v192 = vld [vmem:[%s165 + $0xa0] sm:$0xff]
      %v193 = vld [vmem:[%s165 + $0xa8] sm:$0xff]
      %v194 = vld [vmem:[%s165 + $0xb0] sm:$0xff]
      %v195 = vld [vmem:[%s165 + $0xb8] sm:$0xff]
      %v196 = vld [vmem:[%s165 + $0xc0] sm:$0xff]
      %v197 = vld [vmem:[%s165 + $0xc8] sm:$0xff]
      %v198 = vld [vmem:[%s165 + $0xd0] sm:$0xff]
      %v199 = vld [vmem:[%s165 + $0xd8] sm:$0xff]
      %v200 = vld [vmem:[%s165 + $0xe0] sm:$0xff]
      %v201 = vld [vmem:[%s165 + $0xe8] sm:$0xff]
      %v202 = vld [vmem:[%s165 + $0xf0] sm:$0xff]
      %v203 = vld [vmem:[%s165 + $0xf8] sm:$0xff]
      %v204 = vld [vmem:[%s165 + $0x100] sm:$0xff]
      %v205 = vld [vmem:[%s165 + $0x108] sm:$0xff]
      %v206 = vld [vmem:[%s165 + $0x110] sm:$0xff]
      %v207 = vld [vmem:[%s165 + $0x118] sm:$0xff]
      %v208 = vpack.c.bf16 %v173, %v172
      %v209 = vpack.c.bf16 %v175, %v174
      %v210 = vpack.c.bf16 %v177, %v176
      %v211 = vpack.c.bf16 %v179, %v178
      %v212 = vpack.c.bf16 %v181, %v180
      %v213 = vpack.c.bf16 %v183, %v182
      %v214 = vpack.c.bf16 %v185, %v184
      %v215 = vpack.c.bf16 %v187, %v186
      %v216 = vpack.c.bf16 %v189, %v188
      %v217 = vpack.c.bf16 %v191, %v190
      %v218 = vpack.c.bf16 %v193, %v192
      %v219 = vpack.c.bf16 %v195, %v194
      %v220 = vpack.c.bf16 %v197, %v196
      %v221 = vpack.c.bf16 %v199, %v198
      %v222 = vpack.c.bf16 %v201, %v200
      %v223 = vpack.c.bf16 %v203, %v202
      %v224 = vpack.c.bf16 %v205, %v204
      %v225 = vpack.c.bf16 %v207, %v206
      %v226 = vld [vmem:[%s1] sm:$0x3]
      %v227 = vld [vmem:[%s165 + $0x1] sm:$0xff]
      %v228 = vld [vmem:[%s165 + $0x9] sm:$0xff]
      %v229 = vld [vmem:[%s165 + $0x11] sm:$0xff]
      %v230 = vld [vmem:[%s165 + $0x19] sm:$0xff]
      %v231 = vld [vmem:[%s165 + $0x21] sm:$0xff]
      %v232 = vld [vmem:[%s165 + $0x29] sm:$0xff]
      %v233 = vld [vmem:[%s165 + $0x31] sm:$0xff]
      %v234 = vld [vmem:[%s165 + $0x39] sm:$0xff]
      %v235 = vld [vmem:[%s165 + $0x41] sm:$0xff]
      %v236 = vld [vmem:[%s165 + $0x49] sm:$0xff]
      %v237 = vld [vmem:[%s165 + $0x51] sm:$0xff]
      %v238 = vld [vmem:[%s165 + $0x59] sm:$0xff]
      %v239 = vld [vmem:[%s165 + $0x61] sm:$0xff]
      %v240 = vld [vmem:[%s165 + $0x69] sm:$0xff]
      %v241 = vld [vmem:[%s165 + $0x71] sm:$0xff]
      %v242 = vld [vmem:[%s165 + $0x79] sm:$0xff]
      %v243 = vld [vmem:[%s165 + $0x81] sm:$0xff]
      %v244 = vld [vmem:[%s165 + $0x89] sm:$0xff]
      %v245 = vld [vmem:[%s165 + $0x91] sm:$0xff]
      %v246 = vld [vmem:[%s165 + $0x99] sm:$0xff]
      %v247 = vld [vmem:[%s165 + $0xa1] sm:$0xff]
      %v248 = vld [vmem:[%s165 + $0xa9] sm:$0xff]
      %v249 = vld [vmem:[%s165 + $0xb1] sm:$0xff]
      %v250 = vld [vmem:[%s165 + $0xb9] sm:$0xff]
      %v251 = vld [vmem:[%s165 + $0xc1] sm:$0xff]
      %v252 = vld [vmem:[%s165 + $0xc9] sm:$0xff]
      %v253 = vld [vmem:[%s165 + $0xd1] sm:$0xff]
      %v254 = vld [vmem:[%s165 + $0xd9] sm:$0xff]
      %v255 = vld [vmem:[%s165 + $0xe1] sm:$0xff]
      %v256 = vld [vmem:[%s165 + $0xe9] sm:$0xff]
      %v257 = vld [vmem:[%s165 + $0xf1] sm:$0xff]
      %v258 = vld [vmem:[%s165 + $0xf9] sm:$0xff]
      %v259 = vld [vmem:[%s165 + $0x101] sm:$0xff]
      %v260 = vld [vmem:[%s165 + $0x109] sm:$0xff]
      %v261 = vld [vmem:[%s165 + $0x111] sm:$0xff]
      %v262 = vld [vmem:[%s165 + $0x119] sm:$0xff]
      %v263 = vpack.c.bf16 %v228, %v227
      %v264 = vpack.c.bf16 %v230, %v229
      %v265 = vpack.c.bf16 %v232, %v231
      %v266 = vpack.c.bf16 %v234, %v233
      %v267 = vpack.c.bf16 %v236, %v235
      %v268 = vpack.c.bf16 %v238, %v237
      %v269 = vpack.c.bf16 %v240, %v239
      %v270 = vpack.c.bf16 %v242, %v241
      %v271 = vpack.c.bf16 %v244, %v243
      %v272 = vpack.c.bf16 %v246, %v245
      %v273 = vpack.c.bf16 %v248, %v247
      %v274 = vpack.c.bf16 %v250, %v249
      %v275 = vpack.c.bf16 %v252, %v251
      %v276 = vpack.c.bf16 %v254, %v253
      %v277 = vpack.c.bf16 %v256, %v255
      %v278 = vpack.c.bf16 %v258, %v257
      %v279 = vpack.c.bf16 %v260, %v259
      %v280 = vpack.c.bf16 %v262, %v261
      %s281 = scalar_lea.vmem %s1, 2
      %v282 = vld [vmem:[%s281] sm:$0x3]
      %vm283 = vcmask 31744
      %v285 = vsel %vm283, %v263, 0
      %v288 = vsel %vm283, %v264, 0
      %v291 = vsel %vm283, %v265, 0
      %v294 = vsel %vm283, %v266, 0
      %v297 = vsel %vm283, %v267, 0
      %v300 = vsel %vm283, %v268, 0
      %v303 = vsel %vm283, %v269, 0
      %v306 = vsel %vm283, %v270, 0
      %v309 = vsel %vm283, %v271, 0
      %v312 = vsel %vm283, %v272, 0
      %v315 = vsel %vm283, %v273, 0
      %v318 = vsel %vm283, %v274, 0
      %v321 = vsel %vm283, %v275, 0
      %v324 = vsel %vm283, %v276, 0
      %v327 = vsel %vm283, %v277, 0
      %v330 = vsel %vm283, %v278, 0
      %v333 = vsel %vm283, %v279, 0
      %v336 = vsel %vm283, %v280, 0
      %vm338 = vcmask 1041408
      %v340 = vsel %vm338, %v282, 0
      %342 = vmatprep.subr.bf16.mxu0 0
      %343 = vmatpush1.bf16.msra.mxu0 %v340
      %344 = vmatprep.subr.bf16.mxu0 0
      %345 = vmatpush1.bf16.msra.mxu0 0
      %346 = vmatprep.subr.bf16.mxu0 0
      %347 = vmatpush1.bf16.msra.mxu0 0
      %348 = vmatprep.subr.bf16.mxu0 0
      %349 = vmatpush1.bf16.msra.mxu0 0
      %350 = vmatprep.subr.bf16.mxu0 0
      %351 = vmatpush1.bf16.msra.mxu0 0
      %352 = vmatprep.subr.bf16.mxu0 0
      %353 = vmatpush1.bf16.msra.mxu0 0
      %354 = vmatprep.subr.bf16.mxu0 0
      %355 = vmatpush1.bf16.msra.mxu0 0
      %356 = vmatprep.subr.bf16.mxu0 0
      %357 = vmatpush1.bf16.msra.mxu0 0
      %358 = vmatprep.subr.bf16.mxu0 0
      %359 = vmatpush1.bf16.msra.mxu0 0
      %360 = vmatprep.subr.bf16.mxu0 0
      %361 = vmatpush1.bf16.msra.mxu0 0
      %362 = vmatprep.subr.bf16.mxu0 0
      %363 = vmatpush1.bf16.msra.mxu0 0
      %364 = vmatprep.subr.bf16.mxu0 0
      %365 = vmatpush1.bf16.msra.mxu0 0
      %366 = vmatprep.subr.bf16.mxu0 0
      %367 = vmatpush1.bf16.msra.mxu0 0
      %368 = vmatprep.subr.bf16.mxu0 0
      %369 = vmatpush1.bf16.msra.mxu0 0
      %370 = vmatprep.subr.bf16.mxu0 0
      %371 = vmatpush1.bf16.msra.mxu0 0
      %372 = vmatprep.subr.bf16.mxu0 0
      %373 = vmatpush1.bf16.msra.mxu0 0
      %374 = vmatprep.mubr.bf16.mxu0 0
      %375 = vmatmul.mubr.bf16.gmra.mrb[0].mxu0 %v285
      %v376 = vpop.f32.mrb[0].mxu0
      %v377 = vadd.f32 0.0, %v376
      %v378 = vpop.f32.mrb[0].mxu0
      %v379 = vpop.f32.mrb[0].mxu0
      %v380 = vadd.f32 0.0, %v379
      %v381 = vpop.f32.mrb[0].mxu0
      %382 = vmatprep.mubr.bf16.mxu0 0
      %383 = vmatmul.mubr.bf16.gmra.mrb[0].mxu0 %v288
      %v384 = vpop.f32.mrb[0].mxu0
      %v385 = vadd.f32 0.0, %v384
      %v386 = vpop.f32.mrb[0].mxu0
      %v387 = vpop.f32.mrb[0].mxu0
      %v388 = vadd.f32 0.0, %v387
      %v389 = vpop.f32.mrb[0].mxu0
      %390 = vmatprep.mubr.bf16.mxu0 0
      %391 = vmatmul.mubr.bf16.gmra.mrb[0].mxu0 %v291
      %v392 = vpop.f32.mrb[0].mxu0
      %v393 = vadd.f32 0.0, %v392
      %v394 = vpop.f32.mrb[0].mxu0
      %v395 = vpop.f32.mrb[0].mxu0
      %v396 = vadd.f32 0.0, %v395
      %v397 = vpop.f32.mrb[0].mxu0
      %398 = vmatprep.mubr.bf16.mxu0 0
      %399 = vmatmul.mubr.bf16.gmra.mrb[0].mxu0 %v294
      %v400 = vpop.f32.mrb[0].mxu0
      %v401 = vadd.f32 0.0, %v400
      %v402 = vpop.f32.mrb[0].mxu0
      %v403 = vpop.f32.mrb[0].mxu0
      %v404 = vadd.f32 0.0, %v403
      %v405 = vpop.f32.mrb[0].mxu0
      %406 = vmatprep.mubr.bf16.mxu0 0
      %407 = vmatmul.mubr.bf16.gmra.mrb[0].mxu0 %v297
      %v408 = vpop.f32.mrb[0].mxu0
      %v409 = vadd.f32 0.0, %v408
      %v410 = vpop.f32.mrb[0].mxu0
      %v411 = vpop.f32.mrb[0].mxu0
      %v412 = vadd.f32 0.0, %v411
      %v413 = vpop.f32.mrb[0].mxu0
      %414 = vmatprep.mubr.bf16.mxu0 0
      %415 = vmatmul.mubr.bf16.gmra.mrb[0].mxu0 %v300
      %v416 = vpop.f32.mrb[0].mxu0
      %v417 = vadd.f32 0.0, %v416
      %v418 = vpop.f32.mrb[0].mxu0
      %v419 = vpop.f32.mrb[0].mxu0
      %v420 = vadd.f32 0.0, %v419
      %v421 = vpop.f32.mrb[0].mxu0
      %422 = vmatprep.mubr.bf16.mxu0 0
      %423 = vmatmul.mubr.bf16.gmra.mrb[0].mxu0 %v303
      %v424 = vpop.f32.mrb[0].mxu0
      %v425 = vadd.f32 0.0, %v424
      %v426 = vpop.f32.mrb[0].mxu0
      %v427 = vpop.f32.mrb[0].mxu0
      %v428 = vadd.f32 0.0, %v427
      %v429 = vpop.f32.mrb[0].mxu0
      %430 = vmatprep.mubr.bf16.mxu0 0
      %431 = vmatmul.mubr.bf16.gmra.mrb[0].mxu0 %v306
      %v432 = vpop.f32.mrb[0].mxu0
      %v433 = vadd.f32 0.0, %v432
      %v434 = vpop.f32.mrb[0].mxu0
      %v435 = vpop.f32.mrb[0].mxu0
      %v436 = vadd.f32 0.0, %v435
      %v437 = vpop.f32.mrb[0].mxu0
      %438 = vmatprep.mubr.bf16.mxu0 0
      %439 = vmatmul.mubr.bf16.gmra.mrb[0].mxu0 %v309
      %v440 = vpop.f32.mrb[0].mxu0
      %v441 = vadd.f32 0.0, %v440
      %v442 = vpop.f32.mrb[0].mxu0
      %v443 = vpop.f32.mrb[0].mxu0
      %v444 = vadd.f32 0.0, %v443
      %v445 = vpop.f32.mrb[0].mxu0
      %446 = vmatprep.mubr.bf16.mxu0 0
      %447 = vmatmul.mubr.bf16.gmra.mrb[0].mxu0 %v312
      %v448 = vpop.f32.mrb[0].mxu0
      %v449 = vadd.f32 0.0, %v448
      %v450 = vpop.f32.mrb[0].mxu0
      %v451 = vpop.f32.mrb[0].mxu0
      %v452 = vadd.f32 0.0, %v451
      %v453 = vpop.f32.mrb[0].mxu0
      %454 = vmatprep.mubr.bf16.mxu0 0
      %455 = vmatmul.mubr.bf16.gmra.mrb[0].mxu0 %v315
      %v456 = vpop.f32.mrb[0].mxu0
      %v457 = vadd.f32 0.0, %v456
      %v458 = vpop.f32.mrb[0].mxu0
      %v459 = vpop.f32.mrb[0].mxu0
      %v460 = vadd.f32 0.0, %v459
      %v461 = vpop.f32.mrb[0].mxu0
      %462 = vmatprep.mubr.bf16.mxu0 0
      %463 = vmatmul.mubr.bf16.gmra.mrb[0].mxu0 %v318
      %v464 = vpop.f32.mrb[0].mxu0
      %v465 = vadd.f32 0.0, %v464
      %v466 = vpop.f32.mrb[0].mxu0
      %v467 = vpop.f32.mrb[0].mxu0
      %v468 = vadd.f32 0.0, %v467
      %v469 = vpop.f32.mrb[0].mxu0
      %470 = vmatprep.mubr.bf16.mxu0 0
      %471 = vmatmul.mubr.bf16.gmra.mrb[0].mxu0 %v321
      %v472 = vpop.f32.mrb[0].mxu0
      %v473 = vadd.f32 0.0, %v472
      %v474 = vpop.f32.mrb[0].mxu0
      %v475 = vpop.f32.mrb[0].mxu0
      %v476 = vadd.f32 0.0, %v475
      %v477 = vpop.f32.mrb[0].mxu0
      %478 = vmatprep.mubr.bf16.mxu0 0
      %479 = vmatmul.mubr.bf16.gmra.mrb[0].mxu0 %v324
      %v480 = vpop.f32.mrb[0].mxu0
      %v481 = vadd.f32 0.0, %v480
      %v482 = vpop.f32.mrb[0].mxu0
      %v483 = vpop.f32.mrb[0].mxu0
      %v484 = vadd.f32 0.0, %v483
      %v485 = vpop.f32.mrb[0].mxu0
      %486 = vmatprep.mubr.bf16.mxu0 0
      %487 = vmatmul.mubr.bf16.gmra.mrb[0].mxu0 %v327
      %v488 = vpop.f32.mrb[0].mxu0
      %v489 = vadd.f32 0.0, %v488
      %v490 = vpop.f32.mrb[0].mxu0
      %v491 = vpop.f32.mrb[0].mxu0
      %v492 = vadd.f32 0.0, %v491
      %v493 = vpop.f32.mrb[0].mxu0
      %494 = vmatprep.mubr.bf16.mxu0 0
      %495 = vmatmul.mubr.bf16.gmra.mrb[0].mxu0 %v330
      %v496 = vpop.f32.mrb[0].mxu0
      %v497 = vadd.f32 0.0, %v496
      %v498 = vpop.f32.mrb[0].mxu0
      %v499 = vpop.f32.mrb[0].mxu0
      %v500 = vadd.f32 0.0, %v499
      %v501 = vpop.f32.mrb[0].mxu0
      %502 = vmatprep.mubr.bf16.mxu0 0
      %503 = vmatmul.mubr.bf16.gmra.mrb[0].mxu0 %v333
      %v504 = vpop.f32.mrb[0].mxu0
      %v505 = vadd.f32 0.0, %v504
      %v506 = vpop.f32.mrb[0].mxu0
      %v507 = vpop.f32.mrb[0].mxu0
      %v508 = vadd.f32 0.0, %v507
      %v509 = vpop.f32.mrb[0].mxu0
      %510 = vmatprep.mubr.bf16.mxu0 0
      %511 = vmatmul.mubr.bf16.gmra.mrb[0].mxu0 %v336
      %v512 = vpop.f32.mrb[0].mxu0
      %v513 = vadd.f32 0.0, %v512
      %v514 = vpop.f32.mrb[0].mxu0
      %v515 = vpop.f32.mrb[0].mxu0
      %v516 = vadd.f32 0.0, %v515
      %v517 = vpop.f32.mrb[0].mxu0
      %518 = vdwg.mxu0
      %v520 = vsel %vm283, %v208, 0
      %v523 = vsel %vm283, %v209, 0
      %v526 = vsel %vm283, %v210, 0
      %v529 = vsel %vm283, %v211, 0
      %v532 = vsel %vm283, %v212, 0
      %v535 = vsel %vm283, %v213, 0
      %v538 = vsel %vm283, %v214, 0
      %v541 = vsel %vm283, %v215, 0
      %v544 = vsel %vm283, %v216, 0
      %v547 = vsel %vm283, %v217, 0
      %v550 = vsel %vm283, %v218, 0
      %v553 = vsel %vm283, %v219, 0
      %v556 = vsel %vm283, %v220, 0
      %v559 = vsel %vm283, %v221, 0
      %v562 = vsel %vm283, %v222, 0
      %v565 = vsel %vm283, %v223, 0
      %v568 = vsel %vm283, %v224, 0
      %v571 = vsel %vm283, %v225, 0
      %v574 = vsel %vm338, %v226, 0
      %576 = vmatprep.subr.bf16.mxu0 0
      %577 = vmatpush1.bf16.msra.mxu0 %v574
      %578 = vmatprep.subr.bf16.mxu0 0
      %579 = vmatpush1.bf16.msra.mxu0 0
      %580 = vmatprep.subr.bf16.mxu0 0
      %581 = vmatpush1.bf16.msra.mxu0 0
      %582 = vmatprep.subr.bf16.mxu0 0
      %583 = vmatpush1.bf16.msra.mxu0 0
      %584 = vmatprep.subr.bf16.mxu0 0
      %585 = vmatpush1.bf16.msra.mxu0 0
      %586 = vmatprep.subr.bf16.mxu0 0
      %587 = vmatpush1.bf16.msra.mxu0 0
      %588 = vmatprep.subr.bf16.mxu0 0
      %589 = vmatpush1.bf16.msra.mxu0 0
      %590 = vmatprep.subr.bf16.mxu0 0
      %591 = vmatpush1.bf16.msra.mxu0 0
      %592 = vmatprep.subr.bf16.mxu0 0
      %593 = vmatpush1.bf16.msra.mxu0 0
      %594 = vmatprep.subr.bf16.mxu0 0
      %595 = vmatpush1.bf16.msra.mxu0 0
      %596 = vmatprep.subr.bf16.mxu0 0
      %597 = vmatpush1.bf16.msra.mxu0 0
      %598 = vmatprep.subr.bf16.mxu0 0
      %599 = vmatpush1.bf16.msra.mxu0 0
      %600 = vmatprep.subr.bf16.mxu0 0
      %601 = vmatpush1.bf16.msra.mxu0 0
      %602 = vmatprep.subr.bf16.mxu0 0
      %603 = vmatpush1.bf16.msra.mxu0 0
      %604 = vmatprep.subr.bf16.mxu0 0
      %605 = vmatpush1.bf16.msra.mxu0 0
      %606 = vmatprep.subr.bf16.mxu0 0
      %607 = vmatpush1.bf16.msra.mxu0 0
      %608 = vmatprep.mubr.bf16.mxu0 0
      %609 = vmatmul.mubr.bf16.gmra.mrb[0].mxu0 %v520
      %v610 = vpop.f32.mrb[0].mxu0
      %v611 = vadd.f32 %v377, %v610
      %v612 = vpop.f32.mrb[0].mxu0
      %v613 = vpop.f32.mrb[0].mxu0
      %v614 = vadd.f32 %v380, %v613
      %v615 = vpop.f32.mrb[0].mxu0
      %616 = vmatprep.mubr.bf16.mxu0 0
      %617 = vmatmul.mubr.bf16.gmra.mrb[0].mxu0 %v523
      %v618 = vpop.f32.mrb[0].mxu0
      %v619 = vadd.f32 %v385, %v618
      %v620 = vpop.f32.mrb[0].mxu0
      %v621 = vpop.f32.mrb[0].mxu0
      %v622 = vadd.f32 %v388, %v621
      %v623 = vpop.f32.mrb[0].mxu0
      %624 = vmatprep.mubr.bf16.mxu0 0
      %625 = vmatmul.mubr.bf16.gmra.mrb[0].mxu0 %v526
      %v626 = vpop.f32.mrb[0].mxu0
      %v627 = vadd.f32 %v393, %v626
      %v628 = vpop.f32.mrb[0].mxu0
      %v629 = vpop.f32.mrb[0].mxu0
      %v630 = vadd.f32 %v396, %v629
      %v631 = vpop.f32.mrb[0].mxu0
      %632 = vmatprep.mubr.bf16.mxu0 0
      %633 = vmatmul.mubr.bf16.gmra.mrb[0].mxu0 %v529
      %v634 = vpop.f32.mrb[0].mxu0
      %v635 = vadd.f32 %v401, %v634
      %v636 = vpop.f32.mrb[0].mxu0
      %v637 = vpop.f32.mrb[0].mxu0
      %v638 = vadd.f32 %v404, %v637
      %v639 = vpop.f32.mrb[0].mxu0
      %640 = vmatprep.mubr.bf16.mxu0 0
      %641 = vmatmul.mubr.bf16.gmra.mrb[0].mxu0 %v532
      %v642 = vpop.f32.mrb[0].mxu0
      %v643 = vadd.f32 %v409, %v642
      %v644 = vpop.f32.mrb[0].mxu0
      %v645 = vpop.f32.mrb[0].mxu0
      %v646 = vadd.f32 %v412, %v645
      %v647 = vpop.f32.mrb[0].mxu0
      %648 = vmatprep.mubr.bf16.mxu0 0
      %649 = vmatmul.mubr.bf16.gmra.mrb[0].mxu0 %v535
      %v650 = vpop.f32.mrb[0].mxu0
      %v651 = vadd.f32 %v417, %v650
      %v652 = vpop.f32.mrb[0].mxu0
      %v653 = vpop.f32.mrb[0].mxu0
      %v654 = vadd.f32 %v420, %v653
      %v655 = vpop.f32.mrb[0].mxu0
      %656 = vmatprep.mubr.bf16.mxu0 0
      %657 = vmatmul.mubr.bf16.gmra.mrb[0].mxu0 %v538
      %v658 = vpop.f32.mrb[0].mxu0
      %v659 = vadd.f32 %v425, %v658
      %v660 = vpop.f32.mrb[0].mxu0
      %v661 = vpop.f32.mrb[0].mxu0
      %v662 = vadd.f32 %v428, %v661
      %v663 = vpop.f32.mrb[0].mxu0
      %664 = vmatprep.mubr.bf16.mxu0 0
      %665 = vmatmul.mubr.bf16.gmra.mrb[0].mxu0 %v541
      %v666 = vpop.f32.mrb[0].mxu0
      %v667 = vadd.f32 %v433, %v666
      %v668 = vpop.f32.mrb[0].mxu0
      %v669 = vpop.f32.mrb[0].mxu0
      %v670 = vadd.f32 %v436, %v669
      %v671 = vpop.f32.mrb[0].mxu0
      %672 = vmatprep.mubr.bf16.mxu0 0
      %673 = vmatmul.mubr.bf16.gmra.mrb[0].mxu0 %v544
      %v674 = vpop.f32.mrb[0].mxu0
      %v675 = vadd.f32 %v441, %v674
      %v676 = vpop.f32.mrb[0].mxu0
      %v677 = vpop.f32.mrb[0].mxu0
      %v678 = vadd.f32 %v444, %v677
      %v679 = vpop.f32.mrb[0].mxu0
      %680 = vmatprep.mubr.bf16.mxu0 0
      %681 = vmatmul.mubr.bf16.gmra.mrb[0].mxu0 %v547
      %v682 = vpop.f32.mrb[0].mxu0
      %v683 = vadd.f32 %v449, %v682
      %v684 = vpop.f32.mrb[0].mxu0
      %v685 = vpop.f32.mrb[0].mxu0
      %v686 = vadd.f32 %v452, %v685
      %v687 = vpop.f32.mrb[0].mxu0
      %688 = vmatprep.mubr.bf16.mxu0 0
      %689 = vmatmul.mubr.bf16.gmra.mrb[0].mxu0 %v550
      %v690 = vpop.f32.mrb[0].mxu0
      %v691 = vadd.f32 %v457, %v690
      %v692 = vpop.f32.mrb[0].mxu0
      %v693 = vpop.f32.mrb[0].mxu0
      %v694 = vadd.f32 %v460, %v693
      %v695 = vpop.f32.mrb[0].mxu0
      %696 = vmatprep.mubr.bf16.mxu0 0
      %697 = vmatmul.mubr.bf16.gmra.mrb[0].mxu0 %v553
      %v698 = vpop.f32.mrb[0].mxu0
      %v699 = vadd.f32 %v465, %v698
      %v700 = vpop.f32.mrb[0].mxu0
      %v701 = vpop.f32.mrb[0].mxu0
      %v702 = vadd.f32 %v468, %v701
      %v703 = vpop.f32.mrb[0].mxu0
      %704 = vmatprep.mubr.bf16.mxu0 0
      %705 = vmatmul.mubr.bf16.gmra.mrb[0].mxu0 %v556
      %v706 = vpop.f32.mrb[0].mxu0
      %v707 = vadd.f32 %v473, %v706
      %v708 = vpop.f32.mrb[0].mxu0
      %v709 = vpop.f32.mrb[0].mxu0
      %v710 = vadd.f32 %v476, %v709
      %v711 = vpop.f32.mrb[0].mxu0
      %712 = vmatprep.mubr.bf16.mxu0 0
      %713 = vmatmul.mubr.bf16.gmra.mrb[0].mxu0 %v559
      %v714 = vpop.f32.mrb[0].mxu0
      %v715 = vadd.f32 %v481, %v714
      %v716 = vpop.f32.mrb[0].mxu0
      %v717 = vpop.f32.mrb[0].mxu0
      %v718 = vadd.f32 %v484, %v717
      %v719 = vpop.f32.mrb[0].mxu0
      %720 = vmatprep.mubr.bf16.mxu0 0
      %721 = vmatmul.mubr.bf16.gmra.mrb[0].mxu0 %v562
      %v722 = vpop.f32.mrb[0].mxu0
      %v723 = vadd.f32 %v489, %v722
      %v724 = vpop.f32.mrb[0].mxu0
      %v725 = vpop.f32.mrb[0].mxu0
      %v726 = vadd.f32 %v492, %v725
      %v727 = vpop.f32.mrb[0].mxu0
      %728 = vmatprep.mubr.bf16.mxu0 0
      %729 = vmatmul.mubr.bf16.gmra.mrb[0].mxu0 %v565
      %v730 = vpop.f32.mrb[0].mxu0
      %v731 = vadd.f32 %v497, %v730
      %v732 = vpop.f32.mrb[0].mxu0
      %v733 = vpop.f32.mrb[0].mxu0
      %v734 = vadd.f32 %v500, %v733
      %v735 = vpop.f32.mrb[0].mxu0
      %736 = vmatprep.mubr.bf16.mxu0 0
      %737 = vmatmul.mubr.bf16.gmra.mrb[0].mxu0 %v568
      %v738 = vpop.f32.mrb[0].mxu0
      %v739 = vadd.f32 %v505, %v738
      %v740 = vpop.f32.mrb[0].mxu0
      %v741 = vpop.f32.mrb[0].mxu0
      %v742 = vadd.f32 %v508, %v741
      %v743 = vpop.f32.mrb[0].mxu0
      %744 = vmatprep.mubr.bf16.mxu0 0
      %745 = vmatmul.mubr.bf16.gmra.mrb[0].mxu0 %v571
      %v746 = vpop.f32.mrb[0].mxu0
      %v747 = vadd.f32 %v513, %v746
      %v748 = vpop.f32.mrb[0].mxu0
      %v749 = vpop.f32.mrb[0].mxu0
      %v750 = vadd.f32 %v516, %v749
      %v751 = vpop.f32.mrb[0].mxu0
      %752 = vdwg.mxu0
      %v753 = vld [vmem:[%s165 + $0x2] sm:$0xff]
      %v754 = vld [vmem:[%s165 + $0xa] sm:$0xff]
      %v755 = vld [vmem:[%s165 + $0x12] sm:$0xff]
      %v756 = vld [vmem:[%s165 + $0x1a] sm:$0xff]
      %v757 = vld [vmem:[%s165 + $0x22] sm:$0xff]
      %v758 = vld [vmem:[%s165 + $0x2a] sm:$0xff]
      %v759 = vld [vmem:[%s165 + $0x32] sm:$0xff]
      %v760 = vld [vmem:[%s165 + $0x3a] sm:$0xff]
      %v761 = vld [vmem:[%s165 + $0x42] sm:$0xff]
      %v762 = vld [vmem:[%s165 + $0x4a] sm:$0xff]
      %v763 = vld [vmem:[%s165 + $0x52] sm:$0xff]
      %v764 = vld [vmem:[%s165 + $0x5a] sm:$0xff]
      %v765 = vld [vmem:[%s165 + $0x62] sm:$0xff]
      %v766 = vld [vmem:[%s165 + $0x6a] sm:$0xff]
      %v767 = vld [vmem:[%s165 + $0x72] sm:$0xff]
      %v768 = vld [vmem:[%s165 + $0x7a] sm:$0xff]
      %v769 = vld [vmem:[%s165 + $0x82] sm:$0xff]
      %v770 = vld [vmem:[%s165 + $0x8a] sm:$0xff]
      %v771 = vld [vmem:[%s165 + $0x92] sm:$0xff]
      %v772 = vld [vmem:[%s165 + $0x9a] sm:$0xff]
      %v773 = vld [vmem:[%s165 + $0xa2] sm:$0xff]
      %v774 = vld [vmem:[%s165 + $0xaa] sm:$0xff]
      %v775 = vld [vmem:[%s165 + $0xb2] sm:$0xff]
      %v776 = vld [vmem:[%s165 + $0xba] sm:$0xff]
      %v777 = vld [vmem:[%s165 + $0xc2] sm:$0xff]
      %v778 = vld [vmem:[%s165 + $0xca] sm:$0xff]
      %v779 = vld [vmem:[%s165 + $0xd2] sm:$0xff]
      %v780 = vld [vmem:[%s165 + $0xda] sm:$0xff]
      %v781 = vld [vmem:[%s165 + $0xe2] sm:$0xff]
      %v782 = vld [vmem:[%s165 + $0xea] sm:$0xff]
      %v783 = vld [vmem:[%s165 + $0xf2] sm:$0xff]
      %v784 = vld [vmem:[%s165 + $0xfa] sm:$0xff]
      %v785 = vld [vmem:[%s165 + $0x102] sm:$0xff]
      %v786 = vld [vmem:[%s165 + $0x10a] sm:$0xff]
      %v787 = vld [vmem:[%s165 + $0x112] sm:$0xff]
      %v788 = vld [vmem:[%s165 + $0x11a] sm:$0xff]
      %v789 = vpack.c.bf16 %v754, %v753
      %v790 = vpack.c.bf16 %v756, %v755
      %v791 = vpack.c.bf16 %v758, %v757
      %v792 = vpack.c.bf16 %v760, %v759
      %v793 = vpack.c.bf16 %v762, %v761
      %v794 = vpack.c.bf16 %v764, %v763
      %v795 = vpack.c.bf16 %v766, %v765
      %v796 = vpack.c.bf16 %v768, %v767
      %v797 = vpack.c.bf16 %v770, %v769
      %v798 = vpack.c.bf16 %v772, %v771
      %v799 = vpack.c.bf16 %v774, %v773
      %v800 = vpack.c.bf16 %v776, %v775
      %v801 = vpack.c.bf16 %v778, %v777
      %v802 = vpack.c.bf16 %v780, %v779
      %v803 = vpack.c.bf16 %v782, %v781
      %v804 = vpack.c.bf16 %v784, %v783
      %v805 = vpack.c.bf16 %v786, %v785
      %v806 = vpack.c.bf16 %v788, %v787
      %s807 = scalar_lea.vmem %s1, 4
      %v808 = vld [vmem:[%s807] sm:$0x3]
      %v810 = vsel %vm283, %v789, 0
      %v813 = vsel %vm283, %v790, 0
      %v816 = vsel %vm283, %v791, 0
      %v819 = vsel %vm283, %v792, 0
      %v822 = vsel %vm283, %v793, 0
      %v825 = vsel %vm283, %v794, 0
      %v828 = vsel %vm283, %v795, 0
      %v831 = vsel %vm283, %v796, 0
      %v834 = vsel %vm283, %v797, 0
      %v837 = vsel %vm283, %v798, 0
      %v840 = vsel %vm283, %v799, 0
      %v843 = vsel %vm283, %v800, 0
      %v846 = vsel %vm283, %v801, 0
      %v849 = vsel %vm283, %v802, 0
      %v852 = vsel %vm283, %v803, 0
      %v855 = vsel %vm283, %v804, 0
      %v858 = vsel %vm283, %v805, 0
      %v861 = vsel %vm283, %v806, 0
      %v864 = vsel %vm338, %v808, 0
      %866 = vmatprep.subr.bf16.mxu0 0
      %867 = vmatpush1.bf16.msra.mxu0 %v864
      %868 = vmatprep.subr.bf16.mxu0 0
      %869 = vmatpush1.bf16.msra.mxu0 0
      %870 = vmatprep.subr.bf16.mxu0 0
      %871 = vmatpush1.bf16.msra.mxu0 0
      %872 = vmatprep.subr.bf16.mxu0 0
      %873 = vmatpush1.bf16.msra.mxu0 0
      %874 = vmatprep.subr.bf16.mxu0 0
      %875 = vmatpush1.bf16.msra.mxu0 0
      %876 = vmatprep.subr.bf16.mxu0 0
      %877 = vmatpush1.bf16.msra.mxu0 0
      %878 = vmatprep.subr.bf16.mxu0 0
      %879 = vmatpush1.bf16.msra.mxu0 0
      %880 = vmatprep.subr.bf16.mxu0 0
      %881 = vmatpush1.bf16.msra.mxu0 0
      %882 = vmatprep.subr.bf16.mxu0 0
      %883 = vmatpush1.bf16.msra.mxu0 0
      %884 = vmatprep.subr.bf16.mxu0 0
      %885 = vmatpush1.bf16.msra.mxu0 0
      %886 = vmatprep.subr.bf16.mxu0 0
      %887 = vmatpush1.bf16.msra.mxu0 0
      %888 = vmatprep.subr.bf16.mxu0 0
      %889 = vmatpush1.bf16.msra.mxu0 0
      %890 = vmatprep.subr.bf16.mxu0 0
      %891 = vmatpush1.bf16.msra.mxu0 0
      %892 = vmatprep.subr.bf16.mxu0 0
      %893 = vmatpush1.bf16.msra.mxu0 0
      %894 = vmatprep.subr.bf16.mxu0 0
      %895 = vmatpush1.bf16.msra.mxu0 0
      %896 = vmatprep.subr.bf16.mxu0 0
      %897 = vmatpush1.bf16.msra.mxu0 0
      %898 = vmatprep.mubr.bf16.mxu0 0
      %899 = vmatmul.mubr.bf16.gmra.mrb[0].mxu0 %v810
      %v900 = vpop.f32.mrb[0].mxu0
      %v901 = vadd.f32 0.0, %v900
      %v902 = vpop.f32.mrb[0].mxu0
      %v903 = vpop.f32.mrb[0].mxu0
      %v904 = vadd.f32 0.0, %v903
      %v905 = vpop.f32.mrb[0].mxu0
      %906 = vmatprep.mubr.bf16.mxu0 0
      %907 = vmatmul.mubr.bf16.gmra.mrb[0].mxu0 %v813
      %v908 = vpop.f32.mrb[0].mxu0
      %v909 = vadd.f32 0.0, %v908
      %v910 = vpop.f32.mrb[0].mxu0
      %v911 = vpop.f32.mrb[0].mxu0
      %v912 = vadd.f32 0.0, %v911
      %v913 = vpop.f32.mrb[0].mxu0
      %914 = vmatprep.mubr.bf16.mxu0 0
      %915 = vmatmul.mubr.bf16.gmra.mrb[0].mxu0 %v816
      %v916 = vpop.f32.mrb[0].mxu0
      %v917 = vadd.f32 0.0, %v916
      %v918 = vpop.f32.mrb[0].mxu0
      %v919 = vpop.f32.mrb[0].mxu0
      %v920 = vadd.f32 0.0, %v919
      %v921 = vpop.f32.mrb[0].mxu0
      %922 = vmatprep.mubr.bf16.mxu0 0
      %923 = vmatmul.mubr.bf16.gmra.mrb[0].mxu0 %v819
      %v924 = vpop.f32.mrb[0].mxu0
      %v925 = vadd.f32 0.0, %v924
      %v926 = vpop.f32.mrb[0].mxu0
      %v927 = vpop.f32.mrb[0].mxu0
      %v928 = vadd.f32 0.0, %v927
      %v929 = vpop.f32.mrb[0].mxu0
      %930 = vmatprep.mubr.bf16.mxu0 0
      %931 = vmatmul.mubr.bf16.gmra.mrb[0].mxu0 %v822
      %v932 = vpop.f32.mrb[0].mxu0
      %v933 = vadd.f32 0.0, %v932
      %v934 = vpop.f32.mrb[0].mxu0
      %v935 = vpop.f32.mrb[0].mxu0
      %v936 = vadd.f32 0.0, %v935
      %v937 = vpop.f32.mrb[0].mxu0
      %938 = vmatprep.mubr.bf16.mxu0 0
      %939 = vmatmul.mubr.bf16.gmra.mrb[0].mxu0 %v825
      %v940 = vpop.f32.mrb[0].mxu0
      %v941 = vadd.f32 0.0, %v940
      %v942 = vpop.f32.mrb[0].mxu0
      %v943 = vpop.f32.mrb[0].mxu0
      %v944 = vadd.f32 0.0, %v943
      %v945 = vpop.f32.mrb[0].mxu0
      %946 = vmatprep.mubr.bf16.mxu0 0
      %947 = vmatmul.mubr.bf16.gmra.mrb[0].mxu0 %v828
      %v948 = vpop.f32.mrb[0].mxu0
      %v949 = vadd.f32 0.0, %v948
      %v950 = vpop.f32.mrb[0].mxu0
      %v951 = vpop.f32.mrb[0].mxu0
      %v952 = vadd.f32 0.0, %v951
      %v953 = vpop.f32.mrb[0].mxu0
      %954 = vmatprep.mubr.bf16.mxu0 0
      %955 = vmatmul.mubr.bf16.gmra.mrb[0].mxu0 %v831
      %v956 = vpop.f32.mrb[0].mxu0
      %v957 = vadd.f32 0.0, %v956
      %v958 = vpop.f32.mrb[0].mxu0
      %v959 = vpop.f32.mrb[0].mxu0
      %v960 = vadd.f32 0.0, %v959
      %v961 = vpop.f32.mrb[0].mxu0
      %962 = vmatprep.mubr.bf16.mxu0 0
      %963 = vmatmul.mubr.bf16.gmra.mrb[0].mxu0 %v834
      %v964 = vpop.f32.mrb[0].mxu0
      %v965 = vadd.f32 0.0, %v964
      %v966 = vpop.f32.mrb[0].mxu0
      %v967 = vpop.f32.mrb[0].mxu0
      %v968 = vadd.f32 0.0, %v967
      %v969 = vpop.f32.mrb[0].mxu0
      %970 = vmatprep.mubr.bf16.mxu0 0
      %971 = vmatmul.mubr.bf16.gmra.mrb[0].mxu0 %v837
      %v972 = vpop.f32.mrb[0].mxu0
      %v973 = vadd.f32 0.0, %v972
      %v974 = vpop.f32.mrb[0].mxu0
      %v975 = vpop.f32.mrb[0].mxu0
      %v976 = vadd.f32 0.0, %v975
      %v977 = vpop.f32.mrb[0].mxu0
      %978 = vmatprep.mubr.bf16.mxu0 0
      %979 = vmatmul.mubr.bf16.gmra.mrb[0].mxu0 %v840
      %v980 = vpop.f32.mrb[0].mxu0
      %v981 = vadd.f32 0.0, %v980
      %v982 = vpop.f32.mrb[0].mxu0
      %v983 = vpop.f32.mrb[0].mxu0
      %v984 = vadd.f32 0.0, %v983
      %v985 = vpop.f32.mrb[0].mxu0
      %986 = vmatprep.mubr.bf16.mxu0 0
      %987 = vmatmul.mubr.bf16.gmra.mrb[0].mxu0 %v843
      %v988 = vpop.f32.mrb[0].mxu0
      %v989 = vadd.f32 0.0, %v988
      %v990 = vpop.f32.mrb[0].mxu0
      %v991 = vpop.f32.mrb[0].mxu0
      %v992 = vadd.f32 0.0, %v991
      %v993 = vpop.f32.mrb[0].mxu0
      %994 = vmatprep.mubr.bf16.mxu0 0
      %995 = vmatmul.mubr.bf16.gmra.mrb[0].mxu0 %v846
      %v996 = vpop.f32.mrb[0].mxu0
      %v997 = vadd.f32 0.0, %v996
      %v998 = vpop.f32.mrb[0].mxu0
      %v999 = vpop.f32.mrb[0].mxu0
      %v1000 = vadd.f32 0.0, %v999
      %v1001 = vpop.f32.mrb[0].mxu0
      %1002 = vmatprep.mubr.bf16.mxu0 0
      %1003 = vmatmul.mubr.bf16.gmra.mrb[0].mxu0 %v849
      %v1004 = vpop.f32.mrb[0].mxu0
      %v1005 = vadd.f32 0.0, %v1004
      %v1006 = vpop.f32.mrb[0].mxu0
      %v1007 = vpop.f32.mrb[0].mxu0
      %v1008 = vadd.f32 0.0, %v1007
      %v1009 = vpop.f32.mrb[0].mxu0
      %1010 = vmatprep.mubr.bf16.mxu0 0
      %1011 = vmatmul.mubr.bf16.gmra.mrb[0].mxu0 %v852
      %v1012 = vpop.f32.mrb[0].mxu0
      %v1013 = vadd.f32 0.0, %v1012
      %v1014 = vpop.f32.mrb[0].mxu0
      %v1015 = vpop.f32.mrb[0].mxu0
      %v1016 = vadd.f32 0.0, %v1015
      %v1017 = vpop.f32.mrb[0].mxu0
      %1018 = vmatprep.mubr.bf16.mxu0 0
      %1019 = vmatmul.mubr.bf16.gmra.mrb[0].mxu0 %v855
      %v1020 = vpop.f32.mrb[0].mxu0
      %v1021 = vadd.f32 0.0, %v1020
      %v1022 = vpop.f32.mrb[0].mxu0
      %v1023 = vpop.f32.mrb[0].mxu0
      %v1024 = vadd.f32 0.0, %v1023
      %v1025 = vpop.f32.mrb[0].mxu0
      %1026 = vmatprep.mubr.bf16.mxu0 0
      %1027 = vmatmul.mubr.bf16.gmra.mrb[0].mxu0 %v858
      %v1028 = vpop.f32.mrb[0].mxu0
      %v1029 = vadd.f32 0.0, %v1028
      %v1030 = vpop.f32.mrb[0].mxu0
      %v1031 = vpop.f32.mrb[0].mxu0
      %v1032 = vadd.f32 0.0, %v1031
      %v1033 = vpop.f32.mrb[0].mxu0
      %1034 = vmatprep.mubr.bf16.mxu0 0
      %1035 = vmatmul.mubr.bf16.gmra.mrb[0].mxu0 %v861
      %v1036 = vpop.f32.mrb[0].mxu0
      %v1037 = vadd.f32 0.0, %v1036
      %v1038 = vpop.f32.mrb[0].mxu0
      %v1039 = vpop.f32.mrb[0].mxu0
      %v1040 = vadd.f32 0.0, %v1039
      %v1041 = vpop.f32.mrb[0].mxu0
      %1042 = vdwg.mxu0
      %v1043 = vadd.f32 %v611, %v901
      %v1044 = vadd.f32 %v614, %v904
      %v1045 = vadd.f32 %v619, %v909
      %v1046 = vadd.f32 %v622, %v912
      %v1047 = vadd.f32 %v627, %v917
      %v1048 = vadd.f32 %v630, %v920
      %v1049 = vadd.f32 %v635, %v925
      %v1050 = vadd.f32 %v638, %v928
      %v1051 = vadd.f32 %v643, %v933
      %v1052 = vadd.f32 %v646, %v936
      %v1053 = vadd.f32 %v651, %v941
      %v1054 = vadd.f32 %v654, %v944
      %v1055 = vadd.f32 %v659, %v949
      %v1056 = vadd.f32 %v662, %v952
      %v1057 = vadd.f32 %v667, %v957
      %v1058 = vadd.f32 %v670, %v960
      %v1059 = vadd.f32 %v675, %v965
      %v1060 = vadd.f32 %v678, %v968
      %v1061 = vadd.f32 %v683, %v973
      %v1062 = vadd.f32 %v686, %v976
      %v1063 = vadd.f32 %v691, %v981
      %v1064 = vadd.f32 %v694, %v984
      %v1065 = vadd.f32 %v699, %v989
      %v1066 = vadd.f32 %v702, %v992
      %v1067 = vadd.f32 %v707, %v997
      %v1068 = vadd.f32 %v710, %v1000
      %v1069 = vadd.f32 %v715, %v1005
      %v1070 = vadd.f32 %v718, %v1008
      %v1071 = vadd.f32 %v723, %v1013
      %v1072 = vadd.f32 %v726, %v1016
      %v1073 = vadd.f32 %v731, %v1021
      %v1074 = vadd.f32 %v734, %v1024
      %v1075 = vadd.f32 %v739, %v1029
      %v1076 = vadd.f32 %v742, %v1032
      %v1077 = vadd.f32 %v747, %v1037
      %v1078 = vadd.f32 %v750, %v1040
      %v1079 = vld [vmem:[%s165 + $0x12] sm:$0xff]
      %v1080 = vld [vmem:[%s165 + $0x1a] sm:$0xff]
      %v1081 = vld [vmem:[%s165 + $0x22] sm:$0xff]
      %v1082 = vld [vmem:[%s165 + $0x2a] sm:$0xff]
      %v1083 = vld [vmem:[%s165 + $0x32] sm:$0xff]
      %v1084 = vld [vmem:[%s165 + $0x3a] sm:$0xff]
      %v1085 = vld [vmem:[%s165 + $0x42] sm:$0xff]
      %v1086 = vld [vmem:[%s165 + $0x4a] sm:$0xff]
      %v1087 = vld [vmem:[%s165 + $0x52] sm:$0xff]
      %v1088 = vld [vmem:[%s165 + $0x5a] sm:$0xff]
      %v1089 = vld [vmem:[%s165 + $0x62] sm:$0xff]
      %v1090 = vld [vmem:[%s165 + $0x6a] sm:$0xff]
      %v1091 = vld [vmem:[%s165 + $0x72] sm:$0xff]
      %v1092 = vld [vmem:[%s165 + $0x7a] sm:$0xff]
      %v1093 = vld [vmem:[%s165 + $0x82] sm:$0xff]
      %v1094 = vld [vmem:[%s165 + $0x8a] sm:$0xff]
      %v1095 = vld [vmem:[%s165 + $0x92] sm:$0xff]
      %v1096 = vld [vmem:[%s165 + $0x9a] sm:$0xff]
      %v1097 = vld [vmem:[%s165 + $0xa2] sm:$0xff]
      %v1098 = vld [vmem:[%s165 + $0xaa] sm:$0xff]
      %v1099 = vld [vmem:[%s165 + $0xb2] sm:$0xff]
      %v1100 = vld [vmem:[%s165 + $0xba] sm:$0xff]
      %v1101 = vld [vmem:[%s165 + $0xc2] sm:$0xff]
      %v1102 = vld [vmem:[%s165 + $0xca] sm:$0xff]
      %v1103 = vld [vmem:[%s165 + $0xd2] sm:$0xff]
      %v1104 = vld [vmem:[%s165 + $0xda] sm:$0xff]
      %v1105 = vld [vmem:[%s165 + $0xe2] sm:$0xff]
      %v1106 = vld [vmem:[%s165 + $0xea] sm:$0xff]
      %v1107 = vld [vmem:[%s165 + $0xf2] sm:$0xff]
      %v1108 = vld [vmem:[%s165 + $0xfa] sm:$0xff]
      %v1109 = vld [vmem:[%s165 + $0x102] sm:$0xff]
      %v1110 = vld [vmem:[%s165 + $0x10a] sm:$0xff]
      %v1111 = vld [vmem:[%s165 + $0x112] sm:$0xff]
      %v1112 = vld [vmem:[%s165 + $0x11a] sm:$0xff]
      %v1113 = vld [vmem:[%s165 + $0x122] sm:$0xff]
      %v1114 = vld [vmem:[%s165 + $0x12a] sm:$0xff]
      %v1115 = vpack.c.bf16 %v1080, %v1079
      %v1116 = vpack.c.bf16 %v1082, %v1081
      %v1117 = vpack.c.bf16 %v1084, %v1083
      %v1118 = vpack.c.bf16 %v1086, %v1085
      %v1119 = vpack.c.bf16 %v1088, %v1087
      %v1120 = vpack.c.bf16 %v1090, %v1089
      %v1121 = vpack.c.bf16 %v1092, %v1091
      %v1122 = vpack.c.bf16 %v1094, %v1093
      %v1123 = vpack.c.bf16 %v1096, %v1095
      %v1124 = vpack.c.bf16 %v1098, %v1097
      %v1125 = vpack.c.bf16 %v1100, %v1099
      %v1126 = vpack.c.bf16 %v1102, %v1101
      %v1127 = vpack.c.bf16 %v1104, %v1103
      %v1128 = vpack.c.bf16 %v1106, %v1105
      %v1129 = vpack.c.bf16 %v1108, %v1107
      %v1130 = vpack.c.bf16 %v1110, %v1109
      %v1131 = vpack.c.bf16 %v1112, %v1111
      %v1132 = vpack.c.bf16 %v1114, %v1113
      %s1133 = scalar_lea.vmem %s1, 6
      %v1134 = vld [vmem:[%s1133] sm:$0x3]
      %v1136 = vsel %vm283, %v1115, 0
      %v1139 = vsel %vm283, %v1116, 0
      %v1142 = vsel %vm283, %v1117, 0
      %v1145 = vsel %vm283, %v1118, 0
      %v1148 = vsel %vm283, %v1119, 0
      %v1151 = vsel %vm283, %v1120, 0
      %v1154 = vsel %vm283, %v1121, 0
      %v1157 = vsel %vm283, %v1122, 0
      %v1160 = vsel %vm283, %v1123, 0
      %v1163 = vsel %vm283, %v1124, 0
      %v1166 = vsel %vm283, %v1125, 0
      %v1169 = vsel %vm283, %v1126, 0
      %v1172 = vsel %vm283, %v1127, 0
      %v1175 = vsel %vm283, %v1128, 0
      %v1178 = vsel %vm283, %v1129, 0
      %v1181 = vsel %vm283, %v1130, 0
      %v1184 = vsel %vm283, %v1131, 0
      %v1187 = vsel %vm283, %v1132, 0
      %v1190 = vsel %vm338, %v1134, 0
      %1192 = vmatprep.subr.bf16.mxu0 0
      %1193 = vmatpush1.bf16.msra.mxu0 %v1190
      %1194 = vmatprep.subr.bf16.mxu0 0
      %1195 = vmatpush1.bf16.msra.mxu0 0
      %1196 = vmatprep.subr.bf16.mxu0 0
      %1197 = vmatpush1.bf16.msra.mxu0 0
      %1198 = vmatprep.subr.bf16.mxu0 0
      %1199 = vmatpush1.bf16.msra.mxu0 0
      %1200 = vmatprep.subr.bf16.mxu0 0
      %1201 = vmatpush1.bf16.msra.mxu0 0
      %1202 = vmatprep.subr.bf16.mxu0 0
      %1203 = vmatpush1.bf16.msra.mxu0 0
      %1204 = vmatprep.subr.bf16.mxu0 0
      %1205 = vmatpush1.bf16.msra.mxu0 0
      %1206 = vmatprep.subr.bf16.mxu0 0
      %1207 = vmatpush1.bf16.msra.mxu0 0
      %1208 = vmatprep.subr.bf16.mxu0 0
      %1209 = vmatpush1.bf16.msra.mxu0 0
      %1210 = vmatprep.subr.bf16.mxu0 0
      %1211 = vmatpush1.bf16.msra.mxu0 0
      %1212 = vmatprep.subr.bf16.mxu0 0
      %1213 = vmatpush1.bf16.msra.mxu0 0
      %1214 = vmatprep.subr.bf16.mxu0 0
      %1215 = vmatpush1.bf16.msra.mxu0 0
      %1216 = vmatprep.subr.bf16.mxu0 0
      %1217 = vmatpush1.bf16.msra.mxu0 0
      %1218 = vmatprep.subr.bf16.mxu0 0
      %1219 = vmatpush1.bf16.msra.mxu0 0
      %1220 = vmatprep.subr.bf16.mxu0 0
      %1221 = vmatpush1.bf16.msra.mxu0 0
      %1222 = vmatprep.subr.bf16.mxu0 0
      %1223 = vmatpush1.bf16.msra.mxu0 0
      %1224 = vmatprep.mubr.bf16.mxu0 0
      %1225 = vmatmul.mubr.bf16.gmra.mrb[0].mxu0 %v1136
      %v1226 = vpop.f32.mrb[0].mxu0
      %v1227 = vadd.f32 0.0, %v1226
      %v1228 = vpop.f32.mrb[0].mxu0
      %v1229 = vpop.f32.mrb[0].mxu0
      %v1230 = vadd.f32 0.0, %v1229
      %v1231 = vpop.f32.mrb[0].mxu0
      %1232 = vmatprep.mubr.bf16.mxu0 0
      %1233 = vmatmul.mubr.bf16.gmra.mrb[0].mxu0 %v1139
      %v1234 = vpop.f32.mrb[0].mxu0
      %v1235 = vadd.f32 0.0, %v1234
      %v1236 = vpop.f32.mrb[0].mxu0
      %v1237 = vpop.f32.mrb[0].mxu0
      %v1238 = vadd.f32 0.0, %v1237
      %v1239 = vpop.f32.mrb[0].mxu0
      %1240 = vmatprep.mubr.bf16.mxu0 0
      %1241 = vmatmul.mubr.bf16.gmra.mrb[0].mxu0 %v1142
      %v1242 = vpop.f32.mrb[0].mxu0
      %v1243 = vadd.f32 0.0, %v1242
      %v1244 = vpop.f32.mrb[0].mxu0
      %v1245 = vpop.f32.mrb[0].mxu0
      %v1246 = vadd.f32 0.0, %v1245
      %v1247 = vpop.f32.mrb[0].mxu0
      %1248 = vmatprep.mubr.bf16.mxu0 0
      %1249 = vmatmul.mubr.bf16.gmra.mrb[0].mxu0 %v1145
      %v1250 = vpop.f32.mrb[0].mxu0
      %v1251 = vadd.f32 0.0, %v1250
      %v1252 = vpop.f32.mrb[0].mxu0
      %v1253 = vpop.f32.mrb[0].mxu0
      %v1254 = vadd.f32 0.0, %v1253
      %v1255 = vpop.f32.mrb[0].mxu0
      %1256 = vmatprep.mubr.bf16.mxu0 0
      %1257 = vmatmul.mubr.bf16.gmra.mrb[0].mxu0 %v1148
      %v1258 = vpop.f32.mrb[0].mxu0
      %v1259 = vadd.f32 0.0, %v1258
      %v1260 = vpop.f32.mrb[0].mxu0
      %v1261 = vpop.f32.mrb[0].mxu0
      %v1262 = vadd.f32 0.0, %v1261
      %v1263 = vpop.f32.mrb[0].mxu0
      %1264 = vmatprep.mubr.bf16.mxu0 0
      %1265 = vmatmul.mubr.bf16.gmra.mrb[0].mxu0 %v1151
      %v1266 = vpop.f32.mrb[0].mxu0
      %v1267 = vadd.f32 0.0, %v1266
      %v1268 = vpop.f32.mrb[0].mxu0
      %v1269 = vpop.f32.mrb[0].mxu0
      %v1270 = vadd.f32 0.0, %v1269
      %v1271 = vpop.f32.mrb[0].mxu0
      %1272 = vmatprep.mubr.bf16.mxu0 0
      %1273 = vmatmul.mubr.bf16.gmra.mrb[0].mxu0 %v1154
      %v1274 = vpop.f32.mrb[0].mxu0
      %v1275 = vadd.f32 0.0, %v1274
      %v1276 = vpop.f32.mrb[0].mxu0
      %v1277 = vpop.f32.mrb[0].mxu0
      %v1278 = vadd.f32 0.0, %v1277
      %v1279 = vpop.f32.mrb[0].mxu0
      %1280 = vmatprep.mubr.bf16.mxu0 0
      %1281 = vmatmul.mubr.bf16.gmra.mrb[0].mxu0 %v1157
      %v1282 = vpop.f32.mrb[0].mxu0
      %v1283 = vadd.f32 0.0, %v1282
      %v1284 = vpop.f32.mrb[0].mxu0
      %v1285 = vpop.f32.mrb[0].mxu0
      %v1286 = vadd.f32 0.0, %v1285
      %v1287 = vpop.f32.mrb[0].mxu0
      %1288 = vmatprep.mubr.bf16.mxu0 0
      %1289 = vmatmul.mubr.bf16.gmra.mrb[0].mxu0 %v1160
      %v1290 = vpop.f32.mrb[0].mxu0
      %v1291 = vadd.f32 0.0, %v1290
      %v1292 = vpop.f32.mrb[0].mxu0
      %v1293 = vpop.f32.mrb[0].mxu0
      %v1294 = vadd.f32 0.0, %v1293
      %v1295 = vpop.f32.mrb[0].mxu0
      %1296 = vmatprep.mubr.bf16.mxu0 0
      %1297 = vmatmul.mubr.bf16.gmra.mrb[0].mxu0 %v1163
      %v1298 = vpop.f32.mrb[0].mxu0
      %v1299 = vadd.f32 0.0, %v1298
      %v1300 = vpop.f32.mrb[0].mxu0
      %v1301 = vpop.f32.mrb[0].mxu0
      %v1302 = vadd.f32 0.0, %v1301
      %v1303 = vpop.f32.mrb[0].mxu0
      %1304 = vmatprep.mubr.bf16.mxu0 0
      %1305 = vmatmul.mubr.bf16.gmra.mrb[0].mxu0 %v1166
      %v1306 = vpop.f32.mrb[0].mxu0
      %v1307 = vadd.f32 0.0, %v1306
      %v1308 = vpop.f32.mrb[0].mxu0
      %v1309 = vpop.f32.mrb[0].mxu0
      %v1310 = vadd.f32 0.0, %v1309
      %v1311 = vpop.f32.mrb[0].mxu0
      %1312 = vmatprep.mubr.bf16.mxu0 0
      %1313 = vmatmul.mubr.bf16.gmra.mrb[0].mxu0 %v1169
      %v1314 = vpop.f32.mrb[0].mxu0
      %v1315 = vadd.f32 0.0, %v1314
      %v1316 = vpop.f32.mrb[0].mxu0
      %v1317 = vpop.f32.mrb[0].mxu0
      %v1318 = vadd.f32 0.0, %v1317
      %v1319 = vpop.f32.mrb[0].mxu0
      %1320 = vmatprep.mubr.bf16.mxu0 0
      %1321 = vmatmul.mubr.bf16.gmra.mrb[0].mxu0 %v1172
      %v1322 = vpop.f32.mrb[0].mxu0
      %v1323 = vadd.f32 0.0, %v1322
      %v1324 = vpop.f32.mrb[0].mxu0
      %v1325 = vpop.f32.mrb[0].mxu0
      %v1326 = vadd.f32 0.0, %v1325
      %v1327 = vpop.f32.mrb[0].mxu0
      %1328 = vmatprep.mubr.bf16.mxu0 0
      %1329 = vmatmul.mubr.bf16.gmra.mrb[0].mxu0 %v1175
      %v1330 = vpop.f32.mrb[0].mxu0
      %v1331 = vadd.f32 0.0, %v1330
      %v1332 = vpop.f32.mrb[0].mxu0
      %v1333 = vpop.f32.mrb[0].mxu0
      %v1334 = vadd.f32 0.0, %v1333
      %v1335 = vpop.f32.mrb[0].mxu0
      %1336 = vmatprep.mubr.bf16.mxu0 0
      %1337 = vmatmul.mubr.bf16.gmra.mrb[0].mxu0 %v1178
      %v1338 = vpop.f32.mrb[0].mxu0
      %v1339 = vadd.f32 0.0, %v1338
      %v1340 = vpop.f32.mrb[0].mxu0
      %v1341 = vpop.f32.mrb[0].mxu0
      %v1342 = vadd.f32 0.0, %v1341
      %v1343 = vpop.f32.mrb[0].mxu0
      %1344 = vmatprep.mubr.bf16.mxu0 0
      %1345 = vmatmul.mubr.bf16.gmra.mrb[0].mxu0 %v1181
      %v1346 = vpop.f32.mrb[0].mxu0
      %v1347 = vadd.f32 0.0, %v1346
      %v1348 = vpop.f32.mrb[0].mxu0
      %v1349 = vpop.f32.mrb[0].mxu0
      %v1350 = vadd.f32 0.0, %v1349
      %v1351 = vpop.f32.mrb[0].mxu0
      %1352 = vmatprep.mubr.bf16.mxu0 0
      %1353 = vmatmul.mubr.bf16.gmra.mrb[0].mxu0 %v1184
      %v1354 = vpop.f32.mrb[0].mxu0
      %v1355 = vadd.f32 0.0, %v1354
      %v1356 = vpop.f32.mrb[0].mxu0
      %v1357 = vpop.f32.mrb[0].mxu0
      %v1358 = vadd.f32 0.0, %v1357
      %v1359 = vpop.f32.mrb[0].mxu0
      %1360 = vmatprep.mubr.bf16.mxu0 0
      %1361 = vmatmul.mubr.bf16.gmra.mrb[0].mxu0 %v1187
      %v1362 = vpop.f32.mrb[0].mxu0
      %v1363 = vadd.f32 0.0, %v1362
      %v1364 = vpop.f32.mrb[0].mxu0
      %v1365 = vpop.f32.mrb[0].mxu0
      %v1366 = vadd.f32 0.0, %v1365
      %v1367 = vpop.f32.mrb[0].mxu0
      %1368 = vdwg.mxu0
      %v1369 = vadd.f32 %v1043, %v1227
      %v1370 = vadd.f32 %v1044, %v1230
      %v1371 = vadd.f32 %v1045, %v1235
      %v1372 = vadd.f32 %v1046, %v1238
      %v1373 = vadd.f32 %v1047, %v1243
      %v1374 = vadd.f32 %v1048, %v1246
      %v1375 = vadd.f32 %v1049, %v1251
      %v1376 = vadd.f32 %v1050, %v1254
      %v1377 = vadd.f32 %v1051, %v1259
      %v1378 = vadd.f32 %v1052, %v1262
      %v1379 = vadd.f32 %v1053, %v1267
      %v1380 = vadd.f32 %v1054, %v1270
      %v1381 = vadd.f32 %v1055, %v1275
      %v1382 = vadd.f32 %v1056, %v1278
      %v1383 = vadd.f32 %v1057, %v1283
      %v1384 = vadd.f32 %v1058, %v1286
      %v1385 = vadd.f32 %v1059, %v1291
      %v1386 = vadd.f32 %v1060, %v1294
      %v1387 = vadd.f32 %v1061, %v1299
      %v1388 = vadd.f32 %v1062, %v1302
      %v1389 = vadd.f32 %v1063, %v1307
      %v1390 = vadd.f32 %v1064, %v1310
      %v1391 = vadd.f32 %v1065, %v1315
      %v1392 = vadd.f32 %v1066, %v1318
      %v1393 = vadd.f32 %v1067, %v1323
      %v1394 = vadd.f32 %v1068, %v1326
      %v1395 = vadd.f32 %v1069, %v1331
      %v1396 = vadd.f32 %v1070, %v1334
      %v1397 = vadd.f32 %v1071, %v1339
      %v1398 = vadd.f32 %v1072, %v1342
      %v1399 = vadd.f32 %v1073, %v1347
      %v1400 = vadd.f32 %v1074, %v1350
      %v1401 = vadd.f32 %v1075, %v1355
      %v1402 = vadd.f32 %v1076, %v1358
      %v1403 = vadd.f32 %v1077, %v1363
      %v1404 = vadd.f32 %v1078, %v1366
      %v1405 = vld [vmem:[%s165 + $0x13] sm:$0xff]
      %v1406 = vld [vmem:[%s165 + $0x1b] sm:$0xff]
      %v1407 = vld [vmem:[%s165 + $0x23] sm:$0xff]
      %v1408 = vld [vmem:[%s165 + $0x2b] sm:$0xff]
      %v1409 = vld [vmem:[%s165 + $0x33] sm:$0xff]
      %v1410 = vld [vmem:[%s165 + $0x3b] sm:$0xff]
      %v1411 = vld [vmem:[%s165 + $0x43] sm:$0xff]
      %v1412 = vld [vmem:[%s165 + $0x4b] sm:$0xff]
      %v1413 = vld [vmem:[%s165 + $0x53] sm:$0xff]
      %v1414 = vld [vmem:[%s165 + $0x5b] sm:$0xff]
      %v1415 = vld [vmem:[%s165 + $0x63] sm:$0xff]
      %v1416 = vld [vmem:[%s165 + $0x6b] sm:$0xff]
      %v1417 = vld [vmem:[%s165 + $0x73] sm:$0xff]
      %v1418 = vld [vmem:[%s165 + $0x7b] sm:$0xff]
      %v1419 = vld [vmem:[%s165 + $0x83] sm:$0xff]
      %v1420 = vld [vmem:[%s165 + $0x8b] sm:$0xff]
      %v1421 = vld [vmem:[%s165 + $0x93] sm:$0xff]
      %v1422 = vld [vmem:[%s165 + $0x9b] sm:$0xff]
      %v1423 = vld [vmem:[%s165 + $0xa3] sm:$0xff]
      %v1424 = vld [vmem:[%s165 + $0xab] sm:$0xff]
      %v1425 = vld [vmem:[%s165 + $0xb3] sm:$0xff]
      %v1426 = vld [vmem:[%s165 + $0xbb] sm:$0xff]
      %v1427 = vld [vmem:[%s165 + $0xc3] sm:$0xff]
      %v1428 = vld [vmem:[%s165 + $0xcb] sm:$0xff]
      %v1429 = vld [vmem:[%s165 + $0xd3] sm:$0xff]
      %v1430 = vld [vmem:[%s165 + $0xdb] sm:$0xff]
      %v1431 = vld [vmem:[%s165 + $0xe3] sm:$0xff]
      %v1432 = vld [vmem:[%s165 + $0xeb] sm:$0xff]
      %v1433 = vld [vmem:[%s165 + $0xf3] sm:$0xff]
      %v1434 = vld [vmem:[%s165 + $0xfb] sm:$0xff]
      %v1435 = vld [vmem:[%s165 + $0x103] sm:$0xff]
      %v1436 = vld [vmem:[%s165 + $0x10b] sm:$0xff]
      %v1437 = vld [vmem:[%s165 + $0x113] sm:$0xff]
      %v1438 = vld [vmem:[%s165 + $0x11b] sm:$0xff]
      %v1439 = vld [vmem:[%s165 + $0x123] sm:$0xff]
      %v1440 = vld [vmem:[%s165 + $0x12b] sm:$0xff]
      %v1441 = vpack.c.bf16 %v1406, %v1405
      %v1442 = vpack.c.bf16 %v1408, %v1407
      %v1443 = vpack.c.bf16 %v1410, %v1409
      %v1444 = vpack.c.bf16 %v1412, %v1411
      %v1445 = vpack.c.bf16 %v1414, %v1413
      %v1446 = vpack.c.bf16 %v1416, %v1415
      %v1447 = vpack.c.bf16 %v1418, %v1417
      %v1448 = vpack.c.bf16 %v1420, %v1419
      %v1449 = vpack.c.bf16 %v1422, %v1421
      %v1450 = vpack.c.bf16 %v1424, %v1423
      %v1451 = vpack.c.bf16 %v1426, %v1425
      %v1452 = vpack.c.bf16 %v1428, %v1427
      %v1453 = vpack.c.bf16 %v1430, %v1429
      %v1454 = vpack.c.bf16 %v1432, %v1431
      %v1455 = vpack.c.bf16 %v1434, %v1433
      %v1456 = vpack.c.bf16 %v1436, %v1435
      %v1457 = vpack.c.bf16 %v1438, %v1437
      %v1458 = vpack.c.bf16 %v1440, %v1439
      %s1459 = scalar_lea.vmem %s1, 8
      %v1460 = vld [vmem:[%s1459] sm:$0x3]
      %v1462 = vsel %vm283, %v1441, 0
      %v1465 = vsel %vm283, %v1442, 0
      %v1468 = vsel %vm283, %v1443, 0
      %v1471 = vsel %vm283, %v1444, 0
      %v1474 = vsel %vm283, %v1445, 0
      %v1477 = vsel %vm283, %v1446, 0
      %v1480 = vsel %vm283, %v1447, 0
      %v1483 = vsel %vm283, %v1448, 0
      %v1486 = vsel %vm283, %v1449, 0
      %v1489 = vsel %vm283, %v1450, 0
      %v1492 = vsel %vm283, %v1451, 0
      %v1495 = vsel %vm283, %v1452, 0
      %v1498 = vsel %vm283, %v1453, 0
      %v1501 = vsel %vm283, %v1454, 0
      %v1504 = vsel %vm283, %v1455, 0
      %v1507 = vsel %vm283, %v1456, 0
      %v1510 = vsel %vm283, %v1457, 0
      %v1513 = vsel %vm283, %v1458, 0
      %v1516 = vsel %vm338, %v1460, 0
      %1518 = vmatprep.subr.bf16.mxu0 0
      %1519 = vmatpush1.bf16.msra.mxu0 %v1516
      %1520 = vmatprep.subr.bf16.mxu0 0
      %1521 = vmatpush1.bf16.msra.mxu0 0
      %1522 = vmatprep.subr.bf16.mxu0 0
      %1523 = vmatpush1.bf16.msra.mxu0 0
      %1524 = vmatprep.subr.bf16.mxu0 0
      %1525 = vmatpush1.bf16.msra.mxu0 0
      %1526 = vmatprep.subr.bf16.mxu0 0
      %1527 = vmatpush1.bf16.msra.mxu0 0
      %1528 = vmatprep.subr.bf16.mxu0 0
      %1529 = vmatpush1.bf16.msra.mxu0 0
      %1530 = vmatprep.subr.bf16.mxu0 0
      %1531 = vmatpush1.bf16.msra.mxu0 0
      %1532 = vmatprep.subr.bf16.mxu0 0
      %1533 = vmatpush1.bf16.msra.mxu0 0
      %1534 = vmatprep.subr.bf16.mxu0 0
      %1535 = vmatpush1.bf16.msra.mxu0 0
      %1536 = vmatprep.subr.bf16.mxu0 0
      %1537 = vmatpush1.bf16.msra.mxu0 0
      %1538 = vmatprep.subr.bf16.mxu0 0
      %1539 = vmatpush1.bf16.msra.mxu0 0
      %1540 = vmatprep.subr.bf16.mxu0 0
      %1541 = vmatpush1.bf16.msra.mxu0 0
      %1542 = vmatprep.subr.bf16.mxu0 0
      %1543 = vmatpush1.bf16.msra.mxu0 0
      %1544 = vmatprep.subr.bf16.mxu0 0
      %1545 = vmatpush1.bf16.msra.mxu0 0
      %1546 = vmatprep.subr.bf16.mxu0 0
      %1547 = vmatpush1.bf16.msra.mxu0 0
      %1548 = vmatprep.subr.bf16.mxu0 0
      %1549 = vmatpush1.bf16.msra.mxu0 0
      %1550 = vmatprep.mubr.bf16.mxu0 0
      %1551 = vmatmul.mubr.bf16.gmra.mrb[0].mxu0 %v1462
      %v1552 = vpop.f32.mrb[0].mxu0
      %v1553 = vadd.f32 0.0, %v1552
      %v1554 = vpop.f32.mrb[0].mxu0
      %v1555 = vpop.f32.mrb[0].mxu0
      %v1556 = vadd.f32 0.0, %v1555
      %v1557 = vpop.f32.mrb[0].mxu0
      %1558 = vmatprep.mubr.bf16.mxu0 0
      %1559 = vmatmul.mubr.bf16.gmra.mrb[0].mxu0 %v1465
      %v1560 = vpop.f32.mrb[0].mxu0
      %v1561 = vadd.f32 0.0, %v1560
      %v1562 = vpop.f32.mrb[0].mxu0
      %v1563 = vpop.f32.mrb[0].mxu0
      %v1564 = vadd.f32 0.0, %v1563
      %v1565 = vpop.f32.mrb[0].mxu0
      %1566 = vmatprep.mubr.bf16.mxu0 0
      %1567 = vmatmul.mubr.bf16.gmra.mrb[0].mxu0 %v1468
      %v1568 = vpop.f32.mrb[0].mxu0
      %v1569 = vadd.f32 0.0, %v1568
      %v1570 = vpop.f32.mrb[0].mxu0
      %v1571 = vpop.f32.mrb[0].mxu0
      %v1572 = vadd.f32 0.0, %v1571
      %v1573 = vpop.f32.mrb[0].mxu0
      %1574 = vmatprep.mubr.bf16.mxu0 0
      %1575 = vmatmul.mubr.bf16.gmra.mrb[0].mxu0 %v1471
      %v1576 = vpop.f32.mrb[0].mxu0
      %v1577 = vadd.f32 0.0, %v1576
      %v1578 = vpop.f32.mrb[0].mxu0
      %v1579 = vpop.f32.mrb[0].mxu0
      %v1580 = vadd.f32 0.0, %v1579
      %v1581 = vpop.f32.mrb[0].mxu0
      %1582 = vmatprep.mubr.bf16.mxu0 0
      %1583 = vmatmul.mubr.bf16.gmra.mrb[0].mxu0 %v1474
      %v1584 = vpop.f32.mrb[0].mxu0
      %v1585 = vadd.f32 0.0, %v1584
      %v1586 = vpop.f32.mrb[0].mxu0
      %v1587 = vpop.f32.mrb[0].mxu0
      %v1588 = vadd.f32 0.0, %v1587
      %v1589 = vpop.f32.mrb[0].mxu0
      %1590 = vmatprep.mubr.bf16.mxu0 0
      %1591 = vmatmul.mubr.bf16.gmra.mrb[0].mxu0 %v1477
      %v1592 = vpop.f32.mrb[0].mxu0
      %v1593 = vadd.f32 0.0, %v1592
      %v1594 = vpop.f32.mrb[0].mxu0
      %v1595 = vpop.f32.mrb[0].mxu0
      %v1596 = vadd.f32 0.0, %v1595
      %v1597 = vpop.f32.mrb[0].mxu0
      %1598 = vmatprep.mubr.bf16.mxu0 0
      %1599 = vmatmul.mubr.bf16.gmra.mrb[0].mxu0 %v1480
      %v1600 = vpop.f32.mrb[0].mxu0
      %v1601 = vadd.f32 0.0, %v1600
      %v1602 = vpop.f32.mrb[0].mxu0
      %v1603 = vpop.f32.mrb[0].mxu0
      %v1604 = vadd.f32 0.0, %v1603
      %v1605 = vpop.f32.mrb[0].mxu0
      %1606 = vmatprep.mubr.bf16.mxu0 0
      %1607 = vmatmul.mubr.bf16.gmra.mrb[0].mxu0 %v1483
      %v1608 = vpop.f32.mrb[0].mxu0
      %v1609 = vadd.f32 0.0, %v1608
      %v1610 = vpop.f32.mrb[0].mxu0
      %v1611 = vpop.f32.mrb[0].mxu0
      %v1612 = vadd.f32 0.0, %v1611
      %v1613 = vpop.f32.mrb[0].mxu0
      %1614 = vmatprep.mubr.bf16.mxu0 0
      %1615 = vmatmul.mubr.bf16.gmra.mrb[0].mxu0 %v1486
      %v1616 = vpop.f32.mrb[0].mxu0
      %v1617 = vadd.f32 0.0, %v1616
      %v1618 = vpop.f32.mrb[0].mxu0
      %v1619 = vpop.f32.mrb[0].mxu0
      %v1620 = vadd.f32 0.0, %v1619
      %v1621 = vpop.f32.mrb[0].mxu0
      %1622 = vmatprep.mubr.bf16.mxu0 0
      %1623 = vmatmul.mubr.bf16.gmra.mrb[0].mxu0 %v1489
      %v1624 = vpop.f32.mrb[0].mxu0
      %v1625 = vadd.f32 0.0, %v1624
      %v1626 = vpop.f32.mrb[0].mxu0
      %v1627 = vpop.f32.mrb[0].mxu0
      %v1628 = vadd.f32 0.0, %v1627
      %v1629 = vpop.f32.mrb[0].mxu0
      %1630 = vmatprep.mubr.bf16.mxu0 0
      %1631 = vmatmul.mubr.bf16.gmra.mrb[0].mxu0 %v1492
      %v1632 = vpop.f32.mrb[0].mxu0
      %v1633 = vadd.f32 0.0, %v1632
      %v1634 = vpop.f32.mrb[0].mxu0
      %v1635 = vpop.f32.mrb[0].mxu0
      %v1636 = vadd.f32 0.0, %v1635
      %v1637 = vpop.f32.mrb[0].mxu0
      %1638 = vmatprep.mubr.bf16.mxu0 0
      %1639 = vmatmul.mubr.bf16.gmra.mrb[0].mxu0 %v1495
      %v1640 = vpop.f32.mrb[0].mxu0
      %v1641 = vadd.f32 0.0, %v1640
      %v1642 = vpop.f32.mrb[0].mxu0
      %v1643 = vpop.f32.mrb[0].mxu0
      %v1644 = vadd.f32 0.0, %v1643
      %v1645 = vpop.f32.mrb[0].mxu0
      %1646 = vmatprep.mubr.bf16.mxu0 0
      %1647 = vmatmul.mubr.bf16.gmra.mrb[0].mxu0 %v1498
      %v1648 = vpop.f32.mrb[0].mxu0
      %v1649 = vadd.f32 0.0, %v1648
      %v1650 = vpop.f32.mrb[0].mxu0
      %v1651 = vpop.f32.mrb[0].mxu0
      %v1652 = vadd.f32 0.0, %v1651
      %v1653 = vpop.f32.mrb[0].mxu0
      %1654 = vmatprep.mubr.bf16.mxu0 0
      %1655 = vmatmul.mubr.bf16.gmra.mrb[0].mxu0 %v1501
      %v1656 = vpop.f32.mrb[0].mxu0
      %v1657 = vadd.f32 0.0, %v1656
      %v1658 = vpop.f32.mrb[0].mxu0
      %v1659 = vpop.f32.mrb[0].mxu0
      %v1660 = vadd.f32 0.0, %v1659
      %v1661 = vpop.f32.mrb[0].mxu0
      %1662 = vmatprep.mubr.bf16.mxu0 0
      %1663 = vmatmul.mubr.bf16.gmra.mrb[0].mxu0 %v1504
      %v1664 = vpop.f32.mrb[0].mxu0
      %v1665 = vadd.f32 0.0, %v1664
      %v1666 = vpop.f32.mrb[0].mxu0
      %v1667 = vpop.f32.mrb[0].mxu0
      %v1668 = vadd.f32 0.0, %v1667
      %v1669 = vpop.f32.mrb[0].mxu0
      %1670 = vmatprep.mubr.bf16.mxu0 0
      %1671 = vmatmul.mubr.bf16.gmra.mrb[0].mxu0 %v1507
      %v1672 = vpop.f32.mrb[0].mxu0
      %v1673 = vadd.f32 0.0, %v1672
      %v1674 = vpop.f32.mrb[0].mxu0
      %v1675 = vpop.f32.mrb[0].mxu0
      %v1676 = vadd.f32 0.0, %v1675
      %v1677 = vpop.f32.mrb[0].mxu0
      %1678 = vmatprep.mubr.bf16.mxu0 0
      %1679 = vmatmul.mubr.bf16.gmra.mrb[0].mxu0 %v1510
      %v1680 = vpop.f32.mrb[0].mxu0
      %v1681 = vadd.f32 0.0, %v1680
      %v1682 = vpop.f32.mrb[0].mxu0
      %v1683 = vpop.f32.mrb[0].mxu0
      %v1684 = vadd.f32 0.0, %v1683
      %v1685 = vpop.f32.mrb[0].mxu0
      %1686 = vmatprep.mubr.bf16.mxu0 0
      %1687 = vmatmul.mubr.bf16.gmra.mrb[0].mxu0 %v1513
      %v1688 = vpop.f32.mrb[0].mxu0
      %v1689 = vadd.f32 0.0, %v1688
      %v1690 = vpop.f32.mrb[0].mxu0
      %v1691 = vpop.f32.mrb[0].mxu0
      %v1692 = vadd.f32 0.0, %v1691
      %v1693 = vpop.f32.mrb[0].mxu0
      %1694 = vdwg.mxu0
      %v1695 = vadd.f32 %v1369, %v1553
      %v1696 = vadd.f32 %v1370, %v1556
      %v1697 = vadd.f32 %v1371, %v1561
      %v1698 = vadd.f32 %v1372, %v1564
      %v1699 = vadd.f32 %v1373, %v1569
      %v1700 = vadd.f32 %v1374, %v1572
      %v1701 = vadd.f32 %v1375, %v1577
      %v1702 = vadd.f32 %v1376, %v1580
      %v1703 = vadd.f32 %v1377, %v1585
      %v1704 = vadd.f32 %v1378, %v1588
      %v1705 = vadd.f32 %v1379, %v1593
      %v1706 = vadd.f32 %v1380, %v1596
      %v1707 = vadd.f32 %v1381, %v1601
      %v1708 = vadd.f32 %v1382, %v1604
      %v1709 = vadd.f32 %v1383, %v1609
      %v1710 = vadd.f32 %v1384, %v1612
      %v1711 = vadd.f32 %v1385, %v1617
      %v1712 = vadd.f32 %v1386, %v1620
      %v1713 = vadd.f32 %v1387, %v1625
      %v1714 = vadd.f32 %v1388, %v1628
      %v1715 = vadd.f32 %v1389, %v1633
      %v1716 = vadd.f32 %v1390, %v1636
      %v1717 = vadd.f32 %v1391, %v1641
      %v1718 = vadd.f32 %v1392, %v1644
      %v1719 = vadd.f32 %v1393, %v1649
      %v1720 = vadd.f32 %v1394, %v1652
      %v1721 = vadd.f32 %v1395, %v1657
      %v1722 = vadd.f32 %v1396, %v1660
      %v1723 = vadd.f32 %v1397, %v1665
      %v1724 = vadd.f32 %v1398, %v1668
      %v1725 = vadd.f32 %v1399, %v1673
      %v1726 = vadd.f32 %v1400, %v1676
      %v1727 = vadd.f32 %v1401, %v1681
      %v1728 = vadd.f32 %v1402, %v1684
      %v1729 = vadd.f32 %v1403, %v1689
      %v1730 = vadd.f32 %v1404, %v1692
      %v1731 = vld [vmem:[%s165 + $0x14] sm:$0xff]
      %v1732 = vld [vmem:[%s165 + $0x1c] sm:$0xff]
      %v1733 = vld [vmem:[%s165 + $0x24] sm:$0xff]
      %v1734 = vld [vmem:[%s165 + $0x2c] sm:$0xff]
      %v1735 = vld [vmem:[%s165 + $0x34] sm:$0xff]
      %v1736 = vld [vmem:[%s165 + $0x3c] sm:$0xff]
      %v1737 = vld [vmem:[%s165 + $0x44] sm:$0xff]
      %v1738 = vld [vmem:[%s165 + $0x4c] sm:$0xff]
      %v1739 = vld [vmem:[%s165 + $0x54] sm:$0xff]
      %v1740 = vld [vmem:[%s165 + $0x5c] sm:$0xff]
      %v1741 = vld [vmem:[%s165 + $0x64] sm:$0xff]
      %v1742 = vld [vmem:[%s165 + $0x6c] sm:$0xff]
      %v1743 = vld [vmem:[%s165 + $0x74] sm:$0xff]
      %v1744 = vld [vmem:[%s165 + $0x7c] sm:$0xff]
      %v1745 = vld [vmem:[%s165 + $0x84] sm:$0xff]
      %v1746 = vld [vmem:[%s165 + $0x8c] sm:$0xff]
      %v1747 = vld [vmem:[%s165 + $0x94] sm:$0xff]
      %v1748 = vld [vmem:[%s165 + $0x9c] sm:$0xff]
      %v1749 = vld [vmem:[%s165 + $0xa4] sm:$0xff]
      %v1750 = vld [vmem:[%s165 + $0xac] sm:$0xff]
      %v1751 = vld [vmem:[%s165 + $0xb4] sm:$0xff]
      %v1752 = vld [vmem:[%s165 + $0xbc] sm:$0xff]
      %v1753 = vld [vmem:[%s165 + $0xc4] sm:$0xff]
      %v1754 = vld [vmem:[%s165 + $0xcc] sm:$0xff]
      %v1755 = vld [vmem:[%s165 + $0xd4] sm:$0xff]
      %v1756 = vld [vmem:[%s165 + $0xdc] sm:$0xff]
      %v1757 = vld [vmem:[%s165 + $0xe4] sm:$0xff]
      %v1758 = vld [vmem:[%s165 + $0xec] sm:$0xff]
      %v1759 = vld [vmem:[%s165 + $0xf4] sm:$0xff]
      %v1760 = vld [vmem:[%s165 + $0xfc] sm:$0xff]
      %v1761 = vld [vmem:[%s165 + $0x104] sm:$0xff]
      %v1762 = vld [vmem:[%s165 + $0x10c] sm:$0xff]
      %v1763 = vld [vmem:[%s165 + $0x114] sm:$0xff]
      %v1764 = vld [vmem:[%s165 + $0x11c] sm:$0xff]
      %v1765 = vld [vmem:[%s165 + $0x124] sm:$0xff]
      %v1766 = vld [vmem:[%s165 + $0x12c] sm:$0xff]
      %v1767 = vpack.c.bf16 %v1732, %v1731
      %v1768 = vpack.c.bf16 %v1734, %v1733
      %v1769 = vpack.c.bf16 %v1736, %v1735
      %v1770 = vpack.c.bf16 %v1738, %v1737
      %v1771 = vpack.c.bf16 %v1740, %v1739
      %v1772 = vpack.c.bf16 %v1742, %v1741
      %v1773 = vpack.c.bf16 %v1744, %v1743
      %v1774 = vpack.c.bf16 %v1746, %v1745
      %v1775 = vpack.c.bf16 %v1748, %v1747
      %v1776 = vpack.c.bf16 %v1750, %v1749
      %v1777 = vpack.c.bf16 %v1752, %v1751
      %v1778 = vpack.c.bf16 %v1754, %v1753
      %v1779 = vpack.c.bf16 %v1756, %v1755
      %v1780 = vpack.c.bf16 %v1758, %v1757
      %v1781 = vpack.c.bf16 %v1760, %v1759
      %v1782 = vpack.c.bf16 %v1762, %v1761
      %v1783 = vpack.c.bf16 %v1764, %v1763
      %v1784 = vpack.c.bf16 %v1766, %v1765
      %s1785 = scalar_lea.vmem %s1, 10
      %v1786 = vld [vmem:[%s1785] sm:$0x3]
      %v1788 = vsel %vm283, %v1767, 0
      %v1791 = vsel %vm283, %v1768, 0
      %v1794 = vsel %vm283, %v1769, 0
      %v1797 = vsel %vm283, %v1770, 0
      %v1800 = vsel %vm283, %v1771, 0
      %v1803 = vsel %vm283, %v1772, 0
      %v1806 = vsel %vm283, %v1773, 0
      %v1809 = vsel %vm283, %v1774, 0
      %v1812 = vsel %vm283, %v1775, 0
      %v1815 = vsel %vm283, %v1776, 0
      %v1818 = vsel %vm283, %v1777, 0
      %v1821 = vsel %vm283, %v1778, 0
      %v1824 = vsel %vm283, %v1779, 0
      %v1827 = vsel %vm283, %v1780, 0
      %v1830 = vsel %vm283, %v1781, 0
      %v1833 = vsel %vm283, %v1782, 0
      %v1836 = vsel %vm283, %v1783, 0
      %v1839 = vsel %vm283, %v1784, 0
      %v1842 = vsel %vm338, %v1786, 0
      %1844 = vmatprep.subr.bf16.mxu0 0
      %1845 = vmatpush1.bf16.msra.mxu0 %v1842
      %1846 = vmatprep.subr.bf16.mxu0 0
      %1847 = vmatpush1.bf16.msra.mxu0 0
      %1848 = vmatprep.subr.bf16.mxu0 0
      %1849 = vmatpush1.bf16.msra.mxu0 0
      %1850 = vmatprep.subr.bf16.mxu0 0
      %1851 = vmatpush1.bf16.msra.mxu0 0
      %1852 = vmatprep.subr.bf16.mxu0 0
      %1853 = vmatpush1.bf16.msra.mxu0 0
      %1854 = vmatprep.subr.bf16.mxu0 0
      %1855 = vmatpush1.bf16.msra.mxu0 0
      %1856 = vmatprep.subr.bf16.mxu0 0
      %1857 = vmatpush1.bf16.msra.mxu0 0
      %1858 = vmatprep.subr.bf16.mxu0 0
      %1859 = vmatpush1.bf16.msra.mxu0 0
      %1860 = vmatprep.subr.bf16.mxu0 0
      %1861 = vmatpush1.bf16.msra.mxu0 0
      %1862 = vmatprep.subr.bf16.mxu0 0
      %1863 = vmatpush1.bf16.msra.mxu0 0
      %1864 = vmatprep.subr.bf16.mxu0 0
      %1865 = vmatpush1.bf16.msra.mxu0 0
      %1866 = vmatprep.subr.bf16.mxu0 0
      %1867 = vmatpush1.bf16.msra.mxu0 0
      %1868 = vmatprep.subr.bf16.mxu0 0
      %1869 = vmatpush1.bf16.msra.mxu0 0
      %1870 = vmatprep.subr.bf16.mxu0 0
      %1871 = vmatpush1.bf16.msra.mxu0 0
      %1872 = vmatprep.subr.bf16.mxu0 0
      %1873 = vmatpush1.bf16.msra.mxu0 0
      %1874 = vmatprep.subr.bf16.mxu0 0
      %1875 = vmatpush1.bf16.msra.mxu0 0
      %1876 = vmatprep.mubr.bf16.mxu0 0
      %1877 = vmatmul.mubr.bf16.gmra.mrb[0].mxu0 %v1788
      %v1878 = vpop.f32.mrb[0].mxu0
      %v1879 = vadd.f32 0.0, %v1878
      %v1880 = vpop.f32.mrb[0].mxu0
      %v1881 = vpop.f32.mrb[0].mxu0
      %v1882 = vadd.f32 0.0, %v1881
      %v1883 = vpop.f32.mrb[0].mxu0
      %1884 = vmatprep.mubr.bf16.mxu0 0
      %1885 = vmatmul.mubr.bf16.gmra.mrb[0].mxu0 %v1791
      %v1886 = vpop.f32.mrb[0].mxu0
      %v1887 = vadd.f32 0.0, %v1886
      %v1888 = vpop.f32.mrb[0].mxu0
      %v1889 = vpop.f32.mrb[0].mxu0
      %v1890 = vadd.f32 0.0, %v1889
      %v1891 = vpop.f32.mrb[0].mxu0
      %1892 = vmatprep.mubr.bf16.mxu0 0
      %1893 = vmatmul.mubr.bf16.gmra.mrb[0].mxu0 %v1794
      %v1894 = vpop.f32.mrb[0].mxu0
      %v1895 = vadd.f32 0.0, %v1894
      %v1896 = vpop.f32.mrb[0].mxu0
      %v1897 = vpop.f32.mrb[0].mxu0
      %v1898 = vadd.f32 0.0, %v1897
      %v1899 = vpop.f32.mrb[0].mxu0
      %1900 = vmatprep.mubr.bf16.mxu0 0
      %1901 = vmatmul.mubr.bf16.gmra.mrb[0].mxu0 %v1797
      %v1902 = vpop.f32.mrb[0].mxu0
      %v1903 = vadd.f32 0.0, %v1902
      %v1904 = vpop.f32.mrb[0].mxu0
      %v1905 = vpop.f32.mrb[0].mxu0
      %v1906 = vadd.f32 0.0, %v1905
      %v1907 = vpop.f32.mrb[0].mxu0
      %1908 = vmatprep.mubr.bf16.mxu0 0
      %1909 = vmatmul.mubr.bf16.gmra.mrb[0].mxu0 %v1800
      %v1910 = vpop.f32.mrb[0].mxu0
      %v1911 = vadd.f32 0.0, %v1910
      %v1912 = vpop.f32.mrb[0].mxu0
      %v1913 = vpop.f32.mrb[0].mxu0
      %v1914 = vadd.f32 0.0, %v1913
      %v1915 = vpop.f32.mrb[0].mxu0
      %1916 = vmatprep.mubr.bf16.mxu0 0
      %1917 = vmatmul.mubr.bf16.gmra.mrb[0].mxu0 %v1803
      %v1918 = vpop.f32.mrb[0].mxu0
      %v1919 = vadd.f32 0.0, %v1918
      %v1920 = vpop.f32.mrb[0].mxu0
      %v1921 = vpop.f32.mrb[0].mxu0
      %v1922 = vadd.f32 0.0, %v1921
      %v1923 = vpop.f32.mrb[0].mxu0
      %1924 = vmatprep.mubr.bf16.mxu0 0
      %1925 = vmatmul.mubr.bf16.gmra.mrb[0].mxu0 %v1806
      %v1926 = vpop.f32.mrb[0].mxu0
      %v1927 = vadd.f32 0.0, %v1926
      %v1928 = vpop.f32.mrb[0].mxu0
      %v1929 = vpop.f32.mrb[0].mxu0
      %v1930 = vadd.f32 0.0, %v1929
      %v1931 = vpop.f32.mrb[0].mxu0
      %1932 = vmatprep.mubr.bf16.mxu0 0
      %1933 = vmatmul.mubr.bf16.gmra.mrb[0].mxu0 %v1809
      %v1934 = vpop.f32.mrb[0].mxu0
      %v1935 = vadd.f32 0.0, %v1934
      %v1936 = vpop.f32.mrb[0].mxu0
      %v1937 = vpop.f32.mrb[0].mxu0
      %v1938 = vadd.f32 0.0, %v1937
      %v1939 = vpop.f32.mrb[0].mxu0
      %1940 = vmatprep.mubr.bf16.mxu0 0
      %1941 = vmatmul.mubr.bf16.gmra.mrb[0].mxu0 %v1812
      %v1942 = vpop.f32.mrb[0].mxu0
      %v1943 = vadd.f32 0.0, %v1942
      %v1944 = vpop.f32.mrb[0].mxu0
      %v1945 = vpop.f32.mrb[0].mxu0
      %v1946 = vadd.f32 0.0, %v1945
      %v1947 = vpop.f32.mrb[0].mxu0
      %1948 = vmatprep.mubr.bf16.mxu0 0
      %1949 = vmatmul.mubr.bf16.gmra.mrb[0].mxu0 %v1815
      %v1950 = vpop.f32.mrb[0].mxu0
      %v1951 = vadd.f32 0.0, %v1950
      %v1952 = vpop.f32.mrb[0].mxu0
      %v1953 = vpop.f32.mrb[0].mxu0
      %v1954 = vadd.f32 0.0, %v1953
      %v1955 = vpop.f32.mrb[0].mxu0
      %1956 = vmatprep.mubr.bf16.mxu0 0
      %1957 = vmatmul.mubr.bf16.gmra.mrb[0].mxu0 %v1818
      %v1958 = vpop.f32.mrb[0].mxu0
      %v1959 = vadd.f32 0.0, %v1958
      %v1960 = vpop.f32.mrb[0].mxu0
      %v1961 = vpop.f32.mrb[0].mxu0
      %v1962 = vadd.f32 0.0, %v1961
      %v1963 = vpop.f32.mrb[0].mxu0
      %1964 = vmatprep.mubr.bf16.mxu0 0
      %1965 = vmatmul.mubr.bf16.gmra.mrb[0].mxu0 %v1821
      %v1966 = vpop.f32.mrb[0].mxu0
      %v1967 = vadd.f32 0.0, %v1966
      %v1968 = vpop.f32.mrb[0].mxu0
      %v1969 = vpop.f32.mrb[0].mxu0
      %v1970 = vadd.f32 0.0, %v1969
      %v1971 = vpop.f32.mrb[0].mxu0
      %1972 = vmatprep.mubr.bf16.mxu0 0
      %1973 = vmatmul.mubr.bf16.gmra.mrb[0].mxu0 %v1824
      %v1974 = vpop.f32.mrb[0].mxu0
      %v1975 = vadd.f32 0.0, %v1974
      %v1976 = vpop.f32.mrb[0].mxu0
      %v1977 = vpop.f32.mrb[0].mxu0
      %v1978 = vadd.f32 0.0, %v1977
      %v1979 = vpop.f32.mrb[0].mxu0
      %1980 = vmatprep.mubr.bf16.mxu0 0
      %1981 = vmatmul.mubr.bf16.gmra.mrb[0].mxu0 %v1827
      %v1982 = vpop.f32.mrb[0].mxu0
      %v1983 = vadd.f32 0.0, %v1982
      %v1984 = vpop.f32.mrb[0].mxu0
      %v1985 = vpop.f32.mrb[0].mxu0
      %v1986 = vadd.f32 0.0, %v1985
      %v1987 = vpop.f32.mrb[0].mxu0
      %1988 = vmatprep.mubr.bf16.mxu0 0
      %1989 = vmatmul.mubr.bf16.gmra.mrb[0].mxu0 %v1830
      %v1990 = vpop.f32.mrb[0].mxu0
      %v1991 = vadd.f32 0.0, %v1990
      %v1992 = vpop.f32.mrb[0].mxu0
      %v1993 = vpop.f32.mrb[0].mxu0
      %v1994 = vadd.f32 0.0, %v1993
      %v1995 = vpop.f32.mrb[0].mxu0
      %1996 = vmatprep.mubr.bf16.mxu0 0
      %1997 = vmatmul.mubr.bf16.gmra.mrb[0].mxu0 %v1833
      %v1998 = vpop.f32.mrb[0].mxu0
      %v1999 = vadd.f32 0.0, %v1998
      %v2000 = vpop.f32.mrb[0].mxu0
      %v2001 = vpop.f32.mrb[0].mxu0
      %v2002 = vadd.f32 0.0, %v2001
      %v2003 = vpop.f32.mrb[0].mxu0
      %2004 = vmatprep.mubr.bf16.mxu0 0
      %2005 = vmatmul.mubr.bf16.gmra.mrb[0].mxu0 %v1836
      %v2006 = vpop.f32.mrb[0].mxu0
      %v2007 = vadd.f32 0.0, %v2006
      %v2008 = vpop.f32.mrb[0].mxu0
      %v2009 = vpop.f32.mrb[0].mxu0
      %v2010 = vadd.f32 0.0, %v2009
      %v2011 = vpop.f32.mrb[0].mxu0
      %2012 = vmatprep.mubr.bf16.mxu0 0
      %2013 = vmatmul.mubr.bf16.gmra.mrb[0].mxu0 %v1839
      %v2014 = vpop.f32.mrb[0].mxu0
      %v2015 = vadd.f32 0.0, %v2014
      %v2016 = vpop.f32.mrb[0].mxu0
      %v2017 = vpop.f32.mrb[0].mxu0
      %v2018 = vadd.f32 0.0, %v2017
      %v2019 = vpop.f32.mrb[0].mxu0
      %2020 = vdwg.mxu0
      %v2021 = vadd.f32 %v1695, %v1879
      %v2022 = vadd.f32 %v1696, %v1882
      %v2023 = vadd.f32 %v1697, %v1887
      %v2024 = vadd.f32 %v1698, %v1890
      %v2025 = vadd.f32 %v1699, %v1895
      %v2026 = vadd.f32 %v1700, %v1898
      %v2027 = vadd.f32 %v1701, %v1903
      %v2028 = vadd.f32 %v1702, %v1906
      %v2029 = vadd.f32 %v1703, %v1911
      %v2030 = vadd.f32 %v1704, %v1914
      %v2031 = vadd.f32 %v1705, %v1919
      %v2032 = vadd.f32 %v1706, %v1922
      %v2033 = vadd.f32 %v1707, %v1927
      %v2034 = vadd.f32 %v1708, %v1930
      %v2035 = vadd.f32 %v1709, %v1935
      %v2036 = vadd.f32 %v1710, %v1938
      %v2037 = vadd.f32 %v1711, %v1943
      %v2038 = vadd.f32 %v1712, %v1946
      %v2039 = vadd.f32 %v1713, %v1951
      %v2040 = vadd.f32 %v1714, %v1954
      %v2041 = vadd.f32 %v1715, %v1959
      %v2042 = vadd.f32 %v1716, %v1962
      %v2043 = vadd.f32 %v1717, %v1967
      %v2044 = vadd.f32 %v1718, %v1970
      %v2045 = vadd.f32 %v1719, %v1975
      %v2046 = vadd.f32 %v1720, %v1978
      %v2047 = vadd.f32 %v1721, %v1983
      %v2048 = vadd.f32 %v1722, %v1986
      %v2049 = vadd.f32 %v1723, %v1991
      %v2050 = vadd.f32 %v1724, %v1994
      %v2051 = vadd.f32 %v1725, %v1999
      %v2052 = vadd.f32 %v1726, %v2002
      %v2053 = vadd.f32 %v1727, %v2007
      %v2054 = vadd.f32 %v1728, %v2010
      %v2055 = vadd.f32 %v1729, %v2015
      %v2056 = vadd.f32 %v1730, %v2018
      %v2057 = vld [vmem:[%s165 + $0x24] sm:$0xff]
      %v2058 = vld [vmem:[%s165 + $0x2c] sm:$0xff]
      %v2059 = vld [vmem:[%s165 + $0x34] sm:$0xff]
      %v2060 = vld [vmem:[%s165 + $0x3c] sm:$0xff]
      %v2061 = vld [vmem:[%s165 + $0x44] sm:$0xff]
      %v2062 = vld [vmem:[%s165 + $0x4c] sm:$0xff]
      %v2063 = vld [vmem:[%s165 + $0x54] sm:$0xff]
      %v2064 = vld [vmem:[%s165 + $0x5c] sm:$0xff]
      %v2065 = vld [vmem:[%s165 + $0x64] sm:$0xff]
      %v2066 = vld [vmem:[%s165 + $0x6c] sm:$0xff]
      %v2067 = vld [vmem:[%s165 + $0x74] sm:$0xff]
      %v2068 = vld [vmem:[%s165 + $0x7c] sm:$0xff]
      %v2069 = vld [vmem:[%s165 + $0x84] sm:$0xff]
      %v2070 = vld [vmem:[%s165 + $0x8c] sm:$0xff]
      %v2071 = vld [vmem:[%s165 + $0x94] sm:$0xff]
      %v2072 = vld [vmem:[%s165 + $0x9c] sm:$0xff]
      %v2073 = vld [vmem:[%s165 + $0xa4] sm:$0xff]
      %v2074 = vld [vmem:[%s165 + $0xac] sm:$0xff]
      %v2075 = vld [vmem:[%s165 + $0xb4] sm:$0xff]
      %v2076 = vld [vmem:[%s165 + $0xbc] sm:$0xff]
      %v2077 = vld [vmem:[%s165 + $0xc4] sm:$0xff]
      %v2078 = vld [vmem:[%s165 + $0xcc] sm:$0xff]
      %v2079 = vld [vmem:[%s165 + $0xd4] sm:$0xff]
      %v2080 = vld [vmem:[%s165 + $0xdc] sm:$0xff]
      %v2081 = vld [vmem:[%s165 + $0xe4] sm:$0xff]
      %v2082 = vld [vmem:[%s165 + $0xec] sm:$0xff]
      %v2083 = vld [vmem:[%s165 + $0xf4] sm:$0xff]
      %v2084 = vld [vmem:[%s165 + $0xfc] sm:$0xff]
      %v2085 = vld [vmem:[%s165 + $0x104] sm:$0xff]
      %v2086 = vld [vmem:[%s165 + $0x10c] sm:$0xff]
      %v2087 = vld [vmem:[%s165 + $0x114] sm:$0xff]
      %v2088 = vld [vmem:[%s165 + $0x11c] sm:$0xff]
      %v2089 = vld [vmem:[%s165 + $0x124] sm:$0xff]
      %v2090 = vld [vmem:[%s165 + $0x12c] sm:$0xff]
      %v2091 = vld [vmem:[%s165 + $0x134] sm:$0xff]
      %v2092 = vld [vmem:[%s165 + $0x13c] sm:$0xff]
      %v2093 = vpack.c.bf16 %v2058, %v2057
      %v2094 = vpack.c.bf16 %v2060, %v2059
      %v2095 = vpack.c.bf16 %v2062, %v2061
      %v2096 = vpack.c.bf16 %v2064, %v2063
      %v2097 = vpack.c.bf16 %v2066, %v2065
      %v2098 = vpack.c.bf16 %v2068, %v2067
      %v2099 = vpack.c.bf16 %v2070, %v2069
      %v2100 = vpack.c.bf16 %v2072, %v2071
      %v2101 = vpack.c.bf16 %v2074, %v2073
      %v2102 = vpack.c.bf16 %v2076, %v2075
      %v2103 = vpack.c.bf16 %v2078, %v2077
      %v2104 = vpack.c.bf16 %v2080, %v2079
      %v2105 = vpack.c.bf16 %v2082, %v2081
      %v2106 = vpack.c.bf16 %v2084, %v2083
      %v2107 = vpack.c.bf16 %v2086, %v2085
      %v2108 = vpack.c.bf16 %v2088, %v2087
      %v2109 = vpack.c.bf16 %v2090, %v2089
      %v2110 = vpack.c.bf16 %v2092, %v2091
      %s2111 = scalar_lea.vmem %s1, 12
      %v2112 = vld [vmem:[%s2111] sm:$0x3]
      %v2114 = vsel %vm283, %v2093, 0
      %v2117 = vsel %vm283, %v2094, 0
      %v2120 = vsel %vm283, %v2095, 0
      %v2123 = vsel %vm283, %v2096, 0
      %v2126 = vsel %vm283, %v2097, 0
      %v2129 = vsel %vm283, %v2098, 0
      %v2132 = vsel %vm283, %v2099, 0
      %v2135 = vsel %vm283, %v2100, 0
      %v2138 = vsel %vm283, %v2101, 0
      %v2141 = vsel %vm283, %v2102, 0
      %v2144 = vsel %vm283, %v2103, 0
      %v2147 = vsel %vm283, %v2104, 0
      %v2150 = vsel %vm283, %v2105, 0
      %v2153 = vsel %vm283, %v2106, 0
      %v2156 = vsel %vm283, %v2107, 0
      %v2159 = vsel %vm283, %v2108, 0
      %v2162 = vsel %vm283, %v2109, 0
      %v2165 = vsel %vm283, %v2110, 0
      %v2168 = vsel %vm338, %v2112, 0
      %2170 = vmatprep.subr.bf16.mxu0 0
      %2171 = vmatpush1.bf16.msra.mxu0 %v2168
      %2172 = vmatprep.subr.bf16.mxu0 0
      %2173 = vmatpush1.bf16.msra.mxu0 0
      %2174 = vmatprep.subr.bf16.mxu0 0
      %2175 = vmatpush1.bf16.msra.mxu0 0
      %2176 = vmatprep.subr.bf16.mxu0 0
      %2177 = vmatpush1.bf16.msra.mxu0 0
      %2178 = vmatprep.subr.bf16.mxu0 0
      %2179 = vmatpush1.bf16.msra.mxu0 0
      %2180 = vmatprep.subr.bf16.mxu0 0
      %2181 = vmatpush1.bf16.msra.mxu0 0
      %2182 = vmatprep.subr.bf16.mxu0 0
      %2183 = vmatpush1.bf16.msra.mxu0 0
      %2184 = vmatprep.subr.bf16.mxu0 0
      %2185 = vmatpush1.bf16.msra.mxu0 0
      %2186 = vmatprep.subr.bf16.mxu0 0
      %2187 = vmatpush1.bf16.msra.mxu0 0
      %2188 = vmatprep.subr.bf16.mxu0 0
      %2189 = vmatpush1.bf16.msra.mxu0 0
      %2190 = vmatprep.subr.bf16.mxu0 0
      %2191 = vmatpush1.bf16.msra.mxu0 0
      %2192 = vmatprep.subr.bf16.mxu0 0
      %2193 = vmatpush1.bf16.msra.mxu0 0
      %2194 = vmatprep.subr.bf16.mxu0 0
      %2195 = vmatpush1.bf16.msra.mxu0 0
      %2196 = vmatprep.subr.bf16.mxu0 0
      %2197 = vmatpush1.bf16.msra.mxu0 0
      %2198 = vmatprep.subr.bf16.mxu0 0
      %2199 = vmatpush1.bf16.msra.mxu0 0
      %2200 = vmatprep.subr.bf16.mxu0 0
      %2201 = vmatpush1.bf16.msra.mxu0 0
      %2202 = vmatprep.mubr.bf16.mxu0 0
      %2203 = vmatmul.mubr.bf16.gmra.mrb[0].mxu0 %v2114
      %v2204 = vpop.f32.mrb[0].mxu0
      %v2205 = vadd.f32 0.0, %v2204
      %v2206 = vpop.f32.mrb[0].mxu0
      %v2207 = vpop.f32.mrb[0].mxu0
      %v2208 = vadd.f32 0.0, %v2207
      %v2209 = vpop.f32.mrb[0].mxu0
      %2210 = vmatprep.mubr.bf16.mxu0 0
      %2211 = vmatmul.mubr.bf16.gmra.mrb[0].mxu0 %v2117
      %v2212 = vpop.f32.mrb[0].mxu0
      %v2213 = vadd.f32 0.0, %v2212
      %v2214 = vpop.f32.mrb[0].mxu0
      %v2215 = vpop.f32.mrb[0].mxu0
      %v2216 = vadd.f32 0.0, %v2215
      %v2217 = vpop.f32.mrb[0].mxu0
      %2218 = vmatprep.mubr.bf16.mxu0 0
      %2219 = vmatmul.mubr.bf16.gmra.mrb[0].mxu0 %v2120
      %v2220 = vpop.f32.mrb[0].mxu0
      %v2221 = vadd.f32 0.0, %v2220
      %v2222 = vpop.f32.mrb[0].mxu0
      %v2223 = vpop.f32.mrb[0].mxu0
      %v2224 = vadd.f32 0.0, %v2223
      %v2225 = vpop.f32.mrb[0].mxu0
      %2226 = vmatprep.mubr.bf16.mxu0 0
      %2227 = vmatmul.mubr.bf16.gmra.mrb[0].mxu0 %v2123
      %v2228 = vpop.f32.mrb[0].mxu0
      %v2229 = vadd.f32 0.0, %v2228
      %v2230 = vpop.f32.mrb[0].mxu0
      %v2231 = vpop.f32.mrb[0].mxu0
      %v2232 = vadd.f32 0.0, %v2231
      %v2233 = vpop.f32.mrb[0].mxu0
      %2234 = vmatprep.mubr.bf16.mxu0 0
      %2235 = vmatmul.mubr.bf16.gmra.mrb[0].mxu0 %v2126
      %v2236 = vpop.f32.mrb[0].mxu0
      %v2237 = vadd.f32 0.0, %v2236
      %v2238 = vpop.f32.mrb[0].mxu0
      %v2239 = vpop.f32.mrb[0].mxu0
      %v2240 = vadd.f32 0.0, %v2239
      %v2241 = vpop.f32.mrb[0].mxu0
      %2242 = vmatprep.mubr.bf16.mxu0 0
      %2243 = vmatmul.mubr.bf16.gmra.mrb[0].mxu0 %v2129
      %v2244 = vpop.f32.mrb[0].mxu0
      %v2245 = vadd.f32 0.0, %v2244
      %v2246 = vpop.f32.mrb[0].mxu0
      %v2247 = vpop.f32.mrb[0].mxu0
      %v2248 = vadd.f32 0.0, %v2247
      %v2249 = vpop.f32.mrb[0].mxu0
      %2250 = vmatprep.mubr.bf16.mxu0 0
      %2251 = vmatmul.mubr.bf16.gmra.mrb[0].mxu0 %v2132
      %v2252 = vpop.f32.mrb[0].mxu0
      %v2253 = vadd.f32 0.0, %v2252
      %v2254 = vpop.f32.mrb[0].mxu0
      %v2255 = vpop.f32.mrb[0].mxu0
      %v2256 = vadd.f32 0.0, %v2255
      %v2257 = vpop.f32.mrb[0].mxu0
      %2258 = vmatprep.mubr.bf16.mxu0 0
      %2259 = vmatmul.mubr.bf16.gmra.mrb[0].mxu0 %v2135
      %v2260 = vpop.f32.mrb[0].mxu0
      %v2261 = vadd.f32 0.0, %v2260
      %v2262 = vpop.f32.mrb[0].mxu0
      %v2263 = vpop.f32.mrb[0].mxu0
      %v2264 = vadd.f32 0.0, %v2263
      %v2265 = vpop.f32.mrb[0].mxu0
      %2266 = vmatprep.mubr.bf16.mxu0 0
      %2267 = vmatmul.mubr.bf16.gmra.mrb[0].mxu0 %v2138
      %v2268 = vpop.f32.mrb[0].mxu0
      %v2269 = vadd.f32 0.0, %v2268
      %v2270 = vpop.f32.mrb[0].mxu0
      %v2271 = vpop.f32.mrb[0].mxu0
      %v2272 = vadd.f32 0.0, %v2271
      %v2273 = vpop.f32.mrb[0].mxu0
      %2274 = vmatprep.mubr.bf16.mxu0 0
      %2275 = vmatmul.mubr.bf16.gmra.mrb[0].mxu0 %v2141
      %v2276 = vpop.f32.mrb[0].mxu0
      %v2277 = vadd.f32 0.0, %v2276
      %v2278 = vpop.f32.mrb[0].mxu0
      %v2279 = vpop.f32.mrb[0].mxu0
      %v2280 = vadd.f32 0.0, %v2279
      %v2281 = vpop.f32.mrb[0].mxu0
      %2282 = vmatprep.mubr.bf16.mxu0 0
      %2283 = vmatmul.mubr.bf16.gmra.mrb[0].mxu0 %v2144
      %v2284 = vpop.f32.mrb[0].mxu0
      %v2285 = vadd.f32 0.0, %v2284
      %v2286 = vpop.f32.mrb[0].mxu0
      %v2287 = vpop.f32.mrb[0].mxu0
      %v2288 = vadd.f32 0.0, %v2287
      %v2289 = vpop.f32.mrb[0].mxu0
      %2290 = vmatprep.mubr.bf16.mxu0 0
      %2291 = vmatmul.mubr.bf16.gmra.mrb[0].mxu0 %v2147
      %v2292 = vpop.f32.mrb[0].mxu0
      %v2293 = vadd.f32 0.0, %v2292
      %v2294 = vpop.f32.mrb[0].mxu0
      %v2295 = vpop.f32.mrb[0].mxu0
      %v2296 = vadd.f32 0.0, %v2295
      %v2297 = vpop.f32.mrb[0].mxu0
      %2298 = vmatprep.mubr.bf16.mxu0 0
      %2299 = vmatmul.mubr.bf16.gmra.mrb[0].mxu0 %v2150
      %v2300 = vpop.f32.mrb[0].mxu0
      %v2301 = vadd.f32 0.0, %v2300
      %v2302 = vpop.f32.mrb[0].mxu0
      %v2303 = vpop.f32.mrb[0].mxu0
      %v2304 = vadd.f32 0.0, %v2303
      %v2305 = vpop.f32.mrb[0].mxu0
      %2306 = vmatprep.mubr.bf16.mxu0 0
      %2307 = vmatmul.mubr.bf16.gmra.mrb[0].mxu0 %v2153
      %v2308 = vpop.f32.mrb[0].mxu0
      %v2309 = vadd.f32 0.0, %v2308
      %v2310 = vpop.f32.mrb[0].mxu0
      %v2311 = vpop.f32.mrb[0].mxu0
      %v2312 = vadd.f32 0.0, %v2311
      %v2313 = vpop.f32.mrb[0].mxu0
      %2314 = vmatprep.mubr.bf16.mxu0 0
      %2315 = vmatmul.mubr.bf16.gmra.mrb[0].mxu0 %v2156
      %v2316 = vpop.f32.mrb[0].mxu0
      %v2317 = vadd.f32 0.0, %v2316
      %v2318 = vpop.f32.mrb[0].mxu0
      %v2319 = vpop.f32.mrb[0].mxu0
      %v2320 = vadd.f32 0.0, %v2319
      %v2321 = vpop.f32.mrb[0].mxu0
      %2322 = vmatprep.mubr.bf16.mxu0 0
      %2323 = vmatmul.mubr.bf16.gmra.mrb[0].mxu0 %v2159
      %v2324 = vpop.f32.mrb[0].mxu0
      %v2325 = vadd.f32 0.0, %v2324
      %v2326 = vpop.f32.mrb[0].mxu0
      %v2327 = vpop.f32.mrb[0].mxu0
      %v2328 = vadd.f32 0.0, %v2327
      %v2329 = vpop.f32.mrb[0].mxu0
      %2330 = vmatprep.mubr.bf16.mxu0 0
      %2331 = vmatmul.mubr.bf16.gmra.mrb[0].mxu0 %v2162
      %v2332 = vpop.f32.mrb[0].mxu0
      %v2333 = vadd.f32 0.0, %v2332
      %v2334 = vpop.f32.mrb[0].mxu0
      %v2335 = vpop.f32.mrb[0].mxu0
      %v2336 = vadd.f32 0.0, %v2335
      %v2337 = vpop.f32.mrb[0].mxu0
      %2338 = vmatprep.mubr.bf16.mxu0 0
      %2339 = vmatmul.mubr.bf16.gmra.mrb[0].mxu0 %v2165
      %v2340 = vpop.f32.mrb[0].mxu0
      %v2341 = vadd.f32 0.0, %v2340
      %v2342 = vpop.f32.mrb[0].mxu0
      %v2343 = vpop.f32.mrb[0].mxu0
      %v2344 = vadd.f32 0.0, %v2343
      %v2345 = vpop.f32.mrb[0].mxu0
      %2346 = vdwg.mxu0
      %v2347 = vadd.f32 %v2021, %v2205
      %v2348 = vadd.f32 %v2022, %v2208
      %v2349 = vadd.f32 %v2023, %v2213
      %v2350 = vadd.f32 %v2024, %v2216
      %v2351 = vadd.f32 %v2025, %v2221
      %v2352 = vadd.f32 %v2026, %v2224
      %v2353 = vadd.f32 %v2027, %v2229
      %v2354 = vadd.f32 %v2028, %v2232
      %v2355 = vadd.f32 %v2029, %v2237
      %v2356 = vadd.f32 %v2030, %v2240
      %v2357 = vadd.f32 %v2031, %v2245
      %v2358 = vadd.f32 %v2032, %v2248
      %v2359 = vadd.f32 %v2033, %v2253
      %v2360 = vadd.f32 %v2034, %v2256
      %v2361 = vadd.f32 %v2035, %v2261
      %v2362 = vadd.f32 %v2036, %v2264
      %v2363 = vadd.f32 %v2037, %v2269
      %v2364 = vadd.f32 %v2038, %v2272
      %v2365 = vadd.f32 %v2039, %v2277
      %v2366 = vadd.f32 %v2040, %v2280
      %v2367 = vadd.f32 %v2041, %v2285
      %v2368 = vadd.f32 %v2042, %v2288
      %v2369 = vadd.f32 %v2043, %v2293
      %v2370 = vadd.f32 %v2044, %v2296
      %v2371 = vadd.f32 %v2045, %v2301
      %v2372 = vadd.f32 %v2046, %v2304
      %v2373 = vadd.f32 %v2047, %v2309
      %v2374 = vadd.f32 %v2048, %v2312
      %v2375 = vadd.f32 %v2049, %v2317
      %v2376 = vadd.f32 %v2050, %v2320
      %v2377 = vadd.f32 %v2051, %v2325
      %v2378 = vadd.f32 %v2052, %v2328
      %v2379 = vadd.f32 %v2053, %v2333
      %v2380 = vadd.f32 %v2054, %v2336
      %v2381 = vadd.f32 %v2055, %v2341
      %v2382 = vadd.f32 %v2056, %v2344
      %v2383 = vld [vmem:[%s165 + $0x25] sm:$0xff]
      %v2384 = vld [vmem:[%s165 + $0x2d] sm:$0xff]
      %v2385 = vld [vmem:[%s165 + $0x35] sm:$0xff]
      %v2386 = vld [vmem:[%s165 + $0x3d] sm:$0xff]
      %v2387 = vld [vmem:[%s165 + $0x45] sm:$0xff]
      %v2388 = vld [vmem:[%s165 + $0x4d] sm:$0xff]
      %v2389 = vld [vmem:[%s165 + $0x55] sm:$0xff]
      %v2390 = vld [vmem:[%s165 + $0x5d] sm:$0xff]
      %v2391 = vld [vmem:[%s165 + $0x65] sm:$0xff]
      %v2392 = vld [vmem:[%s165 + $0x6d] sm:$0xff]
      %v2393 = vld [vmem:[%s165 + $0x75] sm:$0xff]
      %v2394 = vld [vmem:[%s165 + $0x7d] sm:$0xff]
      %v2395 = vld [vmem:[%s165 + $0x85] sm:$0xff]
      %v2396 = vld [vmem:[%s165 + $0x8d] sm:$0xff]
      %v2397 = vld [vmem:[%s165 + $0x95] sm:$0xff]
      %v2398 = vld [vmem:[%s165 + $0x9d] sm:$0xff]
      %v2399 = vld [vmem:[%s165 + $0xa5] sm:$0xff]
      %v2400 = vld [vmem:[%s165 + $0xad] sm:$0xff]
      %v2401 = vld [vmem:[%s165 + $0xb5] sm:$0xff]
      %v2402 = vld [vmem:[%s165 + $0xbd] sm:$0xff]
      %v2403 = vld [vmem:[%s165 + $0xc5] sm:$0xff]
      %v2404 = vld [vmem:[%s165 + $0xcd] sm:$0xff]
      %v2405 = vld [vmem:[%s165 + $0xd5] sm:$0xff]
      %v2406 = vld [vmem:[%s165 + $0xdd] sm:$0xff]
      %v2407 = vld [vmem:[%s165 + $0xe5] sm:$0xff]
      %v2408 = vld [vmem:[%s165 + $0xed] sm:$0xff]
      %v2409 = vld [vmem:[%s165 + $0xf5] sm:$0xff]
      %v2410 = vld [vmem:[%s165 + $0xfd] sm:$0xff]
      %v2411 = vld [vmem:[%s165 + $0x105] sm:$0xff]
      %v2412 = vld [vmem:[%s165 + $0x10d] sm:$0xff]
      %v2413 = vld [vmem:[%s165 + $0x115] sm:$0xff]
      %v2414 = vld [vmem:[%s165 + $0x11d] sm:$0xff]
      %v2415 = vld [vmem:[%s165 + $0x125] sm:$0xff]
      %v2416 = vld [vmem:[%s165 + $0x12d] sm:$0xff]
      %v2417 = vld [vmem:[%s165 + $0x135] sm:$0xff]
      %v2418 = vld [vmem:[%s165 + $0x13d] sm:$0xff]
      %v2419 = vpack.c.bf16 %v2384, %v2383
      %v2420 = vpack.c.bf16 %v2386, %v2385
      %v2421 = vpack.c.bf16 %v2388, %v2387
      %v2422 = vpack.c.bf16 %v2390, %v2389
      %v2423 = vpack.c.bf16 %v2392, %v2391
      %v2424 = vpack.c.bf16 %v2394, %v2393
      %v2425 = vpack.c.bf16 %v2396, %v2395
      %v2426 = vpack.c.bf16 %v2398, %v2397
      %v2427 = vpack.c.bf16 %v2400, %v2399
      %v2428 = vpack.c.bf16 %v2402, %v2401
      %v2429 = vpack.c.bf16 %v2404, %v2403
      %v2430 = vpack.c.bf16 %v2406, %v2405
      %v2431 = vpack.c.bf16 %v2408, %v2407
      %v2432 = vpack.c.bf16 %v2410, %v2409
      %v2433 = vpack.c.bf16 %v2412, %v2411
      %v2434 = vpack.c.bf16 %v2414, %v2413
      %v2435 = vpack.c.bf16 %v2416, %v2415
      %v2436 = vpack.c.bf16 %v2418, %v2417
      %s2437 = scalar_lea.vmem %s1, 14
      %v2438 = vld [vmem:[%s2437] sm:$0x3]
      %v2440 = vsel %vm283, %v2419, 0
      %v2443 = vsel %vm283, %v2420, 0
      %v2446 = vsel %vm283, %v2421, 0
      %v2449 = vsel %vm283, %v2422, 0
      %v2452 = vsel %vm283, %v2423, 0
      %v2455 = vsel %vm283, %v2424, 0
      %v2458 = vsel %vm283, %v2425, 0
      %v2461 = vsel %vm283, %v2426, 0
      %v2464 = vsel %vm283, %v2427, 0
      %v2467 = vsel %vm283, %v2428, 0
      %v2470 = vsel %vm283, %v2429, 0
      %v2473 = vsel %vm283, %v2430, 0
      %v2476 = vsel %vm283, %v2431, 0
      %v2479 = vsel %vm283, %v2432, 0
      %v2482 = vsel %vm283, %v2433, 0
      %v2485 = vsel %vm283, %v2434, 0
      %v2488 = vsel %vm283, %v2435, 0
      %v2491 = vsel %vm283, %v2436, 0
      %v2494 = vsel %vm338, %v2438, 0
      %2496 = vmatprep.subr.bf16.mxu0 0
      %2497 = vmatpush1.bf16.msra.mxu0 %v2494
      %2498 = vmatprep.subr.bf16.mxu0 0
      %2499 = vmatpush1.bf16.msra.mxu0 0
      %2500 = vmatprep.subr.bf16.mxu0 0
      %2501 = vmatpush1.bf16.msra.mxu0 0
      %2502 = vmatprep.subr.bf16.mxu0 0
      %2503 = vmatpush1.bf16.msra.mxu0 0
      %2504 = vmatprep.subr.bf16.mxu0 0
      %2505 = vmatpush1.bf16.msra.mxu0 0
      %2506 = vmatprep.subr.bf16.mxu0 0
      %2507 = vmatpush1.bf16.msra.mxu0 0
      %2508 = vmatprep.subr.bf16.mxu0 0
      %2509 = vmatpush1.bf16.msra.mxu0 0
      %2510 = vmatprep.subr.bf16.mxu0 0
      %2511 = vmatpush1.bf16.msra.mxu0 0
      %2512 = vmatprep.subr.bf16.mxu0 0
      %2513 = vmatpush1.bf16.msra.mxu0 0
      %2514 = vmatprep.subr.bf16.mxu0 0
      %2515 = vmatpush1.bf16.msra.mxu0 0
      %2516 = vmatprep.subr.bf16.mxu0 0
      %2517 = vmatpush1.bf16.msra.mxu0 0
      %2518 = vmatprep.subr.bf16.mxu0 0
      %2519 = vmatpush1.bf16.msra.mxu0 0
      %2520 = vmatprep.subr.bf16.mxu0 0
      %2521 = vmatpush1.bf16.msra.mxu0 0
      %2522 = vmatprep.subr.bf16.mxu0 0
      %2523 = vmatpush1.bf16.msra.mxu0 0
      %2524 = vmatprep.subr.bf16.mxu0 0
      %2525 = vmatpush1.bf16.msra.mxu0 0
      %2526 = vmatprep.subr.bf16.mxu0 0
      %2527 = vmatpush1.bf16.msra.mxu0 0
      %2528 = vmatprep.mubr.bf16.mxu0 0
      %2529 = vmatmul.mubr.bf16.gmra.mrb[0].mxu0 %v2440
      %v2530 = vpop.f32.mrb[0].mxu0
      %v2531 = vadd.f32 0.0, %v2530
      %v2532 = vpop.f32.mrb[0].mxu0
      %v2533 = vpop.f32.mrb[0].mxu0
      %v2534 = vadd.f32 0.0, %v2533
      %v2535 = vpop.f32.mrb[0].mxu0
      %2536 = vmatprep.mubr.bf16.mxu0 0
      %2537 = vmatmul.mubr.bf16.gmra.mrb[0].mxu0 %v2443
      %v2538 = vpop.f32.mrb[0].mxu0
      %v2539 = vadd.f32 0.0, %v2538
      %v2540 = vpop.f32.mrb[0].mxu0
      %v2541 = vpop.f32.mrb[0].mxu0
      %v2542 = vadd.f32 0.0, %v2541
      %v2543 = vpop.f32.mrb[0].mxu0
      %2544 = vmatprep.mubr.bf16.mxu0 0
      %2545 = vmatmul.mubr.bf16.gmra.mrb[0].mxu0 %v2446
      %v2546 = vpop.f32.mrb[0].mxu0
      %v2547 = vadd.f32 0.0, %v2546
      %v2548 = vpop.f32.mrb[0].mxu0
      %v2549 = vpop.f32.mrb[0].mxu0
      %v2550 = vadd.f32 0.0, %v2549
      %v2551 = vpop.f32.mrb[0].mxu0
      %2552 = vmatprep.mubr.bf16.mxu0 0
      %2553 = vmatmul.mubr.bf16.gmra.mrb[0].mxu0 %v2449
      %v2554 = vpop.f32.mrb[0].mxu0
      %v2555 = vadd.f32 0.0, %v2554
      %v2556 = vpop.f32.mrb[0].mxu0
      %v2557 = vpop.f32.mrb[0].mxu0
      %v2558 = vadd.f32 0.0, %v2557
      %v2559 = vpop.f32.mrb[0].mxu0
      %2560 = vmatprep.mubr.bf16.mxu0 0
      %2561 = vmatmul.mubr.bf16.gmra.mrb[0].mxu0 %v2452
      %v2562 = vpop.f32.mrb[0].mxu0
      %v2563 = vadd.f32 0.0, %v2562
      %v2564 = vpop.f32.mrb[0].mxu0
      %v2565 = vpop.f32.mrb[0].mxu0
      %v2566 = vadd.f32 0.0, %v2565
      %v2567 = vpop.f32.mrb[0].mxu0
      %2568 = vmatprep.mubr.bf16.mxu0 0
      %2569 = vmatmul.mubr.bf16.gmra.mrb[0].mxu0 %v2455
      %v2570 = vpop.f32.mrb[0].mxu0
      %v2571 = vadd.f32 0.0, %v2570
      %v2572 = vpop.f32.mrb[0].mxu0
      %v2573 = vpop.f32.mrb[0].mxu0
      %v2574 = vadd.f32 0.0, %v2573
      %v2575 = vpop.f32.mrb[0].mxu0
      %2576 = vmatprep.mubr.bf16.mxu0 0
      %2577 = vmatmul.mubr.bf16.gmra.mrb[0].mxu0 %v2458
      %v2578 = vpop.f32.mrb[0].mxu0
      %v2579 = vadd.f32 0.0, %v2578
      %v2580 = vpop.f32.mrb[0].mxu0
      %v2581 = vpop.f32.mrb[0].mxu0
      %v2582 = vadd.f32 0.0, %v2581
      %v2583 = vpop.f32.mrb[0].mxu0
      %2584 = vmatprep.mubr.bf16.mxu0 0
      %2585 = vmatmul.mubr.bf16.gmra.mrb[0].mxu0 %v2461
      %v2586 = vpop.f32.mrb[0].mxu0
      %v2587 = vadd.f32 0.0, %v2586
      %v2588 = vpop.f32.mrb[0].mxu0
      %v2589 = vpop.f32.mrb[0].mxu0
      %v2590 = vadd.f32 0.0, %v2589
      %v2591 = vpop.f32.mrb[0].mxu0
      %2592 = vmatprep.mubr.bf16.mxu0 0
      %2593 = vmatmul.mubr.bf16.gmra.mrb[0].mxu0 %v2464
      %v2594 = vpop.f32.mrb[0].mxu0
      %v2595 = vadd.f32 0.0, %v2594
      %v2596 = vpop.f32.mrb[0].mxu0
      %v2597 = vpop.f32.mrb[0].mxu0
      %v2598 = vadd.f32 0.0, %v2597
      %v2599 = vpop.f32.mrb[0].mxu0
      %2600 = vmatprep.mubr.bf16.mxu0 0
      %2601 = vmatmul.mubr.bf16.gmra.mrb[0].mxu0 %v2467
      %v2602 = vpop.f32.mrb[0].mxu0
      %v2603 = vadd.f32 0.0, %v2602
      %v2604 = vpop.f32.mrb[0].mxu0
      %v2605 = vpop.f32.mrb[0].mxu0
      %v2606 = vadd.f32 0.0, %v2605
      %v2607 = vpop.f32.mrb[0].mxu0
      %2608 = vmatprep.mubr.bf16.mxu0 0
      %2609 = vmatmul.mubr.bf16.gmra.mrb[0].mxu0 %v2470
      %v2610 = vpop.f32.mrb[0].mxu0
      %v2611 = vadd.f32 0.0, %v2610
      %v2612 = vpop.f32.mrb[0].mxu0
      %v2613 = vpop.f32.mrb[0].mxu0
      %v2614 = vadd.f32 0.0, %v2613
      %v2615 = vpop.f32.mrb[0].mxu0
      %2616 = vmatprep.mubr.bf16.mxu0 0
      %2617 = vmatmul.mubr.bf16.gmra.mrb[0].mxu0 %v2473
      %v2618 = vpop.f32.mrb[0].mxu0
      %v2619 = vadd.f32 0.0, %v2618
      %v2620 = vpop.f32.mrb[0].mxu0
      %v2621 = vpop.f32.mrb[0].mxu0
      %v2622 = vadd.f32 0.0, %v2621
      %v2623 = vpop.f32.mrb[0].mxu0
      %2624 = vmatprep.mubr.bf16.mxu0 0
      %2625 = vmatmul.mubr.bf16.gmra.mrb[0].mxu0 %v2476
      %v2626 = vpop.f32.mrb[0].mxu0
      %v2627 = vadd.f32 0.0, %v2626
      %v2628 = vpop.f32.mrb[0].mxu0
      %v2629 = vpop.f32.mrb[0].mxu0
      %v2630 = vadd.f32 0.0, %v2629
      %v2631 = vpop.f32.mrb[0].mxu0
      %2632 = vmatprep.mubr.bf16.mxu0 0
      %2633 = vmatmul.mubr.bf16.gmra.mrb[0].mxu0 %v2479
      %v2634 = vpop.f32.mrb[0].mxu0
      %v2635 = vadd.f32 0.0, %v2634
      %v2636 = vpop.f32.mrb[0].mxu0
      %v2637 = vpop.f32.mrb[0].mxu0
      %v2638 = vadd.f32 0.0, %v2637
      %v2639 = vpop.f32.mrb[0].mxu0
      %2640 = vmatprep.mubr.bf16.mxu0 0
      %2641 = vmatmul.mubr.bf16.gmra.mrb[0].mxu0 %v2482
      %v2642 = vpop.f32.mrb[0].mxu0
      %v2643 = vadd.f32 0.0, %v2642
      %v2644 = vpop.f32.mrb[0].mxu0
      %v2645 = vpop.f32.mrb[0].mxu0
      %v2646 = vadd.f32 0.0, %v2645
      %v2647 = vpop.f32.mrb[0].mxu0
      %2648 = vmatprep.mubr.bf16.mxu0 0
      %2649 = vmatmul.mubr.bf16.gmra.mrb[0].mxu0 %v2485
      %v2650 = vpop.f32.mrb[0].mxu0
      %v2651 = vadd.f32 0.0, %v2650
      %v2652 = vpop.f32.mrb[0].mxu0
      %v2653 = vpop.f32.mrb[0].mxu0
      %v2654 = vadd.f32 0.0, %v2653
      %v2655 = vpop.f32.mrb[0].mxu0
      %2656 = vmatprep.mubr.bf16.mxu0 0
      %2657 = vmatmul.mubr.bf16.gmra.mrb[0].mxu0 %v2488
      %v2658 = vpop.f32.mrb[0].mxu0
      %v2659 = vadd.f32 0.0, %v2658
      %v2660 = vpop.f32.mrb[0].mxu0
      %v2661 = vpop.f32.mrb[0].mxu0
      %v2662 = vadd.f32 0.0, %v2661
      %v2663 = vpop.f32.mrb[0].mxu0
      %2664 = vmatprep.mubr.bf16.mxu0 0
      %2665 = vmatmul.mubr.bf16.gmra.mrb[0].mxu0 %v2491
      %v2666 = vpop.f32.mrb[0].mxu0
      %v2667 = vadd.f32 0.0, %v2666
      %v2668 = vpop.f32.mrb[0].mxu0
      %v2669 = vpop.f32.mrb[0].mxu0
      %v2670 = vadd.f32 0.0, %v2669
      %v2671 = vpop.f32.mrb[0].mxu0
      %2672 = vdwg.mxu0
      %v2673 = vadd.f32 %v2347, %v2531
      %v2674 = vadd.f32 %v2348, %v2534
      %v2675 = vadd.f32 %v2349, %v2539
      %v2676 = vadd.f32 %v2350, %v2542
      %v2677 = vadd.f32 %v2351, %v2547
      %v2678 = vadd.f32 %v2352, %v2550
      %v2679 = vadd.f32 %v2353, %v2555
      %v2680 = vadd.f32 %v2354, %v2558
      %v2681 = vadd.f32 %v2355, %v2563
      %v2682 = vadd.f32 %v2356, %v2566
      %v2683 = vadd.f32 %v2357, %v2571
      %v2684 = vadd.f32 %v2358, %v2574
      %v2685 = vadd.f32 %v2359, %v2579
      %v2686 = vadd.f32 %v2360, %v2582
      %v2687 = vadd.f32 %v2361, %v2587
      %v2688 = vadd.f32 %v2362, %v2590
      %v2689 = vadd.f32 %v2363, %v2595
      %v2690 = vadd.f32 %v2364, %v2598
      %v2691 = vadd.f32 %v2365, %v2603
      %v2692 = vadd.f32 %v2366, %v2606
      %v2693 = vadd.f32 %v2367, %v2611
      %v2694 = vadd.f32 %v2368, %v2614
      %v2695 = vadd.f32 %v2369, %v2619
      %v2696 = vadd.f32 %v2370, %v2622
      %v2697 = vadd.f32 %v2371, %v2627
      %v2698 = vadd.f32 %v2372, %v2630
      %v2699 = vadd.f32 %v2373, %v2635
      %v2700 = vadd.f32 %v2374, %v2638
      %v2701 = vadd.f32 %v2375, %v2643
      %v2702 = vadd.f32 %v2376, %v2646
      %v2703 = vadd.f32 %v2377, %v2651
      %v2704 = vadd.f32 %v2378, %v2654
      %v2705 = vadd.f32 %v2379, %v2659
      %v2706 = vadd.f32 %v2380, %v2662
      %v2707 = vadd.f32 %v2381, %v2667
      %v2708 = vadd.f32 %v2382, %v2670
      %v2709 = vld [vmem:[%s165 + $0x26] sm:$0xff]
      %v2710 = vld [vmem:[%s165 + $0x2e] sm:$0xff]
      %v2711 = vld [vmem:[%s165 + $0x36] sm:$0xff]
      %v2712 = vld [vmem:[%s165 + $0x3e] sm:$0xff]
      %v2713 = vld [vmem:[%s165 + $0x46] sm:$0xff]
      %v2714 = vld [vmem:[%s165 + $0x4e] sm:$0xff]
      %v2715 = vld [vmem:[%s165 + $0x56] sm:$0xff]
      %v2716 = vld [vmem:[%s165 + $0x5e] sm:$0xff]
      %v2717 = vld [vmem:[%s165 + $0x66] sm:$0xff]
      %v2718 = vld [vmem:[%s165 + $0x6e] sm:$0xff]
      %v2719 = vld [vmem:[%s165 + $0x76] sm:$0xff]
      %v2720 = vld [vmem:[%s165 + $0x7e] sm:$0xff]
      %v2721 = vld [vmem:[%s165 + $0x86] sm:$0xff]
      %v2722 = vld [vmem:[%s165 + $0x8e] sm:$0xff]
      %v2723 = vld [vmem:[%s165 + $0x96] sm:$0xff]
      %v2724 = vld [vmem:[%s165 + $0x9e] sm:$0xff]
      %v2725 = vld [vmem:[%s165 + $0xa6] sm:$0xff]
      %v2726 = vld [vmem:[%s165 + $0xae] sm:$0xff]
      %v2727 = vld [vmem:[%s165 + $0xb6] sm:$0xff]
      %v2728 = vld [vmem:[%s165 + $0xbe] sm:$0xff]
      %v2729 = vld [vmem:[%s165 + $0xc6] sm:$0xff]
      %v2730 = vld [vmem:[%s165 + $0xce] sm:$0xff]
      %v2731 = vld [vmem:[%s165 + $0xd6] sm:$0xff]
      %v2732 = vld [vmem:[%s165 + $0xde] sm:$0xff]
      %v2733 = vld [vmem:[%s165 + $0xe6] sm:$0xff]
      %v2734 = vld [vmem:[%s165 + $0xee] sm:$0xff]
      %v2735 = vld [vmem:[%s165 + $0xf6] sm:$0xff]
      %v2736 = vld [vmem:[%s165 + $0xfe] sm:$0xff]
      %v2737 = vld [vmem:[%s165 + $0x106] sm:$0xff]
      %v2738 = vld [vmem:[%s165 + $0x10e] sm:$0xff]
      %v2739 = vld [vmem:[%s165 + $0x116] sm:$0xff]
      %v2740 = vld [vmem:[%s165 + $0x11e] sm:$0xff]
      %v2741 = vld [vmem:[%s165 + $0x126] sm:$0xff]
      %v2742 = vld [vmem:[%s165 + $0x12e] sm:$0xff]
      %v2743 = vld [vmem:[%s165 + $0x136] sm:$0xff]
      %v2744 = vld [vmem:[%s165 + $0x13e] sm:$0xff]
      %v2745 = vpack.c.bf16 %v2710, %v2709
      %v2746 = vpack.c.bf16 %v2712, %v2711
      %v2747 = vpack.c.bf16 %v2714, %v2713
      %v2748 = vpack.c.bf16 %v2716, %v2715
      %v2749 = vpack.c.bf16 %v2718, %v2717
      %v2750 = vpack.c.bf16 %v2720, %v2719
      %v2751 = vpack.c.bf16 %v2722, %v2721
      %v2752 = vpack.c.bf16 %v2724, %v2723
      %v2753 = vpack.c.bf16 %v2726, %v2725
      %v2754 = vpack.c.bf16 %v2728, %v2727
      %v2755 = vpack.c.bf16 %v2730, %v2729
      %v2756 = vpack.c.bf16 %v2732, %v2731
      %v2757 = vpack.c.bf16 %v2734, %v2733
      %v2758 = vpack.c.bf16 %v2736, %v2735
      %v2759 = vpack.c.bf16 %v2738, %v2737
      %v2760 = vpack.c.bf16 %v2740, %v2739
      %v2761 = vpack.c.bf16 %v2742, %v2741
      %v2762 = vpack.c.bf16 %v2744, %v2743
      %s2763 = scalar_lea.vmem %s1, 16
      %v2764 = vld [vmem:[%s2763] sm:$0x3]
      %v2766 = vsel %vm283, %v2745, 0
      %v2769 = vsel %vm283, %v2746, 0
      %v2772 = vsel %vm283, %v2747, 0
      %v2775 = vsel %vm283, %v2748, 0
      %v2778 = vsel %vm283, %v2749, 0
      %v2781 = vsel %vm283, %v2750, 0
      %v2784 = vsel %vm283, %v2751, 0
      %v2787 = vsel %vm283, %v2752, 0
      %v2790 = vsel %vm283, %v2753, 0
      %v2793 = vsel %vm283, %v2754, 0
      %v2796 = vsel %vm283, %v2755, 0
      %v2799 = vsel %vm283, %v2756, 0
      %v2802 = vsel %vm283, %v2757, 0
      %v2805 = vsel %vm283, %v2758, 0
      %v2808 = vsel %vm283, %v2759, 0
      %v2811 = vsel %vm283, %v2760, 0
      %v2814 = vsel %vm283, %v2761, 0
      %v2817 = vsel %vm283, %v2762, 0
      %v2820 = vsel %vm338, %v2764, 0
      %2822 = vmatprep.subr.bf16.mxu0 0
      %2823 = vmatpush1.bf16.msra.mxu0 %v2820
      %2824 = vmatprep.subr.bf16.mxu0 0
      %2825 = vmatpush1.bf16.msra.mxu0 0
      %2826 = vmatprep.subr.bf16.mxu0 0
      %2827 = vmatpush1.bf16.msra.mxu0 0
      %2828 = vmatprep.subr.bf16.mxu0 0
      %2829 = vmatpush1.bf16.msra.mxu0 0
      %2830 = vmatprep.subr.bf16.mxu0 0
      %2831 = vmatpush1.bf16.msra.mxu0 0
      %2832 = vmatprep.subr.bf16.mxu0 0
      %2833 = vmatpush1.bf16.msra.mxu0 0
      %2834 = vmatprep.subr.bf16.mxu0 0
      %2835 = vmatpush1.bf16.msra.mxu0 0
      %2836 = vmatprep.subr.bf16.mxu0 0
      %2837 = vmatpush1.bf16.msra.mxu0 0
      %2838 = vmatprep.subr.bf16.mxu0 0
      %2839 = vmatpush1.bf16.msra.mxu0 0
      %2840 = vmatprep.subr.bf16.mxu0 0
      %2841 = vmatpush1.bf16.msra.mxu0 0
      %2842 = vmatprep.subr.bf16.mxu0 0
      %2843 = vmatpush1.bf16.msra.mxu0 0
      %2844 = vmatprep.subr.bf16.mxu0 0
      %2845 = vmatpush1.bf16.msra.mxu0 0
      %2846 = vmatprep.subr.bf16.mxu0 0
      %2847 = vmatpush1.bf16.msra.mxu0 0
      %2848 = vmatprep.subr.bf16.mxu0 0
      %2849 = vmatpush1.bf16.msra.mxu0 0
      %2850 = vmatprep.subr.bf16.mxu0 0
      %2851 = vmatpush1.bf16.msra.mxu0 0
      %2852 = vmatprep.subr.bf16.mxu0 0
      %2853 = vmatpush1.bf16.msra.mxu0 0
      %2854 = vmatprep.mubr.bf16.mxu0 0
      %2855 = vmatmul.mubr.bf16.gmra.mrb[0].mxu0 %v2766
      %v2856 = vpop.f32.mrb[0].mxu0
      %v2857 = vadd.f32 0.0, %v2856
      %v2858 = vpop.f32.mrb[0].mxu0
      %v2859 = vpop.f32.mrb[0].mxu0
      %v2860 = vadd.f32 0.0, %v2859
      %v2861 = vpop.f32.mrb[0].mxu0
      %2862 = vmatprep.mubr.bf16.mxu0 0
      %2863 = vmatmul.mubr.bf16.gmra.mrb[0].mxu0 %v2769
      %v2864 = vpop.f32.mrb[0].mxu0
      %v2865 = vadd.f32 0.0, %v2864
      %v2866 = vpop.f32.mrb[0].mxu0
      %v2867 = vpop.f32.mrb[0].mxu0
      %v2868 = vadd.f32 0.0, %v2867
      %v2869 = vpop.f32.mrb[0].mxu0
      %2870 = vmatprep.mubr.bf16.mxu0 0
      %2871 = vmatmul.mubr.bf16.gmra.mrb[0].mxu0 %v2772
      %v2872 = vpop.f32.mrb[0].mxu0
      %v2873 = vadd.f32 0.0, %v2872
      %v2874 = vpop.f32.mrb[0].mxu0
      %v2875 = vpop.f32.mrb[0].mxu0
      %v2876 = vadd.f32 0.0, %v2875
      %v2877 = vpop.f32.mrb[0].mxu0
      %2878 = vmatprep.mubr.bf16.mxu0 0
      %2879 = vmatmul.mubr.bf16.gmra.mrb[0].mxu0 %v2775
      %v2880 = vpop.f32.mrb[0].mxu0
      %v2881 = vadd.f32 0.0, %v2880
      %v2882 = vpop.f32.mrb[0].mxu0
      %v2883 = vpop.f32.mrb[0].mxu0
      %v2884 = vadd.f32 0.0, %v2883
      %v2885 = vpop.f32.mrb[0].mxu0
      %2886 = vmatprep.mubr.bf16.mxu0 0
      %2887 = vmatmul.mubr.bf16.gmra.mrb[0].mxu0 %v2778
      %v2888 = vpop.f32.mrb[0].mxu0
      %v2889 = vadd.f32 0.0, %v2888
      %v2890 = vpop.f32.mrb[0].mxu0
      %v2891 = vpop.f32.mrb[0].mxu0
      %v2892 = vadd.f32 0.0, %v2891
      %v2893 = vpop.f32.mrb[0].mxu0
      %2894 = vmatprep.mubr.bf16.mxu0 0
      %2895 = vmatmul.mubr.bf16.gmra.mrb[0].mxu0 %v2781
      %v2896 = vpop.f32.mrb[0].mxu0
      %v2897 = vadd.f32 0.0, %v2896
      %v2898 = vpop.f32.mrb[0].mxu0
      %v2899 = vpop.f32.mrb[0].mxu0
      %v2900 = vadd.f32 0.0, %v2899
      %v2901 = vpop.f32.mrb[0].mxu0
      %2902 = vmatprep.mubr.bf16.mxu0 0
      %2903 = vmatmul.mubr.bf16.gmra.mrb[0].mxu0 %v2784
      %v2904 = vpop.f32.mrb[0].mxu0
      %v2905 = vadd.f32 0.0, %v2904
      %v2906 = vpop.f32.mrb[0].mxu0
      %v2907 = vpop.f32.mrb[0].mxu0
      %v2908 = vadd.f32 0.0, %v2907
      %v2909 = vpop.f32.mrb[0].mxu0
      %2910 = vmatprep.mubr.bf16.mxu0 0
      %2911 = vmatmul.mubr.bf16.gmra.mrb[0].mxu0 %v2787
      %v2912 = vpop.f32.mrb[0].mxu0
      %v2913 = vadd.f32 0.0, %v2912
      %v2914 = vpop.f32.mrb[0].mxu0
      %v2915 = vpop.f32.mrb[0].mxu0
      %v2916 = vadd.f32 0.0, %v2915
      %v2917 = vpop.f32.mrb[0].mxu0
      %2918 = vmatprep.mubr.bf16.mxu0 0
      %2919 = vmatmul.mubr.bf16.gmra.mrb[0].mxu0 %v2790
      %v2920 = vpop.f32.mrb[0].mxu0
      %v2921 = vadd.f32 0.0, %v2920
      %v2922 = vpop.f32.mrb[0].mxu0
      %v2923 = vpop.f32.mrb[0].mxu0
      %v2924 = vadd.f32 0.0, %v2923
      %v2925 = vpop.f32.mrb[0].mxu0
      %2926 = vmatprep.mubr.bf16.mxu0 0
      %2927 = vmatmul.mubr.bf16.gmra.mrb[0].mxu0 %v2793
      %v2928 = vpop.f32.mrb[0].mxu0
      %v2929 = vadd.f32 0.0, %v2928
      %v2930 = vpop.f32.mrb[0].mxu0
      %v2931 = vpop.f32.mrb[0].mxu0
      %v2932 = vadd.f32 0.0, %v2931
      %v2933 = vpop.f32.mrb[0].mxu0
      %2934 = vmatprep.mubr.bf16.mxu0 0
      %2935 = vmatmul.mubr.bf16.gmra.mrb[0].mxu0 %v2796
      %v2936 = vpop.f32.mrb[0].mxu0
      %v2937 = vadd.f32 0.0, %v2936
      %v2938 = vpop.f32.mrb[0].mxu0
      %v2939 = vpop.f32.mrb[0].mxu0
      %v2940 = vadd.f32 0.0, %v2939
      %v2941 = vpop.f32.mrb[0].mxu0
      %2942 = vmatprep.mubr.bf16.mxu0 0
      %2943 = vmatmul.mubr.bf16.gmra.mrb[0].mxu0 %v2799
      %v2944 = vpop.f32.mrb[0].mxu0
      %v2945 = vadd.f32 0.0, %v2944
      %v2946 = vpop.f32.mrb[0].mxu0
      %v2947 = vpop.f32.mrb[0].mxu0
      %v2948 = vadd.f32 0.0, %v2947
      %v2949 = vpop.f32.mrb[0].mxu0
      %2950 = vmatprep.mubr.bf16.mxu0 0
      %2951 = vmatmul.mubr.bf16.gmra.mrb[0].mxu0 %v2802
      %v2952 = vpop.f32.mrb[0].mxu0
      %v2953 = vadd.f32 0.0, %v2952
      %v2954 = vpop.f32.mrb[0].mxu0
      %v2955 = vpop.f32.mrb[0].mxu0
      %v2956 = vadd.f32 0.0, %v2955
      %v2957 = vpop.f32.mrb[0].mxu0
      %2958 = vmatprep.mubr.bf16.mxu0 0
      %2959 = vmatmul.mubr.bf16.gmra.mrb[0].mxu0 %v2805
      %v2960 = vpop.f32.mrb[0].mxu0
      %v2961 = vadd.f32 0.0, %v2960
      %v2962 = vpop.f32.mrb[0].mxu0
      %v2963 = vpop.f32.mrb[0].mxu0
      %v2964 = vadd.f32 0.0, %v2963
      %v2965 = vpop.f32.mrb[0].mxu0
      %2966 = vmatprep.mubr.bf16.mxu0 0
      %2967 = vmatmul.mubr.bf16.gmra.mrb[0].mxu0 %v2808
      %v2968 = vpop.f32.mrb[0].mxu0
      %v2969 = vadd.f32 0.0, %v2968
      %v2970 = vpop.f32.mrb[0].mxu0
      %v2971 = vpop.f32.mrb[0].mxu0
      %v2972 = vadd.f32 0.0, %v2971
      %v2973 = vpop.f32.mrb[0].mxu0
      %2974 = vmatprep.mubr.bf16.mxu0 0
      %2975 = vmatmul.mubr.bf16.gmra.mrb[0].mxu0 %v2811
      %v2976 = vpop.f32.mrb[0].mxu0
      %v2977 = vadd.f32 0.0, %v2976
      %v2978 = vpop.f32.mrb[0].mxu0
      %v2979 = vpop.f32.mrb[0].mxu0
      %v2980 = vadd.f32 0.0, %v2979
      %v2981 = vpop.f32.mrb[0].mxu0
      %2982 = vmatprep.mubr.bf16.mxu0 0
      %2983 = vmatmul.mubr.bf16.gmra.mrb[0].mxu0 %v2814
      %v2984 = vpop.f32.mrb[0].mxu0
      %v2985 = vadd.f32 0.0, %v2984
      %v2986 = vpop.f32.mrb[0].mxu0
      %v2987 = vpop.f32.mrb[0].mxu0
      %v2988 = vadd.f32 0.0, %v2987
      %v2989 = vpop.f32.mrb[0].mxu0
      %2990 = vmatprep.mubr.bf16.mxu0 0
      %2991 = vmatmul.mubr.bf16.gmra.mrb[0].mxu0 %v2817
      %v2992 = vpop.f32.mrb[0].mxu0
      %v2993 = vadd.f32 0.0, %v2992
      %v2994 = vpop.f32.mrb[0].mxu0
      %v2995 = vpop.f32.mrb[0].mxu0
      %v2996 = vadd.f32 0.0, %v2995
      %v2997 = vpop.f32.mrb[0].mxu0
      %2998 = vdwg.mxu0
      %v2999 = vadd.f32 %v2673, %v2857
      %v3000 = vadd.f32 %v2674, %v2860
      %v3001 = vadd.f32 %v2675, %v2865
      %v3002 = vadd.f32 %v2676, %v2868
      %v3003 = vadd.f32 %v2677, %v2873
      %v3004 = vadd.f32 %v2678, %v2876
      %v3005 = vadd.f32 %v2679, %v2881
      %v3006 = vadd.f32 %v2680, %v2884
      %v3007 = vadd.f32 %v2681, %v2889
      %v3008 = vadd.f32 %v2682, %v2892
      %v3009 = vadd.f32 %v2683, %v2897
      %v3010 = vadd.f32 %v2684, %v2900
      %v3011 = vadd.f32 %v2685, %v2905
      %v3012 = vadd.f32 %v2686, %v2908
      %v3013 = vadd.f32 %v2687, %v2913
      %v3014 = vadd.f32 %v2688, %v2916
      %v3015 = vadd.f32 %v2689, %v2921
      %v3016 = vadd.f32 %v2690, %v2924
      %v3017 = vadd.f32 %v2691, %v2929
      %v3018 = vadd.f32 %v2692, %v2932
      %v3019 = vadd.f32 %v2693, %v2937
      %v3020 = vadd.f32 %v2694, %v2940
      %v3021 = vadd.f32 %v2695, %v2945
      %v3022 = vadd.f32 %v2696, %v2948
      %v3023 = vadd.f32 %v2697, %v2953
      %v3024 = vadd.f32 %v2698, %v2956
      %v3025 = vadd.f32 %v2699, %v2961
      %v3026 = vadd.f32 %v2700, %v2964
      %v3027 = vadd.f32 %v2701, %v2969
      %v3028 = vadd.f32 %v2702, %v2972
      %v3029 = vadd.f32 %v2703, %v2977
      %v3030 = vadd.f32 %v2704, %v2980
      %v3031 = vadd.f32 %v2705, %v2985
      %v3032 = vadd.f32 %v2706, %v2988
      %v3033 = vadd.f32 %v2707, %v2993
      %v3034 = vadd.f32 %v2708, %v2996
      %v3035 = vld [vmem:[%s2] sm:$0x1]
      %v3037 = vlaneseq
      %v3038 = vshrl.u32 %v3037, 7
      %v3039 = vsub.s32 0, %v3038
      %v3040 = vrot.slane %v3035, %v3039
      %v3042 = vadd.f32 %v2999, %v3040
      %v3043 = vadd.f32 %v3000, %v3040
      %v3044 = vadd.f32 %v3001, %v3040
      %v3045 = vadd.f32 %v3002, %v3040
      %v3046 = vadd.f32 %v3003, %v3040
      %v3047 = vadd.f32 %v3004, %v3040
      %v3048 = vadd.f32 %v3005, %v3040
      %v3049 = vadd.f32 %v3006, %v3040
      %v3050 = vadd.f32 %v3007, %v3040
      %v3051 = vadd.f32 %v3008, %v3040
      %v3052 = vadd.f32 %v3009, %v3040
      %v3053 = vadd.f32 %v3010, %v3040
      %v3054 = vadd.f32 %v3011, %v3040
      %v3055 = vadd.f32 %v3012, %v3040
      %v3056 = vadd.f32 %v3013, %v3040
      %v3057 = vadd.f32 %v3014, %v3040
      %v3058 = vadd.f32 %v3015, %v3040
      %v3059 = vadd.f32 %v3016, %v3040
      %v3060 = vadd.f32 %v3017, %v3040
      %v3061 = vadd.f32 %v3018, %v3040
      %v3062 = vadd.f32 %v3019, %v3040
      %v3063 = vadd.f32 %v3020, %v3040
      %v3064 = vadd.f32 %v3021, %v3040
      %v3065 = vadd.f32 %v3022, %v3040
      %v3066 = vadd.f32 %v3023, %v3040
      %v3067 = vadd.f32 %v3024, %v3040
      %v3068 = vadd.f32 %v3025, %v3040
      %v3069 = vadd.f32 %v3026, %v3040
      %v3070 = vadd.f32 %v3027, %v3040
      %v3071 = vadd.f32 %v3028, %v3040
      %v3072 = vadd.f32 %v3029, %v3040
      %v3073 = vadd.f32 %v3030, %v3040
      %v3074 = vadd.f32 %v3031, %v3040
      %v3075 = vadd.f32 %v3032, %v3040
      %v3076 = vadd.f32 %v3033, %v3040
      %v3077 = vadd.f32 %v3034, %v3040
      %3078 = vst [vmem:[%s170] sm:$0xff] %v3042
      %3079 = vst [vmem:[%s170 + $0x8] sm:$0xff] %v3043
      %3080 = vst [vmem:[%s170 + $0x10] sm:$0xff] %v3044
      %3081 = vst [vmem:[%s170 + $0x18] sm:$0xff] %v3045
      %3082 = vst [vmem:[%s170 + $0x20] sm:$0xff] %v3046
      %3083 = vst [vmem:[%s170 + $0x28] sm:$0xff] %v3047
      %3084 = vst [vmem:[%s170 + $0x30] sm:$0xff] %v3048
      %3085 = vst [vmem:[%s170 + $0x38] sm:$0xff] %v3049
      %3086 = vst [vmem:[%s170 + $0x40] sm:$0xff] %v3050
      %3087 = vst [vmem:[%s170 + $0x48] sm:$0xff] %v3051
      %3088 = vst [vmem:[%s170 + $0x50] sm:$0xff] %v3052
      %3089 = vst [vmem:[%s170 + $0x58] sm:$0xff] %v3053
      %3090 = vst [vmem:[%s170 + $0x60] sm:$0xff] %v3054
      %3091 = vst [vmem:[%s170 + $0x68] sm:$0xff] %v3055
      %3092 = vst [vmem:[%s170 + $0x70] sm:$0xff] %v3056
      %3093 = vst [vmem:[%s170 + $0x78] sm:$0xff] %v3057
      %3094 = vst [vmem:[%s170 + $0x80] sm:$0xff] %v3058
      %3095 = vst [vmem:[%s170 + $0x88] sm:$0xff] %v3059
      %3096 = vst [vmem:[%s170 + $0x90] sm:$0xff] %v3060
      %3097 = vst [vmem:[%s170 + $0x98] sm:$0xff] %v3061
      %3098 = vst [vmem:[%s170 + $0xa0] sm:$0xff] %v3062
      %3099 = vst [vmem:[%s170 + $0xa8] sm:$0xff] %v3063
      %3100 = vst [vmem:[%s170 + $0xb0] sm:$0xff] %v3064
      %3101 = vst [vmem:[%s170 + $0xb8] sm:$0xff] %v3065
      %3102 = vst [vmem:[%s170 + $0xc0] sm:$0xff] %v3066
      %3103 = vst [vmem:[%s170 + $0xc8] sm:$0xff] %v3067
      %3104 = vst [vmem:[%s170 + $0xd0] sm:$0xff] %v3068
      %3105 = vst [vmem:[%s170 + $0xd8] sm:$0xff] %v3069
      %3106 = vst [vmem:[%s170 + $0xe0] sm:$0xff] %v3070
      %3107 = vst [vmem:[%s170 + $0xe8] sm:$0xff] %v3071
      %3108 = vst [vmem:[%s170 + $0xf0] sm:$0xff] %v3072
      %3109 = vst [vmem:[%s170 + $0xf8] sm:$0xff] %v3073
      %3110 = vst [vmem:[%s170 + $0x100] sm:$0xff] %v3074
      %3111 = vst [vmem:[%s170 + $0x108] sm:$0xff] %v3075
      %3112 = vst [vmem:[%s170 + $0x110] sm:$0xff] %v3076
      %3113 = vst [vmem:[%s170 + $0x118] sm:$0xff] %v3077
      %p3114 = scmp.lt.s32.totalorder %s14, 1
      %s3115 = scalar_select %p3114, %s14, 1
      %s3116 = smul.addr %s3115, 36
      %s3117 = smul.addr %s3116, 8
      %s3118 = scalar_lea.vmem %s3, %s3117
      // Predicated region
      $region33: #{separable_conv2d_forward.1} parent=31 // pred_check
        %p3119 = pneg %p100
      $region34: #{separable_conv2d_forward.1} parent=31 // pred_check_branch
        %3121 = sbr.rel (%p3119) target = $region36
      $region35: #{separable_conv2d_forward.1} parent=31 // pred_region
        _
      $region36: #{separable_conv2d_forward.1} parent=31 // pred_fallthru
        _
    $region32: #{separable_conv2d_forward.1} parent=5 // pred_fallthru
      _
    %p3122 = scmp.le.s32.totalorder 2, %s9
    // Predicated region
    $region37: #{separable_conv2d_forward.1} parent=5 // pred_check
      %p3123 = pneg %p3122
    $region38: #{separable_conv2d_forward.1} parent=5 // pred_check_branch
      %3125 = sbr.rel (%p3123) target = $region40
    $region39: #{separable_conv2d_forward.1} parent=5 // pred_region
      %s3126 = ssub.s32 %s9, 2
      // Predicated region
      $region41: #{separable_conv2d_forward.1} parent=39 // pred_check
        %p3127 = pneg %p106
      $region42: #{separable_conv2d_forward.1} parent=39 // pred_check_branch
        %3129 = sbr.rel (%p3127) target = $region44
      $region43: #{separable_conv2d_forward.1} parent=39 // pred_region
        %p3130 = scmp.lt.s32.totalorder %s15, 1
        %s3131 = scalar_select %p3130, %s15, 1
        %s3132 = smul.addr %s3131, 36
        %s3133 = smul.addr %s3132, 8
        %s3134 = scalar_lea.vmem %s3, %s3133
      $region44: #{separable_conv2d_forward.1} parent=39 // pred_fallthru
        _
    $region40: #{separable_conv2d_forward.1} parent=5 // pred_fallthru
      _
  $region6: #{separable_conv2d_forward.1} parent=0 // loop_footer
    %s13 = sadd.s32 1, %s9
  $region7: #{separable_conv2d_forward.1} parent=0 // loop_footer_branch
    %8 = sbr.rel target = $region3
  $region8: #{separable_conv2d_forward.1} parent=0 // loop_exit
    _

</llo_original>
